<compile_context>
chip_gen: v5e
topology: v5e:2x2
jax: 0.10.0
libtpu: 0.0.40
codegen_flags: <defaults>
</compile_context>

<pallas_src>
import functools

import jax
import jax.numpy as jnp
from jax import lax
from jax.experimental import pallas as pl
from jax.experimental.pallas import tpu as pltpu

_IN_EPS = 1e-5        # nn.InstanceNorm2d default eps
_NEG_SLOPE = 0.01     # nn.LeakyReLU(negative_slope=0.01)
_VMEM_LIMIT = 48 * 1024 * 1024   # safe for v7x (64 MiB physical), fine on v5e/v6e


def _round_up(x, m):
    return (x + m - 1) // m * m


# ----------------------------------------------------------------------------
# Kernel A: matmul + bias (ConvTranspose2d(k=2, s=2) expressed as a GEMM).
# ----------------------------------------------------------------------------
def _matmul_bias_kernel(x_ref, w_ref, b_ref, out_ref):
    acc = jnp.dot(x_ref[...], w_ref[...], preferred_element_type=jnp.float32)
    out_ref[...] = (acc + b_ref[...]).astype(out_ref.dtype)


def _matmul_bias(xm, w, b):
    """xm: (M, K), w: (K, N), b: (N,) -> (M, N) f32.  Tiled over M, lane dims padded to 128."""
    M, K = xm.shape
    N = w.shape[1]
    Kp = _round_up(K, 128)
    Np = _round_up(N, 128)

    TM = 512
    Mp = _round_up(M, 8)
    if Mp <= TM:
        TM = Mp
    else:
        Mp = _round_up(M, TM)

    xm_p = jnp.pad(xm.astype(jnp.float32), ((0, Mp - M), (0, Kp - K)))
    w_p = jnp.pad(w.astype(jnp.float32), ((0, Kp - K), (0, Np - N)))
    b_p = jnp.pad(b.astype(jnp.float32), (0, Np - N)).reshape(1, Np)

    cost = pl.CostEstimate(
        flops=int(2 * Mp * Kp * Np),
        transcendentals=0,
        bytes_accessed=int((Mp * Kp + Kp * Np + Np + Mp * Np) * 4),
    )

    out = pl.pallas_call(
        _matmul_bias_kernel,
        out_shape=jax.ShapeDtypeStruct((Mp, Np), jnp.float32),
        grid=(Mp // TM,),
        in_specs=[
            pl.BlockSpec((TM, Kp), lambda i: (i, 0)),
            pl.BlockSpec((Kp, Np), lambda i: (0, 0)),
            pl.BlockSpec((1, Np), lambda i: (0, 0)),
        ],
        out_specs=pl.BlockSpec((TM, Np), lambda i: (i, 0)),
        compiler_params=pltpu.CompilerParams(
            dimension_semantics=("parallel",),
            vmem_limit_bytes=_VMEM_LIMIT),
        cost_estimate=cost,
    )(xm_p, w_p, b_p)
    return out[:M, :N]


# ----------------------------------------------------------------------------
# Padded-flat NHWC layout helpers (zero ring + flattened spatial + tail rows).
#   layout: row r = hp * Wp + wp with hp in [0, H+2), wp in [0, W+2); channels padded to 128.
# ----------------------------------------------------------------------------
def _to_padded_flat(x_nhwc):
    B, H, W, C = x_nhwc.shape
    Cp = _round_up(C, 128)
    Hp, Wp = H + 2, W + 2
    L = _round_up(Hp * Wp + 2, 8)        # +2 tail rows for the in-kernel tap-slice overrun
    xp = jnp.pad(x_nhwc.astype(jnp.float32),
                 ((0, 0), (1, 1), (1, 1), (0, Cp - C)))
    xf = xp.reshape(B, Hp * Wp, Cp)
    return jnp.pad(xf, ((0, 0), (0, L - Hp * Wp), (0, 0)))


def _from_padded_flat(x_flat, H, W, C):
    B = x_flat.shape[0]
    Hp, Wp = H + 2, W + 2
    x = x_flat[:, :Hp * Wp, :C].reshape(B, Hp, Wp, C)
    x = x[:, 1:1 + H, 1:1 + W, :]
    return jnp.transpose(x, (0, 3, 1, 2))        # -> NCHW


# ----------------------------------------------------------------------------
# Kernel B: BkConv = 3x3 conv (9 shifted-slice matmuls) + bias + InstanceNorm2d + LeakyReLU,
# operating on the padded-flat layout and producing output in the same layout.
# One grid step per (batch instance, 128-wide output-channel tile).
# ----------------------------------------------------------------------------
def _bkconv_kernel(x_ref, w_ref, b_ref, g_ref, be_ref, out_ref, *, H, W, Wp):
    HWw = H * Wp                               # "wide" rows: W valid cols + 2 garbage cols/row
    Cout = out_ref.shape[-1]

    # 3x3 conv: output wide-row r = i*Wp + t needs x_flat[(i+kh)*Wp + (t+kw)], i.e. the tap
    # (kh, kw) is just the input slab shifted by kh*Wp + kw rows.  9 MXU matmuls, f32 acc.
    acc = jnp.zeros((HWw, Cout), jnp.float32)
    for kh in range(3):
        for kw in range(3):
            start = kh * Wp + kw
            lhs = x_ref[pl.ds(start, HWw), :]
            acc = acc + jnp.dot(lhs, w_ref[kh * 3 + kw],
                                preferred_element_type=jnp.float32)
    acc = acc + b_ref[...]

    # Valid-column mask: wide column t in [0, W) is a real output, t in {W, W+1} is garbage.
    col = lax.broadcasted_iota(jnp.int32, (HWw, 1), 0) % Wp
    mask = (col < W).astype(jnp.float32)

    # InstanceNorm2d: per-channel, biased variance over the H*W valid positions only.
    inv_n = 1.0 / (H * W)
    mean = jnp.sum(acc * mask, axis=0, keepdims=True) * inv_n
    cen = acc - mean
    var = jnp.sum(cen * cen * mask, axis=0, keepdims=True) * inv_n
    xn = cen * lax.rsqrt(var + _IN_EPS)        # rsqrt -> EUP slot (free next to MXU/vst)
    y = xn * g_ref[...] + be_ref[...]
    # LeakyReLU(0.01): max(y, 0.01*y) is exact for slope < 1.
    y = jnp.maximum(y, _NEG_SLOPE * y)
    y = y * mask                               # zero the garbage cols -> they land on the pad ring

    # Re-emit the padded-flat layout: zero ring/tail, valid block shifted to (row+1, col+1).
    out_ref[...] = jnp.zeros(out_ref.shape, out_ref.dtype)
    out_ref[pl.ds(Wp + 1, HWw), :] = y.astype(out_ref.dtype)


def _bkconv_flat(x_flat, H, W, conv_w, conv_b, gamma, beta):
    """x_flat: (B, L, Cp) padded-flat NHWC; conv_w: (C_out, C_in, 3, 3).
       Returns (B, L, C_out_padded) in the same padded-flat layout."""
    B, L, Cp = x_flat.shape
    C_out, C_in = conv_w.shape[0], conv_w.shape[1]
    Wp = W + 2
    HWw = H * Wp
    Coutp = _round_up(C_out, 128)
    TCO = 128
    nco = Coutp // TCO

    # Per-tap weights: (9, Cp, Coutp) with w_taps[kh*3+kw, c, o] = conv_w[o, c, kh, kw].
    w_taps = jnp.transpose(conv_w.astype(jnp.float32), (2, 3, 1, 0)).reshape(9, C_in, C_out)
    w_taps = jnp.pad(w_taps, ((0, 0), (0, Cp - C_in), (0, Coutp - C_out)))
    b_p = jnp.pad(conv_b.astype(jnp.float32), (0, Coutp - C_out)).reshape(1, Coutp)
    g_p = jnp.pad(gamma.astype(jnp.float32), (0, Coutp - C_out)).reshape(1, Coutp)
    be_p = jnp.pad(beta.astype(jnp.float32), (0, Coutp - C_out)).reshape(1, Coutp)

    kernel = functools.partial(_bkconv_kernel, H=H, W=W, Wp=Wp)

    cost = pl.CostEstimate(
        flops=int(2 * B * 9 * HWw * Cp * Coutp + 10 * B * HWw * Coutp),
        transcendentals=int(B * Coutp),
        bytes_accessed=int((B * L * Cp + 9 * Cp * Coutp + 3 * Coutp + B * L * Coutp) * 4),
    )

    out = pl.pallas_call(
        kernel,
        out_shape=jax.ShapeDtypeStruct((B, L, Coutp), jnp.float32),
        grid=(B, nco),
        in_specs=[
            pl.BlockSpec((None, L, Cp), lambda b, co: (b, 0, 0)),   # not re-DMA'd across co
            pl.BlockSpec((9, Cp, TCO), lambda b, co: (0, 0, co)),
            pl.BlockSpec((1, TCO), lambda b, co: (0, co)),
            pl.BlockSpec((1, TCO), lambda b, co: (0, co)),
            pl.BlockSpec((1, TCO), lambda b, co: (0, co)),
        ],
        out_specs=pl.BlockSpec((None, L, TCO), lambda b, co: (b, 0, co)),
        compiler_params=pltpu.CompilerParams(
            dimension_semantics=("parallel", "parallel"),
            vmem_limit_bytes=_VMEM_LIMIT),
        cost_estimate=cost,
    )(x_flat, w_taps, b_p, g_p, be_p)
    return out


# ----------------------------------------------------------------------------
# UpTransition forward.
# ----------------------------------------------------------------------------
def up_transition_forward(x, skip_x, params):
    """x: (B, C_in, Hx, Wx), skip_x: (B, C_in//2, 2*Hx, 2*Wx) -> (output, feature)."""
    B, C_in, Hx, Wx = x.shape
    up_w = params["up_w"]                 # (C_in, C_half, 2, 2)  PyTorch ConvTranspose2d layout
    up_b = params["up_b"]                 # (C_half,)
    C_half = up_w.shape[1]
    H, W = 2 * Hx, 2 * Wx

    # --- ConvTranspose2d(k=2, s=2) as a GEMM: out[b,o,2i+k,2j+l] = sum_c x[b,c,i,j]*W[c,o,k,l] ---
    xm = jnp.transpose(x, (0, 2, 3, 1)).reshape(B * Hx * Wx, C_in)       # rows = (b, i, j)
    wt = up_w.reshape(C_in, C_half * 4)                                   # cols = (o, k, l)
    bt = jnp.repeat(up_b, 4)                                              # bias per (o, k, l)
    y = _matmul_bias(xm, wt, bt)                                          # (B*Hx*Wx, C_half*4)
    y = y.reshape(B, Hx, Wx, C_half, 2, 2)
    up_nhwc = jnp.transpose(y, (0, 1, 4, 2, 5, 3)).reshape(B, H, W, C_half)

    # --- concat along channels (NHWC, cheap glue) ---
    skip_nhwc = jnp.transpose(skip_x, (0, 2, 3, 1)).astype(up_nhwc.dtype)
    concat = jnp.concatenate([up_nhwc, skip_nhwc], axis=-1)

    # --- BkConv x2: fused conv + InstanceNorm + LeakyReLU; layer 2 consumes layer 1's
    #     padded-flat output directly (no HBM relayout in between). ---
    cat_flat = _to_padded_flat(concat)
    C1 = params["conv1_w"].shape[0]
    C2 = params["conv2_w"].shape[0]
    feat_flat = _bkconv_flat(cat_flat, H, W, params["conv1_w"], params["conv1_b"],
                             params["in1_g"], params["in1_b"])
    out_flat = _bkconv_flat(feat_flat, H, W, params["conv2_w"], params["conv2_b"],
                            params["in2_g"], params["in2_b"])

    feature = _from_padded_flat(feat_flat, H, W, C1)
    output = _from_padded_flat(out_flat, H, W, C2)
    return output, feature


# ----------------------------------------------------------------------------
# Pure-JAX reference (matches PyTorch semantics) for the sanity check.
# ----------------------------------------------------------------------------
def _reference_forward(x, skip_x, p):
    B, C_in, Hx, Wx = x.shape
    up_w, up_b = p["up_w"], p["up_b"]
    C_half = up_w.shape[1]
    y = jnp.einsum("bcij,cokl->boikjl", x, up_w).reshape(B, C_half, 2 * Hx, 2 * Wx)
    y = y + up_b.reshape(1, -1, 1, 1)
    concat = jnp.concatenate([y, skip_x], axis=1)

    def bkconv(z, w, b, g, be):
        z = jax.lax.conv_general_dilated(
            z, w, window_strides=(1, 1), padding=((1, 1), (1, 1)),
            dimension_numbers=("NCHW", "OIHW", "NCHW"))
        z = z + b.reshape(1, -1, 1, 1)
        mean = jnp.mean(z, axis=(2, 3), keepdims=True)
        var = jnp.mean((z - mean) ** 2, axis=(2, 3), keepdims=True)
        z = (z - mean) * jax.lax.rsqrt(var + _IN_EPS)
        z = z * g.reshape(1, -1, 1, 1) + be.reshape(1, -1, 1, 1)
        return jnp.maximum(z, _NEG_SLOPE * z)

    feature = bkconv(concat, p["conv1_w"], p["conv1_b"], p["in1_g"], p["in1_b"])
    output = bkconv(feature, p["conv2_w"], p["conv2_b"], p["in2_g"], p["in2_b"])
    return output, feature


if __name__ == "__main__":
    key = jax.random.PRNGKey(0)
    ks = jax.random.split(key, 12)

    # Shapes consistent with UpTransition(in_channels=128, depth=2):
    #   concat channels = 128, unit_channel * 2**depth = 128 (lane-aligned), small spatial.
    B, in_channels, Hx, Wx, depth = 2, 128, 8, 8, 2
    C_half = in_channels // 2
    C1 = 32 * (2 ** depth)          # 128

    x = jax.random.normal(ks[0], (B, in_channels, Hx, Wx), dtype=jnp.float32)
    skip_x = jax.random.normal(ks[1], (B, C_half, 2 * Hx, 2 * Wx), dtype=jnp.float32)

    params = dict(
        up_w=0.1 * jax.random.normal(ks[2], (in_channels, C_half, 2, 2), jnp.float32),
        up_b=0.1 * jax.random.normal(ks[3], (C_half,), jnp.float32),
        conv1_w=0.05 * jax.random.normal(ks[4], (C1, in_channels, 3, 3), jnp.float32),
        conv1_b=0.1 * jax.random.normal(ks[5], (C1,), jnp.float32),
        in1_g=jnp.ones((C1,), jnp.float32) + 0.1 * jax.random.normal(ks[6], (C1,), jnp.float32),
        in1_b=0.1 * jax.random.normal(ks[7], (C1,), jnp.float32),
        conv2_w=0.05 * jax.random.normal(ks[8], (C1, C1, 3, 3), jnp.float32),
        conv2_b=0.1 * jax.random.normal(ks[9], (C1,), jnp.float32),
        in2_g=jnp.ones((C1,), jnp.float32) + 0.1 * jax.random.normal(ks[10], (C1,), jnp.float32),
        in2_b=0.1 * jax.random.normal(ks[11], (C1,), jnp.float32),
    )

    fwd = jax.jit(up_transition_forward)
    output, feature = fwd(x, skip_x, params)
    jax.block_until_ready((output, feature))

    # Sanity check against the pure-JAX reference.
    ref_out, ref_feat = _reference_forward(x, skip_x, params)
    assert output.shape == (B, C1, 2 * Hx, 2 * Wx)
    assert feature.shape == (B, C1, 2 * Hx, 2 * Wx)
    assert jnp.allclose(feature, ref_feat, atol=2e-3, rtol=2e-3), \
        float(jnp.max(jnp.abs(feature - ref_feat)))
    assert jnp.allclose(output, ref_out, atol=2e-3, rtol=2e-3), \
        float(jnp.max(jnp.abs(output - ref_out)))

    print("KERNEL_OK")
</pallas_src>

<mosaic_0001>
module attributes {stable_mosaic.version = 11 : i64} {
  func.func @_matmul_bias_kernel(%arg0: i32, %arg1: memref<128x128xf32, #tpu.memory_space<vmem>>, %arg2: memref<128x256xf32, #tpu.memory_space<vmem>>, %arg3: memref<1x256xf32, #tpu.memory_space<vmem>>, %arg4: memref<128x256xf32, #tpu.memory_space<vmem>>) attributes {dimension_semantics = [#tpu.dimension_semantics<parallel>], iteration_bounds = array<i64: 1>, scalar_prefetch = 0 : i64, scratch_operands = 0 : i64, tpu.core_type = #tpu.core_type<tc>, window_params = [{transform_indices = @transform_0, window_bounds = array<i64: 128, 128>}, {pipeline_mode = #tpu.pipeline_mode<synchronous>, transform_indices = @transform_1, window_bounds = array<i64: 128, 256>}, {pipeline_mode = #tpu.pipeline_mode<synchronous>, transform_indices = @transform_2, window_bounds = array<i64: 1, 256>}, {transform_indices = @transform_3, window_bounds = array<i64: 128, 256>}]} {
    %c0 = arith.constant 0 : index
    %c0_0 = arith.constant 0 : index
    %0 = vector.load %arg1[%c0, %c0_0] : memref<128x128xf32, #tpu.memory_space<vmem>>, vector<128x128xf32>
    %c0_1 = arith.constant 0 : index
    %c0_2 = arith.constant 0 : index
    %1 = vector.load %arg2[%c0_1, %c0_2] : memref<128x256xf32, #tpu.memory_space<vmem>>, vector<128x256xf32>
    %cst = arith.constant dense<0.000000e+00> : vector<128x256xf32>
    %2 = tpu.matmul %0, %1, %cst {dimension_numbers = #tpu.dot_dimension_numbers<[1], [0], [0], [1], [0, 0, 1, 1], [], []>} : vector<128x128xf32>, vector<128x256xf32>, vector<128x256xf32> -> vector<128x256xf32>
    %c0_3 = arith.constant 0 : index
    %c0_4 = arith.constant 0 : index
    %3 = vector.load %arg3[%c0_3, %c0_4] : memref<1x256xf32, #tpu.memory_space<vmem>>, vector<1x256xf32>
    %4 = vector.broadcast %3 : vector<1x256xf32> to vector<128x256xf32>
    %5 = arith.addf %2, %4 : vector<128x256xf32>
    %c0_5 = arith.constant 0 : index
    %c0_6 = arith.constant 0 : index
    %6 = vector.load %arg4[%c0_5, %c0_6] : memref<128x256xf32, #tpu.memory_space<vmem>>, vector<128x256xf32>
    tpu.vector_store %arg4[%c0_5, %c0_6], %5 {strides = array<i32>} : memref<128x256xf32, #tpu.memory_space<vmem>>, vector<128x256xf32>,
    return
  }
  func.func @transform_0(%arg0: i32) -> (i32, i32) {
    %c0_i32 = arith.constant 0 : i32
    %c0_i32_0 = arith.constant 0 : i32
    return %arg0, %c0_i32 : i32, i32
  }
  func.func @transform_1(%arg0: i32) -> (i32, i32) {
    %c0_i32 = arith.constant 0 : i32
    %c0_i32_0 = arith.constant 0 : i32
    %c0_i32_1 = arith.constant 0 : i32
    return %c0_i32, %c0_i32_0 : i32, i32
  }
  func.func @transform_2(%arg0: i32) -> (i32, i32) {
    %c0_i32 = arith.constant 0 : i32
    %c0_i32_0 = arith.constant 0 : i32
    %c0_i32_1 = arith.constant 0 : i32
    return %c0_i32, %c0_i32_0 : i32, i32
  }
  func.func @transform_3(%arg0: i32) -> (i32, i32) {
    %c0_i32 = arith.constant 0 : i32
    %c0_i32_0 = arith.constant 0 : i32
    return %arg0, %c0_i32 : i32, i32
  }
}

module attributes {stable_mosaic.version = 11 : i64} {
  func.func @_bkconv_kernel(%arg0: i32, %arg1: i32, %arg2: memref<1x328x128xf32, #tpu.memory_space<vmem>>, %arg3: memref<9x128x128xf32, #tpu.memory_space<vmem>>, %arg4: memref<1x128xf32, #tpu.memory_space<vmem>>, %arg5: memref<1x128xf32, #tpu.memory_space<vmem>>, %arg6: memref<1x128xf32, #tpu.memory_space<vmem>>, %arg7: memref<1x328x128xf32, #tpu.memory_space<vmem>>) attributes {dimension_semantics = [#tpu.dimension_semantics<parallel>, #tpu.dimension_semantics<parallel>], iteration_bounds = array<i64: 2, 1>, scalar_prefetch = 0 : i64, scratch_operands = 0 : i64, tpu.core_type = #tpu.core_type<tc>, window_params = [{transform_indices = @transform_0, window_bounds = array<i64: 1, 328, 128>}, {transform_indices = @transform_1, window_bounds = array<i64: 9, 128, 128>}, {transform_indices = @transform_2, window_bounds = array<i64: 1, 128>}, {transform_indices = @transform_3, window_bounds = array<i64: 1, 128>}, {transform_indices = @transform_4, window_bounds = array<i64: 1, 128>}, {transform_indices = @transform_5, window_bounds = array<i64: 1, 328, 128>}]} {
    %cst = arith.constant 0.000000e+00 : f32
    %0 = vector.broadcast %cst : f32 to vector<288x128xf32>
    %c0 = arith.constant 0 : index
    %c0_0 = arith.constant 0 : index
    %c0_1 = arith.constant 0 : index
    %1 = vector.load %arg2[%c0, %c0_0, %c0_1] : memref<1x328x128xf32, #tpu.memory_space<vmem>>, vector<1x288x128xf32>
    %2 = vector.shape_cast %1 : vector<1x288x128xf32> to vector<288x128xf32>
    %c0_2 = arith.constant 0 : index
    %c0_3 = arith.constant 0 : index
    %c0_4 = arith.constant 0 : index
    %3 = vector.load %arg3[%c0_2, %c0_3, %c0_4] : memref<9x128x128xf32, #tpu.memory_space<vmem>>, vector<1x128x128xf32>
    %4 = vector.shape_cast %3 : vector<1x128x128xf32> to vector<128x128xf32>
    %cst_5 = arith.constant dense<0.000000e+00> : vector<288x128xf32>
    %5 = tpu.matmul %2, %4, %cst_5 {dimension_numbers = #tpu.dot_dimension_numbers<[1], [0], [0], [1], [0, 0, 1, 1], [], []>} : vector<288x128xf32>, vector<128x128xf32>, vector<288x128xf32> -> vector<288x128xf32>
    %6 = arith.addf %0, %5 : vector<288x128xf32>
    %c0_6 = arith.constant 0 : index
    %c1 = arith.constant 1 : index
    %c0_7 = arith.constant 0 : index
    %7 = vector.load %arg2[%c0_6, %c1, %c0_7] : memref<1x328x128xf32, #tpu.memory_space<vmem>>, vector<1x288x128xf32>
    %8 = vector.shape_cast %7 : vector<1x288x128xf32> to vector<288x128xf32>
    %c1_8 = arith.constant 1 : index
    %c0_9 = arith.constant 0 : index
    %c0_10 = arith.constant 0 : index
    %9 = vector.load %arg3[%c1_8, %c0_9, %c0_10] : memref<9x128x128xf32, #tpu.memory_space<vmem>>, vector<1x128x128xf32>
    %10 = vector.shape_cast %9 : vector<1x128x128xf32> to vector<128x128xf32>
    %cst_11 = arith.constant dense<0.000000e+00> : vector<288x128xf32>
    %11 = tpu.matmul %8, %10, %cst_11 {dimension_numbers = #tpu.dot_dimension_numbers<[1], [0], [0], [1], [0, 0, 1, 1], [], []>} : vector<288x128xf32>, vector<128x128xf32>, vector<288x128xf32> -> vector<288x128xf32>
    %12 = arith.addf %6, %11 : vector<288x128xf32>
    %c0_12 = arith.constant 0 : index
    %c2 = arith.constant 2 : index
    %c0_13 = arith.constant 0 : index
    %13 = vector.load %arg2[%c0_12, %c2, %c0_13] : memref<1x328x128xf32, #tpu.memory_space<vmem>>, vector<1x288x128xf32>
    %14 = vector.shape_cast %13 : vector<1x288x128xf32> to vector<288x128xf32>
    %c2_14 = arith.constant 2 : index
    %c0_15 = arith.constant 0 : index
    %c0_16 = arith.constant 0 : index
    %15 = vector.load %arg3[%c2_14, %c0_15, %c0_16] : memref<9x128x128xf32, #tpu.memory_space<vmem>>, vector<1x128x128xf32>
    %16 = vector.shape_cast %15 : vector<1x128x128xf32> to vector<128x128xf32>
    %cst_17 = arith.constant dense<0.000000e+00> : vector<288x128xf32>
    %17 = tpu.matmul %14, %16, %cst_17 {dimension_numbers = #tpu.dot_dimension_numbers<[1], [0], [0], [1], [0, 0, 1, 1], [], []>} : vector<288x128xf32>, vector<128x128xf32>, vector<288x128xf32> -> vector<288x128xf32>
    %18 = arith.addf %12, %17 : vector<288x128xf32>
    %c0_18 = arith.constant 0 : index
    %c18 = arith.constant 18 : index
    %c0_19 = arith.constant 0 : index
    %19 = vector.load %arg2[%c0_18, %c18, %c0_19] : memref<1x328x128xf32, #tpu.memory_space<vmem>>, vector<1x288x128xf32>
    %20 = vector.shape_cast %19 : vector<1x288x128xf32> to vector<288x128xf32>
    %c3 = arith.constant 3 : index
    %c0_20 = arith.constant 0 : index
    %c0_21 = arith.constant 0 : index
    %21 = vector.load %arg3[%c3, %c0_20, %c0_21] : memref<9x128x128xf32, #tpu.memory_space<vmem>>, vector<1x128x128xf32>
    %22 = vector.shape_cast %21 : vector<1x128x128xf32> to vector<128x128xf32>
    %cst_22 = arith.constant dense<0.000000e+00> : vector<288x128xf32>
    %23 = tpu.matmul %20, %22, %cst_22 {dimension_numbers = #tpu.dot_dimension_numbers<[1], [0], [0], [1], [0, 0, 1, 1], [], []>} : vector<288x128xf32>, vector<128x128xf32>, vector<288x128xf32> -> vector<288x128xf32>
    %24 = arith.addf %18, %23 : vector<288x128xf32>
    %c0_23 = arith.constant 0 : index
    %c19 = arith.constant 19 : index
    %c0_24 = arith.constant 0 : index
    %25 = vector.load %arg2[%c0_23, %c19, %c0_24] : memref<1x328x128xf32, #tpu.memory_space<vmem>>, vector<1x288x128xf32>
    %26 = vector.shape_cast %25 : vector<1x288x128xf32> to vector<288x128xf32>
    %c4 = arith.constant 4 : index
    %c0_25 = arith.constant 0 : index
    %c0_26 = arith.constant 0 : index
    %27 = vector.load %arg3[%c4, %c0_25, %c0_26] : memref<9x128x128xf32, #tpu.memory_space<vmem>>, vector<1x128x128xf32>
    %28 = vector.shape_cast %27 : vector<1x128x128xf32> to vector<128x128xf32>
    %cst_27 = arith.constant dense<0.000000e+00> : vector<288x128xf32>
    %29 = tpu.matmul %26, %28, %cst_27 {dimension_numbers = #tpu.dot_dimension_numbers<[1], [0], [0], [1], [0, 0, 1, 1], [], []>} : vector<288x128xf32>, vector<128x128xf32>, vector<288x128xf32> -> vector<288x128xf32>
    %30 = arith.addf %24, %29 : vector<288x128xf32>
    %c0_28 = arith.constant 0 : index
    %c20 = arith.constant 20 : index
    %c0_29 = arith.constant 0 : index
    %31 = vector.load %arg2[%c0_28, %c20, %c0_29] : memref<1x328x128xf32, #tpu.memory_space<vmem>>, vector<1x288x128xf32>
    %32 = vector.shape_cast %31 : vector<1x288x128xf32> to vector<288x128xf32>
    %c5 = arith.constant 5 : index
    %c0_30 = arith.constant 0 : index
    %c0_31 = arith.constant 0 : index
    %33 = vector.load %arg3[%c5, %c0_30, %c0_31] : memref<9x128x128xf32, #tpu.memory_space<vmem>>, vector<1x128x128xf32>
    %34 = vector.shape_cast %33 : vector<1x128x128xf32> to vector<128x128xf32>
    %cst_32 = arith.constant dense<0.000000e+00> : vector<288x128xf32>
    %35 = tpu.matmul %32, %34, %cst_32 {dimension_numbers = #tpu.dot_dimension_numbers<[1], [0], [0], [1], [0, 0, 1, 1], [], []>} : vector<288x128xf32>, vector<128x128xf32>, vector<288x128xf32> -> vector<288x128xf32>
    %36 = arith.addf %30, %35 : vector<288x128xf32>
    %c0_33 = arith.constant 0 : index
    %c36 = arith.constant 36 : index
    %c0_34 = arith.constant 0 : index
    %37 = vector.load %arg2[%c0_33, %c36, %c0_34] : memref<1x328x128xf32, #tpu.memory_space<vmem>>, vector<1x288x128xf32>
    %38 = vector.shape_cast %37 : vector<1x288x128xf32> to vector<288x128xf32>
    %c6 = arith.constant 6 : index
    %c0_35 = arith.constant 0 : index
    %c0_36 = arith.constant 0 : index
    %39 = vector.load %arg3[%c6, %c0_35, %c0_36] : memref<9x128x128xf32, #tpu.memory_space<vmem>>, vector<1x128x128xf32>
    %40 = vector.shape_cast %39 : vector<1x128x128xf32> to vector<128x128xf32>
    %cst_37 = arith.constant dense<0.000000e+00> : vector<288x128xf32>
    %41 = tpu.matmul %38, %40, %cst_37 {dimension_numbers = #tpu.dot_dimension_numbers<[1], [0], [0], [1], [0, 0, 1, 1], [], []>} : vector<288x128xf32>, vector<128x128xf32>, vector<288x128xf32> -> vector<288x128xf32>
    %42 = arith.addf %36, %41 : vector<288x128xf32>
    %c0_38 = arith.constant 0 : index
    %c37 = arith.constant 37 : index
    %c0_39 = arith.constant 0 : index
    %43 = vector.load %arg2[%c0_38, %c37, %c0_39] : memref<1x328x128xf32, #tpu.memory_space<vmem>>, vector<1x288x128xf32>
    %44 = vector.shape_cast %43 : vector<1x288x128xf32> to vector<288x128xf32>
    %c7 = arith.constant 7 : index
    %c0_40 = arith.constant 0 : index
    %c0_41 = arith.constant 0 : index
    %45 = vector.load %arg3[%c7, %c0_40, %c0_41] : memref<9x128x128xf32, #tpu.memory_space<vmem>>, vector<1x128x128xf32>
    %46 = vector.shape_cast %45 : vector<1x128x128xf32> to vector<128x128xf32>
    %cst_42 = arith.constant dense<0.000000e+00> : vector<288x128xf32>
    %47 = tpu.matmul %44, %46, %cst_42 {dimension_numbers = #tpu.dot_dimension_numbers<[1], [0], [0], [1], [0, 0, 1, 1], [], []>} : vector<288x128xf32>, vector<128x128xf32>, vector<288x128xf32> -> vector<288x128xf32>
    %48 = arith.addf %42, %47 : vector<288x128xf32>
    %c0_43 = arith.constant 0 : index
    %c38 = arith.constant 38 : index
    %c0_44 = arith.constant 0 : index
    %49 = vector.load %arg2[%c0_43, %c38, %c0_44] : memref<1x328x128xf32, #tpu.memory_space<vmem>>, vector<1x288x128xf32>
    %50 = vector.shape_cast %49 : vector<1x288x128xf32> to vector<288x128xf32>
    %c8 = arith.constant 8 : index
    %c0_45 = arith.constant 0 : index
    %c0_46 = arith.constant 0 : index
    %51 = vector.load %arg3[%c8, %c0_45, %c0_46] : memref<9x128x128xf32, #tpu.memory_space<vmem>>, vector<1x128x128xf32>
    %52 = vector.shape_cast %51 : vector<1x128x128xf32> to vector<128x128xf32>
    %cst_47 = arith.constant dense<0.000000e+00> : vector<288x128xf32>
    %53 = tpu.matmul %50, %52, %cst_47 {dimension_numbers = #tpu.dot_dimension_numbers<[1], [0], [0], [1], [0, 0, 1, 1], [], []>} : vector<288x128xf32>, vector<128x128xf32>, vector<288x128xf32> -> vector<288x128xf32>
    %54 = arith.addf %48, %53 : vector<288x128xf32>
    %c0_48 = arith.constant 0 : index
    %c0_49 = arith.constant 0 : index
    %55 = vector.load %arg4[%c0_48, %c0_49] : memref<1x128xf32, #tpu.memory_space<vmem>>, vector<1x128xf32>
    %56 = vector.broadcast %55 : vector<1x128xf32> to vector<288x128xf32>
    %57 = arith.addf %54, %56 : vector<288x128xf32>
    %58 = tpu.iota {dimensions = array<i32: 0>} : vector<288x1xi32>
    %c18_i32 = arith.constant 18 : i32
    %c0_i32 = arith.constant 0 : i32
    %59 = arith.cmpi eq, %c18_i32, %c0_i32 : i32
    %c1_i32 = arith.constant 1 : i32
    %60 = arith.select %59, %c1_i32, %c18_i32 : i32
    %61 = vector.broadcast %60 : i32 to vector<288x1xi32>
    %62 = arith.remsi %58, %61 : vector<288x1xi32>
    %c0_i32_50 = arith.constant 0 : i32
    %63 = vector.broadcast %c0_i32_50 : i32 to vector<288x1xi32>
    %64 = arith.cmpi ne, %62, %63 : vector<288x1xi32>
    %c0_i32_51 = arith.constant 0 : i32
    %65 = vector.broadcast %c0_i32_51 : i32 to vector<288x1xi32>
    %66 = arith.cmpi slt, %62, %65 : vector<288x1xi32>
    %c0_i32_52 = arith.constant 0 : i32
    %67 = arith.cmpi slt, %60, %c0_i32_52 : i32
    %68 = vector.broadcast %67 : i1 to vector<288x1xi1>
    %69 = vector.broadcast %68 : vector<288x1xi1> to vector<288x1xi1>
    %70 = arith.xori %66, %69 : vector<288x1xi1>
    %71 = arith.andi %70, %64 : vector<288x1xi1>
    %72 = vector.broadcast %60 : i32 to vector<288x1xi32>
    %73 = arith.addi %62, %72 : vector<288x1xi32>
    %74 = arith.select %71, %73, %62 : vector<288x1xi1>, vector<288x1xi32>
    %c16_i32 = arith.constant 16 : i32
    %75 = vector.broadcast %c16_i32 : i32 to vector<288x1xi32>
    %76 = arith.cmpi slt, %74, %75 : vector<288x1xi32>
    %77 = arith.extui %76 : vector<288x1xi1> to vector<288x1xi32>
    %78 = arith.sitofp %77 : vector<288x1xi32> to vector<288x1xf32>
    %79 = vector.broadcast %78 : vector<288x1xf32> to vector<288x128xf32>
    %80 = arith.mulf %57, %79 : vector<288x128xf32>
    %cst_53 = arith.constant dense<0.000000e+00> : vector<128xf32>
    %81 = vector.multi_reduction <add>, %80, %cst_53 [0] : vector<288x128xf32> to vector<128xf32>
    %82 = vector.shape_cast %81 : vector<128xf32> to vector<1x128xf32>
    %cst_54 = arith.constant 3.906250e-03 : f32
    %83 = vector.broadcast %cst_54 : f32 to vector<1x128xf32>
    %84 = arith.mulf %82, %83 : vector<1x128xf32>
    %85 = vector.broadcast %84 : vector<1x128xf32> to vector<288x128xf32>
    %86 = arith.subf %57, %85 : vector<288x128xf32>
    %87 = arith.mulf %86, %86 : vector<288x128xf32>
    %88 = vector.broadcast %78 : vector<288x1xf32> to vector<288x128xf32>
    %89 = arith.mulf %87, %88 : vector<288x128xf32>
    %cst_55 = arith.constant dense<0.000000e+00> : vector<128xf32>
    %90 = vector.multi_reduction <add>, %89, %cst_55 [0] : vector<288x128xf32> to vector<128xf32>
    %91 = vector.shape_cast %90 : vector<128xf32> to vector<1x128xf32>
    %cst_56 = arith.constant 3.906250e-03 : f32
    %92 = vector.broadcast %cst_56 : f32 to vector<1x128xf32>
    %93 = arith.mulf %91, %92 : vector<1x128xf32>
    %cst_57 = arith.constant 9.99999974E-6 : f32
    %94 = vector.broadcast %cst_57 : f32 to vector<1x128xf32>
    %95 = arith.addf %93, %94 : vector<1x128xf32>
    %96 = math.rsqrt %95 : vector<1x128xf32>
    %97 = vector.broadcast %96 : vector<1x128xf32> to vector<288x128xf32>
    %98 = arith.mulf %86, %97 : vector<288x128xf32>
    %c0_58 = arith.constant 0 : index
    %c0_59 = arith.constant 0 : index
    %99 = vector.load %arg5[%c0_58, %c0_59] : memref<1x128xf32, #tpu.memory_space<vmem>>, vector<1x128xf32>
    %100 = vector.broadcast %99 : vector<1x128xf32> to vector<288x128xf32>
    %101 = arith.mulf %98, %100 : vector<288x128xf32>
    %c0_60 = arith.constant 0 : index
    %c0_61 = arith.constant 0 : index
    %102 = vector.load %arg6[%c0_60, %c0_61] : memref<1x128xf32, #tpu.memory_space<vmem>>, vector<1x128xf32>
    %103 = vector.broadcast %102 : vector<1x128xf32> to vector<288x128xf32>
    %104 = arith.addf %101, %103 : vector<288x128xf32>
    %cst_62 = arith.constant 0.00999999977 : f32
    %105 = vector.broadcast %cst_62 : f32 to vector<288x128xf32>
    %106 = arith.mulf %105, %104 : vector<288x128xf32>
    %107 = arith.maximumf %104, %106 : vector<288x128xf32>
    %108 = vector.broadcast %78 : vector<288x1xf32> to vector<288x128xf32>
    %109 = arith.mulf %107, %108 : vector<288x128xf32>
    %cst_63 = arith.constant 0.000000e+00 : f32
    %110 = vector.broadcast %cst_63 : f32 to vector<328x128xf32>
    %c0_64 = arith.constant 0 : index
    %c0_65 = arith.constant 0 : index
    %c0_66 = arith.constant 0 : index
    %111 = vector.load %arg7[%c0_64, %c0_65, %c0_66] : memref<1x328x128xf32, #tpu.memory_space<vmem>>, vector<1x328x128xf32>
    %112 = vector.shape_cast %111 : vector<1x328x128xf32> to vector<328x128xf32>
    %113 = vector.shape_cast %110 : vector<328x128xf32> to vector<1x328x128xf32>
    tpu.vector_store %arg7[%c0_64, %c0_65, %c0_66], %113 {strides = array<i32>} : memref<1x328x128xf32, #tpu.memory_space<vmem>>, vector<1x328x128xf32>,
    %c0_67 = arith.constant 0 : index
    %c19_68 = arith.constant 19 : index
    %c0_69 = arith.constant 0 : index
    %114 = vector.load %arg7[%c0_67, %c19_68, %c0_69] : memref<1x328x128xf32, #tpu.memory_space<vmem>>, vector<1x288x128xf32>
    %115 = vector.shape_cast %114 : vector<1x288x128xf32> to vector<288x128xf32>
    %116 = vector.shape_cast %109 : vector<288x128xf32> to vector<1x288x128xf32>
    tpu.vector_store %arg7[%c0_67, %c19_68, %c0_69], %116 {strides = array<i32>} : memref<1x328x128xf32, #tpu.memory_space<vmem>>, vector<1x288x128xf32>,
    return
  }
  func.func @transform_0(%arg0: i32, %arg1: i32) -> (i32, i32, i32) {
    %c0_i32 = arith.constant 0 : i32
    %c0_i32_0 = arith.constant 0 : i32
    %c0_i32_1 = arith.constant 0 : i32
    return %arg0, %c0_i32, %c0_i32_0 : i32, i32, i32
  }
  func.func @transform_1(%arg0: i32, %arg1: i32) -> (i32, i32, i32) {
    %c0_i32 = arith.constant 0 : i32
    %c0_i32_0 = arith.constant 0 : i32
    %c0_i32_1 = arith.constant 0 : i32
    return %c0_i32, %c0_i32_0, %arg1 : i32, i32, i32
  }
  func.func @transform_2(%arg0: i32, %arg1: i32) -> (i32, i32) {
    %c0_i32 = arith.constant 0 : i32
    %c0_i32_0 = arith.constant 0 : i32
    return %c0_i32, %arg1 : i32, i32
  }
  func.func @transform_3(%arg0: i32, %arg1: i32) -> (i32, i32) {
    %c0_i32 = arith.constant 0 : i32
    %c0_i32_0 = arith.constant 0 : i32
    return %c0_i32, %arg1 : i32, i32
  }
  func.func @transform_4(%arg0: i32, %arg1: i32) -> (i32, i32) {
    %c0_i32 = arith.constant 0 : i32
    %c0_i32_0 = arith.constant 0 : i32
    return %c0_i32, %arg1 : i32, i32
  }
  func.func @transform_5(%arg0: i32, %arg1: i32) -> (i32, i32, i32) {
    %c0_i32 = arith.constant 0 : i32
    %c0_i32_0 = arith.constant 0 : i32
    return %arg0, %c0_i32, %arg1 : i32, i32, i32
  }
}

</mosaic_0001>

<llo_original>
// kernel: up_transition_forward.3
$region0: #{up_transition_forward.3}
  #allocation0 [shape = 'u32[]', space=smem, size = 0x4, offset = 0x4, fixed_abs, tag = 'smem constant byte address 0x4 - core index']
  #allocation1 [shape = 'u32[72,128]{1,0:T(1,128)}', space=vmem, size = 0x9000, scoped, tag = 'internal scratch']
  %s0 = inlined_call_operand.hbm [shape: f32[128,128], index: 0, kind: input, shape index: {}]
  %s1 = inlined_call_operand.vmem [shape: f32[128,256], index: 1, kind: input, shape index: {}]
  %s2 = inlined_call_operand.vmem [shape: f32[1,256], index: 2, kind: input, shape index: {}]
  %s3 = inlined_call_operand.vmem [shape: f32[128,256], index: 3, kind: output, shape index: {}]
  %s4 = sld [smem:[#allocation0]]
  $region26: #{up_transition_forward.3} parent=0
    _
  %s6 = ssub.s32 1, %s4
  %s7 = scalar_select 0, %s6, %s4
  $region1: #{up_transition_forward.3} parent=0
    #allocation2 [shape = 'u8[65536]{0}', space=vmem, size = 0x10000, scoped, tag = 'input window, operand 0, single buffered']
    #allocation3 [shape = 's32[1]{0}', space=sflag, size = 0x4, scoped, tag = 'scoped memory for up_transition_forward.3']
    %8 = vsyncpa [#allocation3], 0
    // Predicated region
    $region2: #{up_transition_forward.3} parent=1 // pred_check
      _
    $region3: #{up_transition_forward.3} parent=1 // pred_check_branch
      %10 = sbr.rel (0) target = $region5
    $region4: #{up_transition_forward.3} parent=1 // pred_region
      %12 = vsyncadd [#allocation3], 0
      %s13 = sshll.u32 %s0, 4
      %s14 = int_to_ptr.hbm [resolvable:$true] %s13
      %s15 = sshll.u32 [#allocation2], 4
      %s16 = int_to_ptr.vmem [resolvable:$true] %s15
      %21 = dma.hbm_to_vmem [thread:$0]  %s14, 2048, %s16, [#allocation3], 128, 128, 8
    $region5: #{up_transition_forward.3} parent=1 // pred_fallthru
      _
    // Predicated region
    $region6: #{up_transition_forward.3} parent=1 // pred_check
      _
    $region7: #{up_transition_forward.3} parent=1 // pred_check_branch
      %23 = sbr.rel (0) target = $region9
    $region8: #{up_transition_forward.3} parent=1 // pred_region
      _
    $region9: #{up_transition_forward.3} parent=1 // pred_fallthru
      _
    // Predicated region
    $region10: #{up_transition_forward.3} parent=1 // pred_check
      _
    $region11: #{up_transition_forward.3} parent=1 // pred_check_branch
      %25 = sbr.rel (0) target = $region13
    $region12: #{up_transition_forward.3} parent=1 // pred_region
      _
    $region13: #{up_transition_forward.3} parent=1 // pred_fallthru
      _
    // Predicated region
    $region14: #{up_transition_forward.3} parent=1 // pred_check
      _
    $region15: #{up_transition_forward.3} parent=1 // pred_check_branch
      %27 = sbr.rel (0) target = $region17
    $region16: #{up_transition_forward.3} parent=1 // pred_region
      %29 = dma.done [#allocation3], 2048
    $region17: #{up_transition_forward.3} parent=1 // pred_fallthru
      _
    %v30 = vld [vmem:[#allocation2] sm:$0xff]
    %v31 = vld [vmem:[#allocation2 + $0x8] sm:$0xff]
    %v32 = vld [vmem:[#allocation2 + $0x10] sm:$0xff]
    %v33 = vld [vmem:[#allocation2 + $0x18] sm:$0xff]
    %v34 = vld [vmem:[#allocation2 + $0x20] sm:$0xff]
    %v35 = vld [vmem:[#allocation2 + $0x28] sm:$0xff]
    %v36 = vld [vmem:[#allocation2 + $0x30] sm:$0xff]
    %v37 = vld [vmem:[#allocation2 + $0x38] sm:$0xff]
    %v38 = vld [vmem:[#allocation2 + $0x40] sm:$0xff]
    %v39 = vld [vmem:[#allocation2 + $0x48] sm:$0xff]
    %v40 = vld [vmem:[#allocation2 + $0x50] sm:$0xff]
    %v41 = vld [vmem:[#allocation2 + $0x58] sm:$0xff]
    %v42 = vld [vmem:[#allocation2 + $0x60] sm:$0xff]
    %v43 = vld [vmem:[#allocation2 + $0x68] sm:$0xff]
    %v44 = vld [vmem:[#allocation2 + $0x70] sm:$0xff]
    %v45 = vld [vmem:[#allocation2 + $0x78] sm:$0xff]
    %v46 = vld [vmem:[%s1] sm:$0xff]
    %v47 = vld [vmem:[%s1 + $0x8] sm:$0xff]
    %v48 = vld [vmem:[%s1 + $0x10] sm:$0xff]
    %v49 = vld [vmem:[%s1 + $0x18] sm:$0xff]
    %v50 = vld [vmem:[%s1 + $0x20] sm:$0xff]
    %v51 = vld [vmem:[%s1 + $0x28] sm:$0xff]
    %v52 = vld [vmem:[%s1 + $0x30] sm:$0xff]
    %v53 = vld [vmem:[%s1 + $0x38] sm:$0xff]
    %v54 = vld [vmem:[%s1 + $0x40] sm:$0xff]
    %v55 = vld [vmem:[%s1 + $0x48] sm:$0xff]
    %v56 = vld [vmem:[%s1 + $0x50] sm:$0xff]
    %v57 = vld [vmem:[%s1 + $0x58] sm:$0xff]
    %v58 = vld [vmem:[%s1 + $0x60] sm:$0xff]
    %v59 = vld [vmem:[%s1 + $0x68] sm:$0xff]
    %v60 = vld [vmem:[%s1 + $0x70] sm:$0xff]
    %v61 = vld [vmem:[%s1 + $0x78] sm:$0xff]
    %v62 = vld [vmem:[%s1 + $0x80] sm:$0xff]
    %v63 = vld [vmem:[%s1 + $0x88] sm:$0xff]
    %v64 = vld [vmem:[%s1 + $0x90] sm:$0xff]
    %v65 = vld [vmem:[%s1 + $0x98] sm:$0xff]
    %v66 = vld [vmem:[%s1 + $0xa0] sm:$0xff]
    %v67 = vld [vmem:[%s1 + $0xa8] sm:$0xff]
    %v68 = vld [vmem:[%s1 + $0xb0] sm:$0xff]
    %v69 = vld [vmem:[%s1 + $0xb8] sm:$0xff]
    %v70 = vld [vmem:[%s1 + $0xc0] sm:$0xff]
    %v71 = vld [vmem:[%s1 + $0xc8] sm:$0xff]
    %v72 = vld [vmem:[%s1 + $0xd0] sm:$0xff]
    %v73 = vld [vmem:[%s1 + $0xd8] sm:$0xff]
    %v74 = vld [vmem:[%s1 + $0xe0] sm:$0xff]
    %v75 = vld [vmem:[%s1 + $0xe8] sm:$0xff]
    %v76 = vld [vmem:[%s1 + $0xf0] sm:$0xff]
    %v77 = vld [vmem:[%s1 + $0xf8] sm:$0xff]
    %v78 = vld [vmem:[%s2] sm:$0x3]
    %v80 = vperm.slane %v78, 0
    %v81 = vperm.slane %v78, 1
    %84 = vmatpush.msra.mxu0 %v76
    %85 = vmatpush.msra.mxu0 %v74
    %86 = vmatpush.msra.mxu0 %v72
    %87 = vmatpush.msra.mxu0 %v70
    %88 = vmatpush.msra.mxu0 %v68
    %89 = vmatpush.msra.mxu0 %v66
    %90 = vmatpush.msra.mxu0 %v64
    %91 = vmatpush.msra.mxu0 %v62
    %92 = vmatpush.msra.mxu0 %v60
    %93 = vmatpush.msra.mxu0 %v58
    %94 = vmatpush.msra.mxu0 %v56
    %95 = vmatpush.msra.mxu0 %v54
    %96 = vmatpush.msra.mxu0 %v52
    %97 = vmatpush.msra.mxu0 %v50
    %98 = vmatpush.msra.mxu0 %v48
    %99 = vmatpush.msra.mxu0 %v46
    %100 = vmatmul.f32.gmra.mxu0 %v30
    %v101 = vpop.f32.mrf.mxu0
    %v102 = vadd.f32 %v80, %v101
    %103 = vmatmul.f32.gmra.mxu0 %v31
    %v104 = vpop.f32.mrf.mxu0
    %v105 = vadd.f32 %v80, %v104
    %106 = vmatmul.f32.gmra.mxu0 %v32
    %v107 = vpop.f32.mrf.mxu0
    %v108 = vadd.f32 %v80, %v107
    %109 = vmatmul.f32.gmra.mxu0 %v33
    %v110 = vpop.f32.mrf.mxu0
    %v111 = vadd.f32 %v80, %v110
    %112 = vmatmul.f32.gmra.mxu0 %v34
    %v113 = vpop.f32.mrf.mxu0
    %v114 = vadd.f32 %v80, %v113
    %115 = vmatmul.f32.gmra.mxu0 %v35
    %v116 = vpop.f32.mrf.mxu0
    %v117 = vadd.f32 %v80, %v116
    %118 = vmatmul.f32.gmra.mxu0 %v36
    %v119 = vpop.f32.mrf.mxu0
    %v120 = vadd.f32 %v80, %v119
    %121 = vmatmul.f32.gmra.mxu0 %v37
    %v122 = vpop.f32.mrf.mxu0
    %v123 = vadd.f32 %v80, %v122
    %124 = vmatmul.f32.gmra.mxu0 %v38
    %v125 = vpop.f32.mrf.mxu0
    %v126 = vadd.f32 %v80, %v125
    %127 = vmatmul.f32.gmra.mxu0 %v39
    %v128 = vpop.f32.mrf.mxu0
    %v129 = vadd.f32 %v80, %v128
    %130 = vmatmul.f32.gmra.mxu0 %v40
    %v131 = vpop.f32.mrf.mxu0
    %v132 = vadd.f32 %v80, %v131
    %133 = vmatmul.f32.gmra.mxu0 %v41
    %v134 = vpop.f32.mrf.mxu0
    %v135 = vadd.f32 %v80, %v134
    %136 = vmatmul.f32.gmra.mxu0 %v42
    %v137 = vpop.f32.mrf.mxu0
    %v138 = vadd.f32 %v80, %v137
    %139 = vmatmul.f32.gmra.mxu0 %v43
    %v140 = vpop.f32.mrf.mxu0
    %v141 = vadd.f32 %v80, %v140
    %142 = vmatmul.f32.gmra.mxu0 %v44
    %v143 = vpop.f32.mrf.mxu0
    %v144 = vadd.f32 %v80, %v143
    %145 = vmatmul.f32.gmra.mxu0 %v45
    %v146 = vpop.f32.mrf.mxu0
    %v147 = vadd.f32 %v80, %v146
    %148 = vdwg.mxu0
    %149 = vmatpush.msra.mxu0 %v77
    %150 = vmatpush.msra.mxu0 %v75
    %151 = vmatpush.msra.mxu0 %v73
    %152 = vmatpush.msra.mxu0 %v71
    %153 = vmatpush.msra.mxu0 %v69
    %154 = vmatpush.msra.mxu0 %v67
    %155 = vmatpush.msra.mxu0 %v65
    %156 = vmatpush.msra.mxu0 %v63
    %157 = vmatpush.msra.mxu0 %v61
    %158 = vmatpush.msra.mxu0 %v59
    %159 = vmatpush.msra.mxu0 %v57
    %160 = vmatpush.msra.mxu0 %v55
    %161 = vmatpush.msra.mxu0 %v53
    %162 = vmatpush.msra.mxu0 %v51
    %163 = vmatpush.msra.mxu0 %v49
    %164 = vmatpush.msra.mxu0 %v47
    %165 = vmatmul.f32.gmra.mxu0 %v30
    %v166 = vpop.f32.mrf.mxu0
    %v167 = vadd.f32 %v81, %v166
    %168 = vmatmul.f32.gmra.mxu0 %v31
    %v169 = vpop.f32.mrf.mxu0
    %v170 = vadd.f32 %v81, %v169
    %171 = vmatmul.f32.gmra.mxu0 %v32
    %v172 = vpop.f32.mrf.mxu0
    %v173 = vadd.f32 %v81, %v172
    %174 = vmatmul.f32.gmra.mxu0 %v33
    %v175 = vpop.f32.mrf.mxu0
    %v176 = vadd.f32 %v81, %v175
    %177 = vmatmul.f32.gmra.mxu0 %v34
    %v178 = vpop.f32.mrf.mxu0
    %v179 = vadd.f32 %v81, %v178
    %180 = vmatmul.f32.gmra.mxu0 %v35
    %v181 = vpop.f32.mrf.mxu0
    %v182 = vadd.f32 %v81, %v181
    %183 = vmatmul.f32.gmra.mxu0 %v36
    %v184 = vpop.f32.mrf.mxu0
    %v185 = vadd.f32 %v81, %v184
    %186 = vmatmul.f32.gmra.mxu0 %v37
    %v187 = vpop.f32.mrf.mxu0
    %v188 = vadd.f32 %v81, %v187
    %189 = vmatmul.f32.gmra.mxu0 %v38
    %v190 = vpop.f32.mrf.mxu0
    %v191 = vadd.f32 %v81, %v190
    %192 = vmatmul.f32.gmra.mxu0 %v39
    %v193 = vpop.f32.mrf.mxu0
    %v194 = vadd.f32 %v81, %v193
    %195 = vmatmul.f32.gmra.mxu0 %v40
    %v196 = vpop.f32.mrf.mxu0
    %v197 = vadd.f32 %v81, %v196
    %198 = vmatmul.f32.gmra.mxu0 %v41
    %v199 = vpop.f32.mrf.mxu0
    %v200 = vadd.f32 %v81, %v199
    %201 = vmatmul.f32.gmra.mxu0 %v42
    %v202 = vpop.f32.mrf.mxu0
    %v203 = vadd.f32 %v81, %v202
    %204 = vmatmul.f32.gmra.mxu0 %v43
    %v205 = vpop.f32.mrf.mxu0
    %v206 = vadd.f32 %v81, %v205
    %207 = vmatmul.f32.gmra.mxu0 %v44
    %v208 = vpop.f32.mrf.mxu0
    %v209 = vadd.f32 %v81, %v208
    %210 = vmatmul.f32.gmra.mxu0 %v45
    %v211 = vpop.f32.mrf.mxu0
    %v212 = vadd.f32 %v81, %v211
    %213 = vdwg.mxu0
    %214 = vst [vmem:[%s3] sm:$0xff] %v102
    %215 = vst [vmem:[%s3 + $0x8] sm:$0xff] %v167
    %216 = vst [vmem:[%s3 + $0x10] sm:$0xff] %v105
    %217 = vst [vmem:[%s3 + $0x18] sm:$0xff] %v170
    %218 = vst [vmem:[%s3 + $0x20] sm:$0xff] %v108
    %219 = vst [vmem:[%s3 + $0x28] sm:$0xff] %v173
    %220 = vst [vmem:[%s3 + $0x30] sm:$0xff] %v111
    %221 = vst [vmem:[%s3 + $0x38] sm:$0xff] %v176
    %222 = vst [vmem:[%s3 + $0x40] sm:$0xff] %v114
    %223 = vst [vmem:[%s3 + $0x48] sm:$0xff] %v179
    %224 = vst [vmem:[%s3 + $0x50] sm:$0xff] %v117
    %225 = vst [vmem:[%s3 + $0x58] sm:$0xff] %v182
    %226 = vst [vmem:[%s3 + $0x60] sm:$0xff] %v120
    %227 = vst [vmem:[%s3 + $0x68] sm:$0xff] %v185
    %228 = vst [vmem:[%s3 + $0x70] sm:$0xff] %v123
    %229 = vst [vmem:[%s3 + $0x78] sm:$0xff] %v188
    %230 = vst [vmem:[%s3 + $0x80] sm:$0xff] %v126
    %231 = vst [vmem:[%s3 + $0x88] sm:$0xff] %v191
    %232 = vst [vmem:[%s3 + $0x90] sm:$0xff] %v129
    %233 = vst [vmem:[%s3 + $0x98] sm:$0xff] %v194
    %234 = vst [vmem:[%s3 + $0xa0] sm:$0xff] %v132
    %235 = vst [vmem:[%s3 + $0xa8] sm:$0xff] %v197
    %236 = vst [vmem:[%s3 + $0xb0] sm:$0xff] %v135
    %237 = vst [vmem:[%s3 + $0xb8] sm:$0xff] %v200
    %238 = vst [vmem:[%s3 + $0xc0] sm:$0xff] %v138
    %239 = vst [vmem:[%s3 + $0xc8] sm:$0xff] %v203
    %240 = vst [vmem:[%s3 + $0xd0] sm:$0xff] %v141
    %241 = vst [vmem:[%s3 + $0xd8] sm:$0xff] %v206
    %242 = vst [vmem:[%s3 + $0xe0] sm:$0xff] %v144
    %243 = vst [vmem:[%s3 + $0xe8] sm:$0xff] %v209
    %244 = vst [vmem:[%s3 + $0xf0] sm:$0xff] %v147
    %245 = vst [vmem:[%s3 + $0xf8] sm:$0xff] %v212
    // Predicated region
    $region18: #{up_transition_forward.3} parent=1 // pred_check
      _
    $region19: #{up_transition_forward.3} parent=1 // pred_check_branch
      %247 = sbr.rel (0) target = $region21
    $region20: #{up_transition_forward.3} parent=1 // pred_region
      _
    $region21: #{up_transition_forward.3} parent=1 // pred_fallthru
      _
    // Predicated region
    $region22: #{up_transition_forward.3} parent=1 // pred_check
      _
    $region23: #{up_transition_forward.3} parent=1 // pred_check_branch
      %249 = sbr.rel (0) target = $region25
    $region24: #{up_transition_forward.3} parent=1 // pred_region
      _
    $region25: #{up_transition_forward.3} parent=1 // pred_fallthru
      _
    %250 = vsyncpa [#allocation3], 1

// kernel: up_transition_forward.4
$region0: #{up_transition_forward.4}
  #allocation0 [shape = 'u32[]', space=smem, size = 0x4, offset = 0x4, fixed_abs, tag = 'smem constant byte address 0x4 - core index']
  #allocation1 [shape = 'u32[72,128]{1,0:T(1,128)}', space=vmem, size = 0x9000, scoped, tag = 'internal scratch']
  %s0 = inlined_call_operand.vmem [shape: f32[2,328,128], index: 0, kind: input, shape index: {}]
  %s1 = inlined_call_operand.vmem [shape: f32[9,128,128], index: 1, kind: input, shape index: {}]
  %s2 = inlined_call_operand.vmem [shape: f32[1,128], index: 2, kind: input, shape index: {}]
  %s3 = inlined_call_operand.vmem [shape: f32[1,128], index: 3, kind: input, shape index: {}]
  %s4 = inlined_call_operand.vmem [shape: f32[1,128], index: 4, kind: input, shape index: {}]
  %s5 = inlined_call_operand.vmem [shape: f32[2,328,128], index: 5, kind: output, shape index: {}]
  %s6 = sld [smem:[#allocation0]]
  $region53: #{up_transition_forward.4} parent=0
    _
  %s8 = ssub.s32 1, %s6
  %s9 = scalar_select 0, %s8, %s6
  loop: start=0, step=1, limit=4
  $region2: #{up_transition_forward.4} parent=0 // loop_pre_header
    _
  $region3: #{up_transition_forward.4} parent=0 // loop_header
    %s11 = sphi 0, %s15
    %p12 = scmp.ge.s32.totalorder %s11, 4
    %s18 = sphi 0, %s30
    %s19 = sphi 0, %s26
    %s20 = sphi 0, %s18
    %s21 = sphi 0, %s19
    %s22 = sphi 0, %s20
    %s23 = sphi 0, %s21
    %s33 = sphi 0, %s35
    %s36 = sphi 0, %s33
    %s37 = sphi 0, %s36
    %s53 = sphi 0, %s37
    %s59 = sphi 0, %s61
    %s62 = sphi 0, %s59
    %s63 = sphi 0, %s62
    %s79 = sphi 0, %s63
    %s85 = sphi 0, %s87
    %s88 = sphi 0, %s85
    %s89 = sphi 0, %s88
    %s105 = sphi 0, %s89
    %s111 = sphi 0, %s113
    %s114 = sphi 0, %s111
    %s115 = sphi 0, %s114
    %s131 = sphi 0, %s115
    %s137 = sphi 0, %s139
    %s140 = sphi 0, %s137
    %s141 = sphi 0, %s140
    %s157 = sphi 0, %s141
    %s165 = sphi 0, %s167
    %s168 = sphi 0, %s165
    %s169 = sphi 0, %s168
    %s185 = sphi 0, %s169
  $region4: #{up_transition_forward.4} parent=0 // loop_header_branch
    %14 = sbr.rel (%p12) target = $region8
  $region5: #{up_transition_forward.4} parent=0 // loop_body
    %s16 = ssub.s32 %s11, 1
    %s17 = ssub.s32 %s11, 2
    %s24 = sadd.s32 1, %s19
    %p25 = scmp.ge.s32.totalorder %s24, 1
    %s26 = scalar_select %p25, 0, %s24
    %s27 = sadd.s32 1, %s18
    %s28 = scalar_select %p25, %s27, %s18
    %p29 = scmp.ge.s32.totalorder %s28, 2
    %s30 = scalar_select %p29, 0, %s28
    %s31 = ssub.s32 %s18, %s30
    %p32 = scmp.eq.s32.totalorder %s31, 0
    %s34 = sadd.s32 %s33, 1
    %s35 = scalar_select %p32, %s33, %s34
    %p38 = pneg %p32
    %p39 = scmp.eq.s32.totalorder %s11, 1
    %p40 = por %p38, %p39
    %p41 = scmp.ne.s32.totalorder %s33, %s36
    %p42 = scmp.eq.s32.totalorder %s11, 0
    %p43 = por %p41, %p42
    %p44 = scmp.ne.s32.totalorder %s33, %s36
    %p45 = scmp.eq.s32.totalorder %s16, 1
    %p46 = por %p44, %p45
    %p47 = scmp.ne.s32.totalorder %s36, %s37
    %p48 = scmp.eq.s32.totalorder %s16, 0
    %p49 = por %p47, %p48
    %p50 = scmp.ne.s32.totalorder %s36, %s37
    %p51 = scmp.eq.s32.totalorder %s17, 1
    %p52 = por %p50, %p51
    %p54 = scmp.ne.s32.totalorder %s37, %s53
    %p55 = scmp.eq.s32.totalorder %s17, 0
    %p56 = por %p54, %p55
    %s57 = ssub.s32 %s19, %s26
    %p58 = scmp.eq.s32.totalorder %s57, 0
    %s60 = sadd.s32 %s59, 1
    %s61 = scalar_select %p58, %s59, %s60
    %p64 = pneg %p58
    %p65 = scmp.eq.s32.totalorder %s11, 1
    %p66 = por %p64, %p65
    %p67 = scmp.ne.s32.totalorder %s59, %s62
    %p68 = scmp.eq.s32.totalorder %s11, 0
    %p69 = por %p67, %p68
    %p70 = scmp.ne.s32.totalorder %s59, %s62
    %p71 = scmp.eq.s32.totalorder %s16, 1
    %p72 = por %p70, %p71
    %p73 = scmp.ne.s32.totalorder %s62, %s63
    %p74 = scmp.eq.s32.totalorder %s16, 0
    %p75 = por %p73, %p74
    %p76 = scmp.ne.s32.totalorder %s62, %s63
    %p77 = scmp.eq.s32.totalorder %s17, 1
    %p78 = por %p76, %p77
    %p80 = scmp.ne.s32.totalorder %s63, %s79
    %p81 = scmp.eq.s32.totalorder %s17, 0
    %p82 = por %p80, %p81
    %s83 = ssub.s32 %s19, %s26
    %p84 = scmp.eq.s32.totalorder %s83, 0
    %s86 = sadd.s32 %s85, 1
    %s87 = scalar_select %p84, %s85, %s86
    %p90 = pneg %p84
    %p91 = scmp.eq.s32.totalorder %s11, 1
    %p92 = por %p90, %p91
    %p93 = scmp.ne.s32.totalorder %s85, %s88
    %p94 = scmp.eq.s32.totalorder %s11, 0
    %p95 = por %p93, %p94
    %p96 = scmp.ne.s32.totalorder %s85, %s88
    %p97 = scmp.eq.s32.totalorder %s16, 1
    %p98 = por %p96, %p97
    %p99 = scmp.ne.s32.totalorder %s88, %s89
    %p100 = scmp.eq.s32.totalorder %s16, 0
    %p101 = por %p99, %p100
    %p102 = scmp.ne.s32.totalorder %s88, %s89
    %p103 = scmp.eq.s32.totalorder %s17, 1
    %p104 = por %p102, %p103
    %p106 = scmp.ne.s32.totalorder %s89, %s105
    %p107 = scmp.eq.s32.totalorder %s17, 0
    %p108 = por %p106, %p107
    %s109 = ssub.s32 %s19, %s26
    %p110 = scmp.eq.s32.totalorder %s109, 0
    %s112 = sadd.s32 %s111, 1
    %s113 = scalar_select %p110, %s111, %s112
    %p116 = pneg %p110
    %p117 = scmp.eq.s32.totalorder %s11, 1
    %p118 = por %p116, %p117
    %p119 = scmp.ne.s32.totalorder %s111, %s114
    %p120 = scmp.eq.s32.totalorder %s11, 0
    %p121 = por %p119, %p120
    %p122 = scmp.ne.s32.totalorder %s111, %s114
    %p123 = scmp.eq.s32.totalorder %s16, 1
    %p124 = por %p122, %p123
    %p125 = scmp.ne.s32.totalorder %s114, %s115
    %p126 = scmp.eq.s32.totalorder %s16, 0
    %p127 = por %p125, %p126
    %p128 = scmp.ne.s32.totalorder %s114, %s115
    %p129 = scmp.eq.s32.totalorder %s17, 1
    %p130 = por %p128, %p129
    %p132 = scmp.ne.s32.totalorder %s115, %s131
    %p133 = scmp.eq.s32.totalorder %s17, 0
    %p134 = por %p132, %p133
    %s135 = ssub.s32 %s19, %s26
    %p136 = scmp.eq.s32.totalorder %s135, 0
    %s138 = sadd.s32 %s137, 1
    %s139 = scalar_select %p136, %s137, %s138
    %p142 = pneg %p136
    %p143 = scmp.eq.s32.totalorder %s11, 1
    %p144 = por %p142, %p143
    %p145 = scmp.ne.s32.totalorder %s137, %s140
    %p146 = scmp.eq.s32.totalorder %s11, 0
    %p147 = por %p145, %p146
    %p148 = scmp.ne.s32.totalorder %s137, %s140
    %p149 = scmp.eq.s32.totalorder %s16, 1
    %p150 = por %p148, %p149
    %p151 = scmp.ne.s32.totalorder %s140, %s141
    %p152 = scmp.eq.s32.totalorder %s16, 0
    %p153 = por %p151, %p152
    %p154 = scmp.ne.s32.totalorder %s140, %s141
    %p155 = scmp.eq.s32.totalorder %s17, 1
    %p156 = por %p154, %p155
    %p158 = scmp.ne.s32.totalorder %s141, %s157
    %p159 = scmp.eq.s32.totalorder %s17, 0
    %p160 = por %p158, %p159
    %s161 = ssub.s32 %s18, %s30
    %s162 = ssub.s32 %s19, %s26
    %s163 = sor.u32 %s161, %s162
    %p164 = scmp.eq.s32.totalorder %s163, 0
    %s166 = sadd.s32 %s165, 1
    %s167 = scalar_select %p164, %s165, %s166
    %p170 = pneg %p164
    %p171 = scmp.eq.s32.totalorder %s11, 1
    %p172 = por %p170, %p171
    %p173 = scmp.ne.s32.totalorder %s165, %s168
    %p174 = scmp.eq.s32.totalorder %s11, 0
    %p175 = por %p173, %p174
    %p176 = scmp.ne.s32.totalorder %s165, %s168
    %p177 = scmp.eq.s32.totalorder %s16, 1
    %p178 = por %p176, %p177
    %p179 = scmp.ne.s32.totalorder %s168, %s169
    %p180 = scmp.eq.s32.totalorder %s16, 0
    %p181 = por %p179, %p180
    %p182 = scmp.ne.s32.totalorder %s168, %s169
    %p183 = scmp.eq.s32.totalorder %s17, 1
    %p184 = por %p182, %p183
    %p186 = scmp.ne.s32.totalorder %s169, %s185
    %p187 = scmp.eq.s32.totalorder %s17, 0
    %p188 = por %p186, %p187
    %p189 = scmp.le.s32.totalorder 1, %s11
    %p190 = scmp.lt.s32.totalorder %s11, 3
    %p191 = pnand %p189, %p190
    %p192 = pneg %p191
    // Predicated region
    $region9: #{up_transition_forward.4} parent=5 // pred_check
      _
    $region10: #{up_transition_forward.4} parent=5 // pred_check_branch
      %194 = sbr.rel (%p191) target = $region12
    $region11: #{up_transition_forward.4} parent=5 // pred_region
      %s195 = ssub.s32 %s11, 1
      // Predicated region
      $region13: #{up_transition_forward.4} parent=11 // pred_check
        %p196 = pneg %p75
      $region14: #{up_transition_forward.4} parent=11 // pred_check_branch
        %198 = sbr.rel (%p196) target = $region16
      $region15: #{up_transition_forward.4} parent=11 // pred_region
        %p199 = scmp.lt.s32.totalorder %s21, 0
        %s200 = scalar_select %p199, %s21, 0
        %s201 = smul.addr %s200, 8
        %s202 = scalar_lea.vmem %s1, %s201
      $region16: #{up_transition_forward.4} parent=11 // pred_fallthru
        _
      // Predicated region
      $region17: #{up_transition_forward.4} parent=11 // pred_check
        %p203 = pneg %p101
      $region18: #{up_transition_forward.4} parent=11 // pred_check_branch
        %205 = sbr.rel (%p203) target = $region20
      $region19: #{up_transition_forward.4} parent=11 // pred_region
        %p206 = scmp.lt.s32.totalorder %s21, 0
        %s207 = scalar_select %p206, %s21, 0
        %s208 = scalar_lea.vmem %s2, %s207
      $region20: #{up_transition_forward.4} parent=11 // pred_fallthru
        _
      // Predicated region
      $region21: #{up_transition_forward.4} parent=11 // pred_check
        %p209 = pneg %p127
      $region22: #{up_transition_forward.4} parent=11 // pred_check_branch
        %211 = sbr.rel (%p209) target = $region24
      $region23: #{up_transition_forward.4} parent=11 // pred_region
        %p212 = scmp.lt.s32.totalorder %s21, 0
        %s213 = scalar_select %p212, %s21, 0
        %s214 = scalar_lea.vmem %s3, %s213
      $region24: #{up_transition_forward.4} parent=11 // pred_fallthru
        _
      // Predicated region
      $region25: #{up_transition_forward.4} parent=11 // pred_check
        %p215 = pneg %p153
      $region26: #{up_transition_forward.4} parent=11 // pred_check_branch
        %217 = sbr.rel (%p215) target = $region28
      $region27: #{up_transition_forward.4} parent=11 // pred_region
        %p218 = scmp.lt.s32.totalorder %s21, 0
        %s219 = scalar_select %p218, %s21, 0
        %s220 = scalar_lea.vmem %s4, %s219
      $region28: #{up_transition_forward.4} parent=11 // pred_fallthru
        _
    $region12: #{up_transition_forward.4} parent=5 // pred_fallthru
      _
    %p221 = scmp.lt.s32.totalorder %s11, 2
    // Predicated region
    $region29: #{up_transition_forward.4} parent=5 // pred_check
      %p222 = pneg %p221
    $region30: #{up_transition_forward.4} parent=5 // pred_check_branch
      %224 = sbr.rel (%p222) target = $region32
    $region31: #{up_transition_forward.4} parent=5 // pred_region
      // Predicated region
      $region33: #{up_transition_forward.4} parent=31 // pred_check
        %p225 = pneg %p43
      $region34: #{up_transition_forward.4} parent=31 // pred_check_branch
        %227 = sbr.rel (%p225) target = $region36
      $region35: #{up_transition_forward.4} parent=31 // pred_region
        %p228 = scmp.lt.s32.totalorder %s18, 1
        %s229 = scalar_select %p228, %s18, 1
        %s230 = smul.addr %s229, 41
        %s231 = smul.addr %s230, 8
        %s232 = scalar_lea.vmem %s0, %s231
      $region36: #{up_transition_forward.4} parent=31 // pred_fallthru
        _
    $region32: #{up_transition_forward.4} parent=5 // pred_fallthru
      _
    %p233 = scmp.le.s32.totalorder 1, %s11
    %p234 = scmp.lt.s32.totalorder %s11, 3
    %p235 = pnand %p233, %p234
    %p236 = pneg %p235
    // Predicated region
    $region37: #{up_transition_forward.4} parent=5 // pred_check
      _
    $region38: #{up_transition_forward.4} parent=5 // pred_check_branch
      %238 = sbr.rel (%p235) target = $region40
    $region39: #{up_transition_forward.4} parent=5 // pred_region
      %s239 = ssub.s32 %s11, 1
      %p240 = scmp.lt.s32.totalorder %s20, 1
      %s241 = scalar_select %p240, %s20, 1
      %s242 = smul.addr %s241, 41
      %s243 = smul.addr %s242, 8
      %s244 = scalar_lea.vmem %s0, %s243
      %p245 = pneg %p49
      %p246 = pneg %p46
      %p247 = scmp.lt.s32.totalorder %s21, 0
      %s248 = scalar_select %p247, %s21, 0
      %s249 = smul.addr %s248, 8
      %s250 = scalar_lea.vmem %s1, %s249
      %p251 = pneg %p75
      %p252 = pneg %p72
      %p253 = scmp.lt.s32.totalorder %s21, 0
      %s254 = scalar_select %p253, %s21, 0
      %s255 = scalar_lea.vmem %s2, %s254
      %p256 = pneg %p101
      %p257 = pneg %p98
      %p258 = scmp.lt.s32.totalorder %s21, 0
      %s259 = scalar_select %p258, %s21, 0
      %s260 = scalar_lea.vmem %s3, %s259
      %p261 = pneg %p127
      %p262 = pneg %p124
      %p263 = scmp.lt.s32.totalorder %s21, 0
      %s264 = scalar_select %p263, %s21, 0
      %s265 = scalar_lea.vmem %s4, %s264
      %p266 = pneg %p153
      %p267 = pneg %p150
      %p268 = pneg %p181
      %p269 = pneg %p178
      %p270 = scmp.lt.s32.totalorder %s20, 1
      %s271 = scalar_select %p270, %s20, 1
      %p272 = scmp.lt.s32.totalorder %s21, 0
      %s273 = scalar_select %p272, %s21, 0
      %s274 = smul.addr %s271, 41
      %s275 = sadd.s32 %s273, %s274
      %s276 = smul.addr %s275, 8
      %s277 = scalar_lea.vmem %s5, %s276
      %p278 = scmp.lt.s32.totalorder %s20, 1
      %s279 = scalar_select %p278, %s20, 1
      %s280 = smul.addr %s279, 41
      %s281 = smul.addr %s280, 8
      %s282 = scalar_lea.vmem %s0, %s281
      %p283 = scmp.lt.s32.totalorder %s21, 0
      %s284 = scalar_select %p283, %s21, 0
      %s285 = smul.addr %s284, 8
      %s286 = scalar_lea.vmem %s1, %s285
      %p287 = scmp.lt.s32.totalorder %s21, 0
      %s288 = scalar_select %p287, %s21, 0
      %s289 = scalar_lea.vmem %s2, %s288
      %p290 = scmp.lt.s32.totalorder %s21, 0
      %s291 = scalar_select %p290, %s21, 0
      %s292 = scalar_lea.vmem %s3, %s291
      %p293 = scmp.lt.s32.totalorder %s21, 0
      %s294 = scalar_select %p293, %s21, 0
      %s295 = scalar_lea.vmem %s4, %s294
      %p296 = scmp.lt.s32.totalorder %s20, 1
      %s297 = scalar_select %p296, %s20, 1
      %p298 = scmp.lt.s32.totalorder %s21, 0
      %s299 = scalar_select %p298, %s21, 0
      %s300 = smul.addr %s297, 41
      %s301 = sadd.s32 %s299, %s300
      %s302 = smul.addr %s301, 8
      %s303 = scalar_lea.vmem %s5, %s302
      %v304 = vld [vmem:[%s282] sm:$0xff]
      %v305 = vld [vmem:[%s282 + $0x8] sm:$0xff]
      %v306 = vld [vmem:[%s282 + $0x10] sm:$0xff]
      %v307 = vld [vmem:[%s282 + $0x18] sm:$0xff]
      %v308 = vld [vmem:[%s282 + $0x20] sm:$0xff]
      %v309 = vld [vmem:[%s282 + $0x28] sm:$0xff]
      %v310 = vld [vmem:[%s282 + $0x30] sm:$0xff]
      %v311 = vld [vmem:[%s282 + $0x38] sm:$0xff]
      %v312 = vld [vmem:[%s282 + $0x40] sm:$0xff]
      %v313 = vld [vmem:[%s282 + $0x48] sm:$0xff]
      %v314 = vld [vmem:[%s282 + $0x50] sm:$0xff]
      %v315 = vld [vmem:[%s282 + $0x58] sm:$0xff]
      %v316 = vld [vmem:[%s282 + $0x60] sm:$0xff]
      %v317 = vld [vmem:[%s282 + $0x68] sm:$0xff]
      %v318 = vld [vmem:[%s282 + $0x70] sm:$0xff]
      %v319 = vld [vmem:[%s282 + $0x78] sm:$0xff]
      %v320 = vld [vmem:[%s282 + $0x80] sm:$0xff]
      %v321 = vld [vmem:[%s282 + $0x88] sm:$0xff]
      %v322 = vld [vmem:[%s282 + $0x90] sm:$0xff]
      %v323 = vld [vmem:[%s282 + $0x98] sm:$0xff]
      %v324 = vld [vmem:[%s282 + $0xa0] sm:$0xff]
      %v325 = vld [vmem:[%s282 + $0xa8] sm:$0xff]
      %v326 = vld [vmem:[%s282 + $0xb0] sm:$0xff]
      %v327 = vld [vmem:[%s282 + $0xb8] sm:$0xff]
      %v328 = vld [vmem:[%s282 + $0xc0] sm:$0xff]
      %v329 = vld [vmem:[%s282 + $0xc8] sm:$0xff]
      %v330 = vld [vmem:[%s282 + $0xd0] sm:$0xff]
      %v331 = vld [vmem:[%s282 + $0xd8] sm:$0xff]
      %v332 = vld [vmem:[%s282 + $0xe0] sm:$0xff]
      %v333 = vld [vmem:[%s282 + $0xe8] sm:$0xff]
      %v334 = vld [vmem:[%s282 + $0xf0] sm:$0xff]
      %v335 = vld [vmem:[%s282 + $0xf8] sm:$0xff]
      %v336 = vld [vmem:[%s282 + $0x100] sm:$0xff]
      %v337 = vld [vmem:[%s282 + $0x108] sm:$0xff]
      %v338 = vld [vmem:[%s282 + $0x110] sm:$0xff]
      %v339 = vld [vmem:[%s282 + $0x118] sm:$0xff]
      %v340 = vld [vmem:[%s286] sm:$0xff]
      %v341 = vld [vmem:[%s286 + $0x8] sm:$0xff]
      %v342 = vld [vmem:[%s286 + $0x10] sm:$0xff]
      %v343 = vld [vmem:[%s286 + $0x18] sm:$0xff]
      %v344 = vld [vmem:[%s286 + $0x20] sm:$0xff]
      %v345 = vld [vmem:[%s286 + $0x28] sm:$0xff]
      %v346 = vld [vmem:[%s286 + $0x30] sm:$0xff]
      %v347 = vld [vmem:[%s286 + $0x38] sm:$0xff]
      %v348 = vld [vmem:[%s286 + $0x40] sm:$0xff]
      %v349 = vld [vmem:[%s286 + $0x48] sm:$0xff]
      %v350 = vld [vmem:[%s286 + $0x50] sm:$0xff]
      %v351 = vld [vmem:[%s286 + $0x58] sm:$0xff]
      %v352 = vld [vmem:[%s286 + $0x60] sm:$0xff]
      %v353 = vld [vmem:[%s286 + $0x68] sm:$0xff]
      %v354 = vld [vmem:[%s286 + $0x70] sm:$0xff]
      %v355 = vld [vmem:[%s286 + $0x78] sm:$0xff]
      %v356 = vld [vmem:[%s282 + $0x1] sm:$0xff]
      %v357 = vld [vmem:[%s282 + $0x9] sm:$0xff]
      %v358 = vld [vmem:[%s282 + $0x11] sm:$0xff]
      %v359 = vld [vmem:[%s282 + $0x19] sm:$0xff]
      %v360 = vld [vmem:[%s282 + $0x21] sm:$0xff]
      %v361 = vld [vmem:[%s282 + $0x29] sm:$0xff]
      %v362 = vld [vmem:[%s282 + $0x31] sm:$0xff]
      %v363 = vld [vmem:[%s282 + $0x39] sm:$0xff]
      %v364 = vld [vmem:[%s282 + $0x41] sm:$0xff]
      %v365 = vld [vmem:[%s282 + $0x49] sm:$0xff]
      %v366 = vld [vmem:[%s282 + $0x51] sm:$0xff]
      %v367 = vld [vmem:[%s282 + $0x59] sm:$0xff]
      %v368 = vld [vmem:[%s282 + $0x61] sm:$0xff]
      %v369 = vld [vmem:[%s282 + $0x69] sm:$0xff]
      %v370 = vld [vmem:[%s282 + $0x71] sm:$0xff]
      %v371 = vld [vmem:[%s282 + $0x79] sm:$0xff]
      %v372 = vld [vmem:[%s282 + $0x81] sm:$0xff]
      %v373 = vld [vmem:[%s282 + $0x89] sm:$0xff]
      %v374 = vld [vmem:[%s282 + $0x91] sm:$0xff]
      %v375 = vld [vmem:[%s282 + $0x99] sm:$0xff]
      %v376 = vld [vmem:[%s282 + $0xa1] sm:$0xff]
      %v377 = vld [vmem:[%s282 + $0xa9] sm:$0xff]
      %v378 = vld [vmem:[%s282 + $0xb1] sm:$0xff]
      %v379 = vld [vmem:[%s282 + $0xb9] sm:$0xff]
      %v380 = vld [vmem:[%s282 + $0xc1] sm:$0xff]
      %v381 = vld [vmem:[%s282 + $0xc9] sm:$0xff]
      %v382 = vld [vmem:[%s282 + $0xd1] sm:$0xff]
      %v383 = vld [vmem:[%s282 + $0xd9] sm:$0xff]
      %v384 = vld [vmem:[%s282 + $0xe1] sm:$0xff]
      %v385 = vld [vmem:[%s282 + $0xe9] sm:$0xff]
      %v386 = vld [vmem:[%s282 + $0xf1] sm:$0xff]
      %v387 = vld [vmem:[%s282 + $0xf9] sm:$0xff]
      %v388 = vld [vmem:[%s282 + $0x101] sm:$0xff]
      %v389 = vld [vmem:[%s282 + $0x109] sm:$0xff]
      %v390 = vld [vmem:[%s282 + $0x111] sm:$0xff]
      %v391 = vld [vmem:[%s282 + $0x119] sm:$0xff]
      %s392 = scalar_lea.vmem %s286, 128
      %v393 = vld [vmem:[%s392] sm:$0xff]
      %v394 = vld [vmem:[%s392 + $0x8] sm:$0xff]
      %v395 = vld [vmem:[%s392 + $0x10] sm:$0xff]
      %v396 = vld [vmem:[%s392 + $0x18] sm:$0xff]
      %v397 = vld [vmem:[%s392 + $0x20] sm:$0xff]
      %v398 = vld [vmem:[%s392 + $0x28] sm:$0xff]
      %v399 = vld [vmem:[%s392 + $0x30] sm:$0xff]
      %v400 = vld [vmem:[%s392 + $0x38] sm:$0xff]
      %v401 = vld [vmem:[%s392 + $0x40] sm:$0xff]
      %v402 = vld [vmem:[%s392 + $0x48] sm:$0xff]
      %v403 = vld [vmem:[%s392 + $0x50] sm:$0xff]
      %v404 = vld [vmem:[%s392 + $0x58] sm:$0xff]
      %v405 = vld [vmem:[%s392 + $0x60] sm:$0xff]
      %v406 = vld [vmem:[%s392 + $0x68] sm:$0xff]
      %v407 = vld [vmem:[%s392 + $0x70] sm:$0xff]
      %v408 = vld [vmem:[%s392 + $0x78] sm:$0xff]
      %409 = vmatpush.msra.mxu0 %v408
      %410 = vmatpush.msra.mxu0 %v407
      %411 = vmatpush.msra.mxu0 %v406
      %412 = vmatpush.msra.mxu0 %v405
      %413 = vmatpush.msra.mxu0 %v404
      %414 = vmatpush.msra.mxu0 %v403
      %415 = vmatpush.msra.mxu0 %v402
      %416 = vmatpush.msra.mxu0 %v401
      %417 = vmatpush.msra.mxu0 %v400
      %418 = vmatpush.msra.mxu0 %v399
      %419 = vmatpush.msra.mxu0 %v398
      %420 = vmatpush.msra.mxu0 %v397
      %421 = vmatpush.msra.mxu0 %v396
      %422 = vmatpush.msra.mxu0 %v395
      %423 = vmatpush.msra.mxu0 %v394
      %424 = vmatpush.msra.mxu0 %v393
      %425 = vmatmul.f32.gmra.mxu0 %v356
      %v426 = vpop.f32.mrf.mxu0
      %v427 = vadd.f32 0.0, %v426
      %428 = vmatmul.f32.gmra.mxu0 %v357
      %v429 = vpop.f32.mrf.mxu0
      %v430 = vadd.f32 0.0, %v429
      %431 = vmatmul.f32.gmra.mxu0 %v358
      %v432 = vpop.f32.mrf.mxu0
      %v433 = vadd.f32 0.0, %v432
      %434 = vmatmul.f32.gmra.mxu0 %v359
      %v435 = vpop.f32.mrf.mxu0
      %v436 = vadd.f32 0.0, %v435
      %437 = vmatmul.f32.gmra.mxu0 %v360
      %v438 = vpop.f32.mrf.mxu0
      %v439 = vadd.f32 0.0, %v438
      %440 = vmatmul.f32.gmra.mxu0 %v361
      %v441 = vpop.f32.mrf.mxu0
      %v442 = vadd.f32 0.0, %v441
      %443 = vmatmul.f32.gmra.mxu0 %v362
      %v444 = vpop.f32.mrf.mxu0
      %v445 = vadd.f32 0.0, %v444
      %446 = vmatmul.f32.gmra.mxu0 %v363
      %v447 = vpop.f32.mrf.mxu0
      %v448 = vadd.f32 0.0, %v447
      %449 = vmatmul.f32.gmra.mxu0 %v364
      %v450 = vpop.f32.mrf.mxu0
      %v451 = vadd.f32 0.0, %v450
      %452 = vmatmul.f32.gmra.mxu0 %v365
      %v453 = vpop.f32.mrf.mxu0
      %v454 = vadd.f32 0.0, %v453
      %455 = vmatmul.f32.gmra.mxu0 %v366
      %v456 = vpop.f32.mrf.mxu0
      %v457 = vadd.f32 0.0, %v456
      %458 = vmatmul.f32.gmra.mxu0 %v367
      %v459 = vpop.f32.mrf.mxu0
      %v460 = vadd.f32 0.0, %v459
      %461 = vmatmul.f32.gmra.mxu0 %v368
      %v462 = vpop.f32.mrf.mxu0
      %v463 = vadd.f32 0.0, %v462
      %464 = vmatmul.f32.gmra.mxu0 %v369
      %v465 = vpop.f32.mrf.mxu0
      %v466 = vadd.f32 0.0, %v465
      %467 = vmatmul.f32.gmra.mxu0 %v370
      %v468 = vpop.f32.mrf.mxu0
      %v469 = vadd.f32 0.0, %v468
      %470 = vmatmul.f32.gmra.mxu0 %v371
      %v471 = vpop.f32.mrf.mxu0
      %v472 = vadd.f32 0.0, %v471
      %473 = vmatmul.f32.gmra.mxu0 %v372
      %v474 = vpop.f32.mrf.mxu0
      %v475 = vadd.f32 0.0, %v474
      %476 = vmatmul.f32.gmra.mxu0 %v373
      %v477 = vpop.f32.mrf.mxu0
      %v478 = vadd.f32 0.0, %v477
      %479 = vmatmul.f32.gmra.mxu0 %v374
      %v480 = vpop.f32.mrf.mxu0
      %v481 = vadd.f32 0.0, %v480
      %482 = vmatmul.f32.gmra.mxu0 %v375
      %v483 = vpop.f32.mrf.mxu0
      %v484 = vadd.f32 0.0, %v483
      %485 = vmatmul.f32.gmra.mxu0 %v376
      %v486 = vpop.f32.mrf.mxu0
      %v487 = vadd.f32 0.0, %v486
      %488 = vmatmul.f32.gmra.mxu0 %v377
      %v489 = vpop.f32.mrf.mxu0
      %v490 = vadd.f32 0.0, %v489
      %491 = vmatmul.f32.gmra.mxu0 %v378
      %v492 = vpop.f32.mrf.mxu0
      %v493 = vadd.f32 0.0, %v492
      %494 = vmatmul.f32.gmra.mxu0 %v379
      %v495 = vpop.f32.mrf.mxu0
      %v496 = vadd.f32 0.0, %v495
      %497 = vmatmul.f32.gmra.mxu0 %v380
      %v498 = vpop.f32.mrf.mxu0
      %v499 = vadd.f32 0.0, %v498
      %500 = vmatmul.f32.gmra.mxu0 %v381
      %v501 = vpop.f32.mrf.mxu0
      %v502 = vadd.f32 0.0, %v501
      %503 = vmatmul.f32.gmra.mxu0 %v382
      %v504 = vpop.f32.mrf.mxu0
      %v505 = vadd.f32 0.0, %v504
      %506 = vmatmul.f32.gmra.mxu0 %v383
      %v507 = vpop.f32.mrf.mxu0
      %v508 = vadd.f32 0.0, %v507
      %509 = vmatmul.f32.gmra.mxu0 %v384
      %v510 = vpop.f32.mrf.mxu0
      %v511 = vadd.f32 0.0, %v510
      %512 = vmatmul.f32.gmra.mxu0 %v385
      %v513 = vpop.f32.mrf.mxu0
      %v514 = vadd.f32 0.0, %v513
      %515 = vmatmul.f32.gmra.mxu0 %v386
      %v516 = vpop.f32.mrf.mxu0
      %v517 = vadd.f32 0.0, %v516
      %518 = vmatmul.f32.gmra.mxu0 %v387
      %v519 = vpop.f32.mrf.mxu0
      %v520 = vadd.f32 0.0, %v519
      %521 = vmatmul.f32.gmra.mxu0 %v388
      %v522 = vpop.f32.mrf.mxu0
      %v523 = vadd.f32 0.0, %v522
      %524 = vmatmul.f32.gmra.mxu0 %v389
      %v525 = vpop.f32.mrf.mxu0
      %v526 = vadd.f32 0.0, %v525
      %527 = vmatmul.f32.gmra.mxu0 %v390
      %v528 = vpop.f32.mrf.mxu0
      %v529 = vadd.f32 0.0, %v528
      %530 = vmatmul.f32.gmra.mxu0 %v391
      %v531 = vpop.f32.mrf.mxu0
      %v532 = vadd.f32 0.0, %v531
      %533 = vdwg.mxu0
      %534 = vmatpush.msra.mxu0 %v355
      %535 = vmatpush.msra.mxu0 %v354
      %536 = vmatpush.msra.mxu0 %v353
      %537 = vmatpush.msra.mxu0 %v352
      %538 = vmatpush.msra.mxu0 %v351
      %539 = vmatpush.msra.mxu0 %v350
      %540 = vmatpush.msra.mxu0 %v349
      %541 = vmatpush.msra.mxu0 %v348
      %542 = vmatpush.msra.mxu0 %v347
      %543 = vmatpush.msra.mxu0 %v346
      %544 = vmatpush.msra.mxu0 %v345
      %545 = vmatpush.msra.mxu0 %v344
      %546 = vmatpush.msra.mxu0 %v343
      %547 = vmatpush.msra.mxu0 %v342
      %548 = vmatpush.msra.mxu0 %v341
      %549 = vmatpush.msra.mxu0 %v340
      %550 = vmatmul.f32.gmra.mxu0 %v304
      %v551 = vpop.f32.mrf.mxu0
      %v552 = vadd.f32 %v427, %v551
      %553 = vmatmul.f32.gmra.mxu0 %v305
      %v554 = vpop.f32.mrf.mxu0
      %v555 = vadd.f32 %v430, %v554
      %556 = vmatmul.f32.gmra.mxu0 %v306
      %v557 = vpop.f32.mrf.mxu0
      %v558 = vadd.f32 %v433, %v557
      %559 = vmatmul.f32.gmra.mxu0 %v307
      %v560 = vpop.f32.mrf.mxu0
      %v561 = vadd.f32 %v436, %v560
      %562 = vmatmul.f32.gmra.mxu0 %v308
      %v563 = vpop.f32.mrf.mxu0
      %v564 = vadd.f32 %v439, %v563
      %565 = vmatmul.f32.gmra.mxu0 %v309
      %v566 = vpop.f32.mrf.mxu0
      %v567 = vadd.f32 %v442, %v566
      %568 = vmatmul.f32.gmra.mxu0 %v310
      %v569 = vpop.f32.mrf.mxu0
      %v570 = vadd.f32 %v445, %v569
      %571 = vmatmul.f32.gmra.mxu0 %v311
      %v572 = vpop.f32.mrf.mxu0
      %v573 = vadd.f32 %v448, %v572
      %574 = vmatmul.f32.gmra.mxu0 %v312
      %v575 = vpop.f32.mrf.mxu0
      %v576 = vadd.f32 %v451, %v575
      %577 = vmatmul.f32.gmra.mxu0 %v313
      %v578 = vpop.f32.mrf.mxu0
      %v579 = vadd.f32 %v454, %v578
      %580 = vmatmul.f32.gmra.mxu0 %v314
      %v581 = vpop.f32.mrf.mxu0
      %v582 = vadd.f32 %v457, %v581
      %583 = vmatmul.f32.gmra.mxu0 %v315
      %v584 = vpop.f32.mrf.mxu0
      %v585 = vadd.f32 %v460, %v584
      %586 = vmatmul.f32.gmra.mxu0 %v316
      %v587 = vpop.f32.mrf.mxu0
      %v588 = vadd.f32 %v463, %v587
      %589 = vmatmul.f32.gmra.mxu0 %v317
      %v590 = vpop.f32.mrf.mxu0
      %v591 = vadd.f32 %v466, %v590
      %592 = vmatmul.f32.gmra.mxu0 %v318
      %v593 = vpop.f32.mrf.mxu0
      %v594 = vadd.f32 %v469, %v593
      %595 = vmatmul.f32.gmra.mxu0 %v319
      %v596 = vpop.f32.mrf.mxu0
      %v597 = vadd.f32 %v472, %v596
      %598 = vmatmul.f32.gmra.mxu0 %v320
      %v599 = vpop.f32.mrf.mxu0
      %v600 = vadd.f32 %v475, %v599
      %601 = vmatmul.f32.gmra.mxu0 %v321
      %v602 = vpop.f32.mrf.mxu0
      %v603 = vadd.f32 %v478, %v602
      %604 = vmatmul.f32.gmra.mxu0 %v322
      %v605 = vpop.f32.mrf.mxu0
      %v606 = vadd.f32 %v481, %v605
      %607 = vmatmul.f32.gmra.mxu0 %v323
      %v608 = vpop.f32.mrf.mxu0
      %v609 = vadd.f32 %v484, %v608
      %610 = vmatmul.f32.gmra.mxu0 %v324
      %v611 = vpop.f32.mrf.mxu0
      %v612 = vadd.f32 %v487, %v611
      %613 = vmatmul.f32.gmra.mxu0 %v325
      %v614 = vpop.f32.mrf.mxu0
      %v615 = vadd.f32 %v490, %v614
      %616 = vmatmul.f32.gmra.mxu0 %v326
      %v617 = vpop.f32.mrf.mxu0
      %v618 = vadd.f32 %v493, %v617
      %619 = vmatmul.f32.gmra.mxu0 %v327
      %v620 = vpop.f32.mrf.mxu0
      %v621 = vadd.f32 %v496, %v620
      %622 = vmatmul.f32.gmra.mxu0 %v328
      %v623 = vpop.f32.mrf.mxu0
      %v624 = vadd.f32 %v499, %v623
      %625 = vmatmul.f32.gmra.mxu0 %v329
      %v626 = vpop.f32.mrf.mxu0
      %v627 = vadd.f32 %v502, %v626
      %628 = vmatmul.f32.gmra.mxu0 %v330
      %v629 = vpop.f32.mrf.mxu0
      %v630 = vadd.f32 %v505, %v629
      %631 = vmatmul.f32.gmra.mxu0 %v331
      %v632 = vpop.f32.mrf.mxu0
      %v633 = vadd.f32 %v508, %v632
      %634 = vmatmul.f32.gmra.mxu0 %v332
      %v635 = vpop.f32.mrf.mxu0
      %v636 = vadd.f32 %v511, %v635
      %637 = vmatmul.f32.gmra.mxu0 %v333
      %v638 = vpop.f32.mrf.mxu0
      %v639 = vadd.f32 %v514, %v638
      %640 = vmatmul.f32.gmra.mxu0 %v334
      %v641 = vpop.f32.mrf.mxu0
      %v642 = vadd.f32 %v517, %v641
      %643 = vmatmul.f32.gmra.mxu0 %v335
      %v644 = vpop.f32.mrf.mxu0
      %v645 = vadd.f32 %v520, %v644
      %646 = vmatmul.f32.gmra.mxu0 %v336
      %v647 = vpop.f32.mrf.mxu0
      %v648 = vadd.f32 %v523, %v647
      %649 = vmatmul.f32.gmra.mxu0 %v337
      %v650 = vpop.f32.mrf.mxu0
      %v651 = vadd.f32 %v526, %v650
      %652 = vmatmul.f32.gmra.mxu0 %v338
      %v653 = vpop.f32.mrf.mxu0
      %v654 = vadd.f32 %v529, %v653
      %655 = vmatmul.f32.gmra.mxu0 %v339
      %v656 = vpop.f32.mrf.mxu0
      %v657 = vadd.f32 %v532, %v656
      %658 = vdwg.mxu0
      %v659 = vld [vmem:[%s282 + $0x2] sm:$0xff]
      %v660 = vld [vmem:[%s282 + $0xa] sm:$0xff]
      %v661 = vld [vmem:[%s282 + $0x12] sm:$0xff]
      %v662 = vld [vmem:[%s282 + $0x1a] sm:$0xff]
      %v663 = vld [vmem:[%s282 + $0x22] sm:$0xff]
      %v664 = vld [vmem:[%s282 + $0x2a] sm:$0xff]
      %v665 = vld [vmem:[%s282 + $0x32] sm:$0xff]
      %v666 = vld [vmem:[%s282 + $0x3a] sm:$0xff]
      %v667 = vld [vmem:[%s282 + $0x42] sm:$0xff]
      %v668 = vld [vmem:[%s282 + $0x4a] sm:$0xff]
      %v669 = vld [vmem:[%s282 + $0x52] sm:$0xff]
      %v670 = vld [vmem:[%s282 + $0x5a] sm:$0xff]
      %v671 = vld [vmem:[%s282 + $0x62] sm:$0xff]
      %v672 = vld [vmem:[%s282 + $0x6a] sm:$0xff]
      %v673 = vld [vmem:[%s282 + $0x72] sm:$0xff]
      %v674 = vld [vmem:[%s282 + $0x7a] sm:$0xff]
      %v675 = vld [vmem:[%s282 + $0x82] sm:$0xff]
      %v676 = vld [vmem:[%s282 + $0x8a] sm:$0xff]
      %v677 = vld [vmem:[%s282 + $0x92] sm:$0xff]
      %v678 = vld [vmem:[%s282 + $0x9a] sm:$0xff]
      %v679 = vld [vmem:[%s282 + $0xa2] sm:$0xff]
      %v680 = vld [vmem:[%s282 + $0xaa] sm:$0xff]
      %v681 = vld [vmem:[%s282 + $0xb2] sm:$0xff]
      %v682 = vld [vmem:[%s282 + $0xba] sm:$0xff]
      %v683 = vld [vmem:[%s282 + $0xc2] sm:$0xff]
      %v684 = vld [vmem:[%s282 + $0xca] sm:$0xff]
      %v685 = vld [vmem:[%s282 + $0xd2] sm:$0xff]
      %v686 = vld [vmem:[%s282 + $0xda] sm:$0xff]
      %v687 = vld [vmem:[%s282 + $0xe2] sm:$0xff]
      %v688 = vld [vmem:[%s282 + $0xea] sm:$0xff]
      %v689 = vld [vmem:[%s282 + $0xf2] sm:$0xff]
      %v690 = vld [vmem:[%s282 + $0xfa] sm:$0xff]
      %v691 = vld [vmem:[%s282 + $0x102] sm:$0xff]
      %v692 = vld [vmem:[%s282 + $0x10a] sm:$0xff]
      %v693 = vld [vmem:[%s282 + $0x112] sm:$0xff]
      %v694 = vld [vmem:[%s282 + $0x11a] sm:$0xff]
      %s695 = scalar_lea.vmem %s286, 256
      %v696 = vld [vmem:[%s695] sm:$0xff]
      %v697 = vld [vmem:[%s695 + $0x8] sm:$0xff]
      %v698 = vld [vmem:[%s695 + $0x10] sm:$0xff]
      %v699 = vld [vmem:[%s695 + $0x18] sm:$0xff]
      %v700 = vld [vmem:[%s695 + $0x20] sm:$0xff]
      %v701 = vld [vmem:[%s695 + $0x28] sm:$0xff]
      %v702 = vld [vmem:[%s695 + $0x30] sm:$0xff]
      %v703 = vld [vmem:[%s695 + $0x38] sm:$0xff]
      %v704 = vld [vmem:[%s695 + $0x40] sm:$0xff]
      %v705 = vld [vmem:[%s695 + $0x48] sm:$0xff]
      %v706 = vld [vmem:[%s695 + $0x50] sm:$0xff]
      %v707 = vld [vmem:[%s695 + $0x58] sm:$0xff]
      %v708 = vld [vmem:[%s695 + $0x60] sm:$0xff]
      %v709 = vld [vmem:[%s695 + $0x68] sm:$0xff]
      %v710 = vld [vmem:[%s695 + $0x70] sm:$0xff]
      %v711 = vld [vmem:[%s695 + $0x78] sm:$0xff]
      %712 = vmatpush.msra.mxu0 %v711
      %713 = vmatpush.msra.mxu0 %v710
      %714 = vmatpush.msra.mxu0 %v709
      %715 = vmatpush.msra.mxu0 %v708
      %716 = vmatpush.msra.mxu0 %v707
      %717 = vmatpush.msra.mxu0 %v706
      %718 = vmatpush.msra.mxu0 %v705
      %719 = vmatpush.msra.mxu0 %v704
      %720 = vmatpush.msra.mxu0 %v703
      %721 = vmatpush.msra.mxu0 %v702
      %722 = vmatpush.msra.mxu0 %v701
      %723 = vmatpush.msra.mxu0 %v700
      %724 = vmatpush.msra.mxu0 %v699
      %725 = vmatpush.msra.mxu0 %v698
      %726 = vmatpush.msra.mxu0 %v697
      %727 = vmatpush.msra.mxu0 %v696
      %728 = vmatmul.f32.gmra.mxu0 %v659
      %v729 = vpop.f32.mrf.mxu0
      %v730 = vadd.f32 0.0, %v729
      %731 = vmatmul.f32.gmra.mxu0 %v660
      %v732 = vpop.f32.mrf.mxu0
      %v733 = vadd.f32 0.0, %v732
      %734 = vmatmul.f32.gmra.mxu0 %v661
      %v735 = vpop.f32.mrf.mxu0
      %v736 = vadd.f32 0.0, %v735
      %737 = vmatmul.f32.gmra.mxu0 %v662
      %v738 = vpop.f32.mrf.mxu0
      %v739 = vadd.f32 0.0, %v738
      %740 = vmatmul.f32.gmra.mxu0 %v663
      %v741 = vpop.f32.mrf.mxu0
      %v742 = vadd.f32 0.0, %v741
      %743 = vmatmul.f32.gmra.mxu0 %v664
      %v744 = vpop.f32.mrf.mxu0
      %v745 = vadd.f32 0.0, %v744
      %746 = vmatmul.f32.gmra.mxu0 %v665
      %v747 = vpop.f32.mrf.mxu0
      %v748 = vadd.f32 0.0, %v747
      %749 = vmatmul.f32.gmra.mxu0 %v666
      %v750 = vpop.f32.mrf.mxu0
      %v751 = vadd.f32 0.0, %v750
      %752 = vmatmul.f32.gmra.mxu0 %v667
      %v753 = vpop.f32.mrf.mxu0
      %v754 = vadd.f32 0.0, %v753
      %755 = vmatmul.f32.gmra.mxu0 %v668
      %v756 = vpop.f32.mrf.mxu0
      %v757 = vadd.f32 0.0, %v756
      %758 = vmatmul.f32.gmra.mxu0 %v669
      %v759 = vpop.f32.mrf.mxu0
      %v760 = vadd.f32 0.0, %v759
      %761 = vmatmul.f32.gmra.mxu0 %v670
      %v762 = vpop.f32.mrf.mxu0
      %v763 = vadd.f32 0.0, %v762
      %764 = vmatmul.f32.gmra.mxu0 %v671
      %v765 = vpop.f32.mrf.mxu0
      %v766 = vadd.f32 0.0, %v765
      %767 = vmatmul.f32.gmra.mxu0 %v672
      %v768 = vpop.f32.mrf.mxu0
      %v769 = vadd.f32 0.0, %v768
      %770 = vmatmul.f32.gmra.mxu0 %v673
      %v771 = vpop.f32.mrf.mxu0
      %v772 = vadd.f32 0.0, %v771
      %773 = vmatmul.f32.gmra.mxu0 %v674
      %v774 = vpop.f32.mrf.mxu0
      %v775 = vadd.f32 0.0, %v774
      %776 = vmatmul.f32.gmra.mxu0 %v675
      %v777 = vpop.f32.mrf.mxu0
      %v778 = vadd.f32 0.0, %v777
      %779 = vmatmul.f32.gmra.mxu0 %v676
      %v780 = vpop.f32.mrf.mxu0
      %v781 = vadd.f32 0.0, %v780
      %782 = vmatmul.f32.gmra.mxu0 %v677
      %v783 = vpop.f32.mrf.mxu0
      %v784 = vadd.f32 0.0, %v783
      %785 = vmatmul.f32.gmra.mxu0 %v678
      %v786 = vpop.f32.mrf.mxu0
      %v787 = vadd.f32 0.0, %v786
      %788 = vmatmul.f32.gmra.mxu0 %v679
      %v789 = vpop.f32.mrf.mxu0
      %v790 = vadd.f32 0.0, %v789
      %791 = vmatmul.f32.gmra.mxu0 %v680
      %v792 = vpop.f32.mrf.mxu0
      %v793 = vadd.f32 0.0, %v792
      %794 = vmatmul.f32.gmra.mxu0 %v681
      %v795 = vpop.f32.mrf.mxu0
      %v796 = vadd.f32 0.0, %v795
      %797 = vmatmul.f32.gmra.mxu0 %v682
      %v798 = vpop.f32.mrf.mxu0
      %v799 = vadd.f32 0.0, %v798
      %800 = vmatmul.f32.gmra.mxu0 %v683
      %v801 = vpop.f32.mrf.mxu0
      %v802 = vadd.f32 0.0, %v801
      %803 = vmatmul.f32.gmra.mxu0 %v684
      %v804 = vpop.f32.mrf.mxu0
      %v805 = vadd.f32 0.0, %v804
      %806 = vmatmul.f32.gmra.mxu0 %v685
      %v807 = vpop.f32.mrf.mxu0
      %v808 = vadd.f32 0.0, %v807
      %809 = vmatmul.f32.gmra.mxu0 %v686
      %v810 = vpop.f32.mrf.mxu0
      %v811 = vadd.f32 0.0, %v810
      %812 = vmatmul.f32.gmra.mxu0 %v687
      %v813 = vpop.f32.mrf.mxu0
      %v814 = vadd.f32 0.0, %v813
      %815 = vmatmul.f32.gmra.mxu0 %v688
      %v816 = vpop.f32.mrf.mxu0
      %v817 = vadd.f32 0.0, %v816
      %818 = vmatmul.f32.gmra.mxu0 %v689
      %v819 = vpop.f32.mrf.mxu0
      %v820 = vadd.f32 0.0, %v819
      %821 = vmatmul.f32.gmra.mxu0 %v690
      %v822 = vpop.f32.mrf.mxu0
      %v823 = vadd.f32 0.0, %v822
      %824 = vmatmul.f32.gmra.mxu0 %v691
      %v825 = vpop.f32.mrf.mxu0
      %v826 = vadd.f32 0.0, %v825
      %827 = vmatmul.f32.gmra.mxu0 %v692
      %v828 = vpop.f32.mrf.mxu0
      %v829 = vadd.f32 0.0, %v828
      %830 = vmatmul.f32.gmra.mxu0 %v693
      %v831 = vpop.f32.mrf.mxu0
      %v832 = vadd.f32 0.0, %v831
      %833 = vmatmul.f32.gmra.mxu0 %v694
      %v834 = vpop.f32.mrf.mxu0
      %v835 = vadd.f32 0.0, %v834
      %836 = vdwg.mxu0
      %v837 = vadd.f32 %v552, %v730
      %v838 = vadd.f32 %v555, %v733
      %v839 = vadd.f32 %v558, %v736
      %v840 = vadd.f32 %v561, %v739
      %v841 = vadd.f32 %v564, %v742
      %v842 = vadd.f32 %v567, %v745
      %v843 = vadd.f32 %v570, %v748
      %v844 = vadd.f32 %v573, %v751
      %v845 = vadd.f32 %v576, %v754
      %v846 = vadd.f32 %v579, %v757
      %v847 = vadd.f32 %v582, %v760
      %v848 = vadd.f32 %v585, %v763
      %v849 = vadd.f32 %v588, %v766
      %v850 = vadd.f32 %v591, %v769
      %v851 = vadd.f32 %v594, %v772
      %v852 = vadd.f32 %v597, %v775
      %v853 = vadd.f32 %v600, %v778
      %v854 = vadd.f32 %v603, %v781
      %v855 = vadd.f32 %v606, %v784
      %v856 = vadd.f32 %v609, %v787
      %v857 = vadd.f32 %v612, %v790
      %v858 = vadd.f32 %v615, %v793
      %v859 = vadd.f32 %v618, %v796
      %v860 = vadd.f32 %v621, %v799
      %v861 = vadd.f32 %v624, %v802
      %v862 = vadd.f32 %v627, %v805
      %v863 = vadd.f32 %v630, %v808
      %v864 = vadd.f32 %v633, %v811
      %v865 = vadd.f32 %v636, %v814
      %v866 = vadd.f32 %v639, %v817
      %v867 = vadd.f32 %v642, %v820
      %v868 = vadd.f32 %v645, %v823
      %v869 = vadd.f32 %v648, %v826
      %v870 = vadd.f32 %v651, %v829
      %v871 = vadd.f32 %v654, %v832
      %v872 = vadd.f32 %v657, %v835
      %v873 = vld [vmem:[%s282 + $0x12] sm:$0xff]
      %v874 = vld [vmem:[%s282 + $0x1a] sm:$0xff]
      %v875 = vld [vmem:[%s282 + $0x22] sm:$0xff]
      %v876 = vld [vmem:[%s282 + $0x2a] sm:$0xff]
      %v877 = vld [vmem:[%s282 + $0x32] sm:$0xff]
      %v878 = vld [vmem:[%s282 + $0x3a] sm:$0xff]
      %v879 = vld [vmem:[%s282 + $0x42] sm:$0xff]
      %v880 = vld [vmem:[%s282 + $0x4a] sm:$0xff]
      %v881 = vld [vmem:[%s282 + $0x52] sm:$0xff]
      %v882 = vld [vmem:[%s282 + $0x5a] sm:$0xff]
      %v883 = vld [vmem:[%s282 + $0x62] sm:$0xff]
      %v884 = vld [vmem:[%s282 + $0x6a] sm:$0xff]
      %v885 = vld [vmem:[%s282 + $0x72] sm:$0xff]
      %v886 = vld [vmem:[%s282 + $0x7a] sm:$0xff]
      %v887 = vld [vmem:[%s282 + $0x82] sm:$0xff]
      %v888 = vld [vmem:[%s282 + $0x8a] sm:$0xff]
      %v889 = vld [vmem:[%s282 + $0x92] sm:$0xff]
      %v890 = vld [vmem:[%s282 + $0x9a] sm:$0xff]
      %v891 = vld [vmem:[%s282 + $0xa2] sm:$0xff]
      %v892 = vld [vmem:[%s282 + $0xaa] sm:$0xff]
      %v893 = vld [vmem:[%s282 + $0xb2] sm:$0xff]
      %v894 = vld [vmem:[%s282 + $0xba] sm:$0xff]
      %v895 = vld [vmem:[%s282 + $0xc2] sm:$0xff]
      %v896 = vld [vmem:[%s282 + $0xca] sm:$0xff]
      %v897 = vld [vmem:[%s282 + $0xd2] sm:$0xff]
      %v898 = vld [vmem:[%s282 + $0xda] sm:$0xff]
      %v899 = vld [vmem:[%s282 + $0xe2] sm:$0xff]
      %v900 = vld [vmem:[%s282 + $0xea] sm:$0xff]
      %v901 = vld [vmem:[%s282 + $0xf2] sm:$0xff]
      %v902 = vld [vmem:[%s282 + $0xfa] sm:$0xff]
      %v903 = vld [vmem:[%s282 + $0x102] sm:$0xff]
      %v904 = vld [vmem:[%s282 + $0x10a] sm:$0xff]
      %v905 = vld [vmem:[%s282 + $0x112] sm:$0xff]
      %v906 = vld [vmem:[%s282 + $0x11a] sm:$0xff]
      %v907 = vld [vmem:[%s282 + $0x122] sm:$0xff]
      %v908 = vld [vmem:[%s282 + $0x12a] sm:$0xff]
      %s909 = scalar_lea.vmem %s286, 384
      %v910 = vld [vmem:[%s909] sm:$0xff]
      %v911 = vld [vmem:[%s909 + $0x8] sm:$0xff]
      %v912 = vld [vmem:[%s909 + $0x10] sm:$0xff]
      %v913 = vld [vmem:[%s909 + $0x18] sm:$0xff]
      %v914 = vld [vmem:[%s909 + $0x20] sm:$0xff]
      %v915 = vld [vmem:[%s909 + $0x28] sm:$0xff]
      %v916 = vld [vmem:[%s909 + $0x30] sm:$0xff]
      %v917 = vld [vmem:[%s909 + $0x38] sm:$0xff]
      %v918 = vld [vmem:[%s909 + $0x40] sm:$0xff]
      %v919 = vld [vmem:[%s909 + $0x48] sm:$0xff]
      %v920 = vld [vmem:[%s909 + $0x50] sm:$0xff]
      %v921 = vld [vmem:[%s909 + $0x58] sm:$0xff]
      %v922 = vld [vmem:[%s909 + $0x60] sm:$0xff]
      %v923 = vld [vmem:[%s909 + $0x68] sm:$0xff]
      %v924 = vld [vmem:[%s909 + $0x70] sm:$0xff]
      %v925 = vld [vmem:[%s909 + $0x78] sm:$0xff]
      %926 = vmatpush.msra.mxu0 %v925
      %927 = vmatpush.msra.mxu0 %v924
      %928 = vmatpush.msra.mxu0 %v923
      %929 = vmatpush.msra.mxu0 %v922
      %930 = vmatpush.msra.mxu0 %v921
      %931 = vmatpush.msra.mxu0 %v920
      %932 = vmatpush.msra.mxu0 %v919
      %933 = vmatpush.msra.mxu0 %v918
      %934 = vmatpush.msra.mxu0 %v917
      %935 = vmatpush.msra.mxu0 %v916
      %936 = vmatpush.msra.mxu0 %v915
      %937 = vmatpush.msra.mxu0 %v914
      %938 = vmatpush.msra.mxu0 %v913
      %939 = vmatpush.msra.mxu0 %v912
      %940 = vmatpush.msra.mxu0 %v911
      %941 = vmatpush.msra.mxu0 %v910
      %942 = vmatmul.f32.gmra.mxu0 %v873
      %v943 = vpop.f32.mrf.mxu0
      %v944 = vadd.f32 0.0, %v943
      %945 = vmatmul.f32.gmra.mxu0 %v874
      %v946 = vpop.f32.mrf.mxu0
      %v947 = vadd.f32 0.0, %v946
      %948 = vmatmul.f32.gmra.mxu0 %v875
      %v949 = vpop.f32.mrf.mxu0
      %v950 = vadd.f32 0.0, %v949
      %951 = vmatmul.f32.gmra.mxu0 %v876
      %v952 = vpop.f32.mrf.mxu0
      %v953 = vadd.f32 0.0, %v952
      %954 = vmatmul.f32.gmra.mxu0 %v877
      %v955 = vpop.f32.mrf.mxu0
      %v956 = vadd.f32 0.0, %v955
      %957 = vmatmul.f32.gmra.mxu0 %v878
      %v958 = vpop.f32.mrf.mxu0
      %v959 = vadd.f32 0.0, %v958
      %960 = vmatmul.f32.gmra.mxu0 %v879
      %v961 = vpop.f32.mrf.mxu0
      %v962 = vadd.f32 0.0, %v961
      %963 = vmatmul.f32.gmra.mxu0 %v880
      %v964 = vpop.f32.mrf.mxu0
      %v965 = vadd.f32 0.0, %v964
      %966 = vmatmul.f32.gmra.mxu0 %v881
      %v967 = vpop.f32.mrf.mxu0
      %v968 = vadd.f32 0.0, %v967
      %969 = vmatmul.f32.gmra.mxu0 %v882
      %v970 = vpop.f32.mrf.mxu0
      %v971 = vadd.f32 0.0, %v970
      %972 = vmatmul.f32.gmra.mxu0 %v883
      %v973 = vpop.f32.mrf.mxu0
      %v974 = vadd.f32 0.0, %v973
      %975 = vmatmul.f32.gmra.mxu0 %v884
      %v976 = vpop.f32.mrf.mxu0
      %v977 = vadd.f32 0.0, %v976
      %978 = vmatmul.f32.gmra.mxu0 %v885
      %v979 = vpop.f32.mrf.mxu0
      %v980 = vadd.f32 0.0, %v979
      %981 = vmatmul.f32.gmra.mxu0 %v886
      %v982 = vpop.f32.mrf.mxu0
      %v983 = vadd.f32 0.0, %v982
      %984 = vmatmul.f32.gmra.mxu0 %v887
      %v985 = vpop.f32.mrf.mxu0
      %v986 = vadd.f32 0.0, %v985
      %987 = vmatmul.f32.gmra.mxu0 %v888
      %v988 = vpop.f32.mrf.mxu0
      %v989 = vadd.f32 0.0, %v988
      %990 = vmatmul.f32.gmra.mxu0 %v889
      %v991 = vpop.f32.mrf.mxu0
      %v992 = vadd.f32 0.0, %v991
      %993 = vmatmul.f32.gmra.mxu0 %v890
      %v994 = vpop.f32.mrf.mxu0
      %v995 = vadd.f32 0.0, %v994
      %996 = vmatmul.f32.gmra.mxu0 %v891
      %v997 = vpop.f32.mrf.mxu0
      %v998 = vadd.f32 0.0, %v997
      %999 = vmatmul.f32.gmra.mxu0 %v892
      %v1000 = vpop.f32.mrf.mxu0
      %v1001 = vadd.f32 0.0, %v1000
      %1002 = vmatmul.f32.gmra.mxu0 %v893
      %v1003 = vpop.f32.mrf.mxu0
      %v1004 = vadd.f32 0.0, %v1003
      %1005 = vmatmul.f32.gmra.mxu0 %v894
      %v1006 = vpop.f32.mrf.mxu0
      %v1007 = vadd.f32 0.0, %v1006
      %1008 = vmatmul.f32.gmra.mxu0 %v895
      %v1009 = vpop.f32.mrf.mxu0
      %v1010 = vadd.f32 0.0, %v1009
      %1011 = vmatmul.f32.gmra.mxu0 %v896
      %v1012 = vpop.f32.mrf.mxu0
      %v1013 = vadd.f32 0.0, %v1012
      %1014 = vmatmul.f32.gmra.mxu0 %v897
      %v1015 = vpop.f32.mrf.mxu0
      %v1016 = vadd.f32 0.0, %v1015
      %1017 = vmatmul.f32.gmra.mxu0 %v898
      %v1018 = vpop.f32.mrf.mxu0
      %v1019 = vadd.f32 0.0, %v1018
      %1020 = vmatmul.f32.gmra.mxu0 %v899
      %v1021 = vpop.f32.mrf.mxu0
      %v1022 = vadd.f32 0.0, %v1021
      %1023 = vmatmul.f32.gmra.mxu0 %v900
      %v1024 = vpop.f32.mrf.mxu0
      %v1025 = vadd.f32 0.0, %v1024
      %1026 = vmatmul.f32.gmra.mxu0 %v901
      %v1027 = vpop.f32.mrf.mxu0
      %v1028 = vadd.f32 0.0, %v1027
      %1029 = vmatmul.f32.gmra.mxu0 %v902
      %v1030 = vpop.f32.mrf.mxu0
      %v1031 = vadd.f32 0.0, %v1030
      %1032 = vmatmul.f32.gmra.mxu0 %v903
      %v1033 = vpop.f32.mrf.mxu0
      %v1034 = vadd.f32 0.0, %v1033
      %1035 = vmatmul.f32.gmra.mxu0 %v904
      %v1036 = vpop.f32.mrf.mxu0
      %v1037 = vadd.f32 0.0, %v1036
      %1038 = vmatmul.f32.gmra.mxu0 %v905
      %v1039 = vpop.f32.mrf.mxu0
      %v1040 = vadd.f32 0.0, %v1039
      %1041 = vmatmul.f32.gmra.mxu0 %v906
      %v1042 = vpop.f32.mrf.mxu0
      %v1043 = vadd.f32 0.0, %v1042
      %1044 = vmatmul.f32.gmra.mxu0 %v907
      %v1045 = vpop.f32.mrf.mxu0
      %v1046 = vadd.f32 0.0, %v1045
      %1047 = vmatmul.f32.gmra.mxu0 %v908
      %v1048 = vpop.f32.mrf.mxu0
      %v1049 = vadd.f32 0.0, %v1048
      %1050 = vdwg.mxu0
      %v1051 = vadd.f32 %v837, %v944
      %v1052 = vadd.f32 %v838, %v947
      %v1053 = vadd.f32 %v839, %v950
      %v1054 = vadd.f32 %v840, %v953
      %v1055 = vadd.f32 %v841, %v956
      %v1056 = vadd.f32 %v842, %v959
      %v1057 = vadd.f32 %v843, %v962
      %v1058 = vadd.f32 %v844, %v965
      %v1059 = vadd.f32 %v845, %v968
      %v1060 = vadd.f32 %v846, %v971
      %v1061 = vadd.f32 %v847, %v974
      %v1062 = vadd.f32 %v848, %v977
      %v1063 = vadd.f32 %v849, %v980
      %v1064 = vadd.f32 %v850, %v983
      %v1065 = vadd.f32 %v851, %v986
      %v1066 = vadd.f32 %v852, %v989
      %v1067 = vadd.f32 %v853, %v992
      %v1068 = vadd.f32 %v854, %v995
      %v1069 = vadd.f32 %v855, %v998
      %v1070 = vadd.f32 %v856, %v1001
      %v1071 = vadd.f32 %v857, %v1004
      %v1072 = vadd.f32 %v858, %v1007
      %v1073 = vadd.f32 %v859, %v1010
      %v1074 = vadd.f32 %v860, %v1013
      %v1075 = vadd.f32 %v861, %v1016
      %v1076 = vadd.f32 %v862, %v1019
      %v1077 = vadd.f32 %v863, %v1022
      %v1078 = vadd.f32 %v864, %v1025
      %v1079 = vadd.f32 %v865, %v1028
      %v1080 = vadd.f32 %v866, %v1031
      %v1081 = vadd.f32 %v867, %v1034
      %v1082 = vadd.f32 %v868, %v1037
      %v1083 = vadd.f32 %v869, %v1040
      %v1084 = vadd.f32 %v870, %v1043
      %v1085 = vadd.f32 %v871, %v1046
      %v1086 = vadd.f32 %v872, %v1049
      %v1087 = vld [vmem:[%s282 + $0x13] sm:$0xff]
      %v1088 = vld [vmem:[%s282 + $0x1b] sm:$0xff]
      %v1089 = vld [vmem:[%s282 + $0x23] sm:$0xff]
      %v1090 = vld [vmem:[%s282 + $0x2b] sm:$0xff]
      %v1091 = vld [vmem:[%s282 + $0x33] sm:$0xff]
      %v1092 = vld [vmem:[%s282 + $0x3b] sm:$0xff]
      %v1093 = vld [vmem:[%s282 + $0x43] sm:$0xff]
      %v1094 = vld [vmem:[%s282 + $0x4b] sm:$0xff]
      %v1095 = vld [vmem:[%s282 + $0x53] sm:$0xff]
      %v1096 = vld [vmem:[%s282 + $0x5b] sm:$0xff]
      %v1097 = vld [vmem:[%s282 + $0x63] sm:$0xff]
      %v1098 = vld [vmem:[%s282 + $0x6b] sm:$0xff]
      %v1099 = vld [vmem:[%s282 + $0x73] sm:$0xff]
      %v1100 = vld [vmem:[%s282 + $0x7b] sm:$0xff]
      %v1101 = vld [vmem:[%s282 + $0x83] sm:$0xff]
      %v1102 = vld [vmem:[%s282 + $0x8b] sm:$0xff]
      %v1103 = vld [vmem:[%s282 + $0x93] sm:$0xff]
      %v1104 = vld [vmem:[%s282 + $0x9b] sm:$0xff]
      %v1105 = vld [vmem:[%s282 + $0xa3] sm:$0xff]
      %v1106 = vld [vmem:[%s282 + $0xab] sm:$0xff]
      %v1107 = vld [vmem:[%s282 + $0xb3] sm:$0xff]
      %v1108 = vld [vmem:[%s282 + $0xbb] sm:$0xff]
      %v1109 = vld [vmem:[%s282 + $0xc3] sm:$0xff]
      %v1110 = vld [vmem:[%s282 + $0xcb] sm:$0xff]
      %v1111 = vld [vmem:[%s282 + $0xd3] sm:$0xff]
      %v1112 = vld [vmem:[%s282 + $0xdb] sm:$0xff]
      %v1113 = vld [vmem:[%s282 + $0xe3] sm:$0xff]
      %v1114 = vld [vmem:[%s282 + $0xeb] sm:$0xff]
      %v1115 = vld [vmem:[%s282 + $0xf3] sm:$0xff]
      %v1116 = vld [vmem:[%s282 + $0xfb] sm:$0xff]
      %v1117 = vld [vmem:[%s282 + $0x103] sm:$0xff]
      %v1118 = vld [vmem:[%s282 + $0x10b] sm:$0xff]
      %v1119 = vld [vmem:[%s282 + $0x113] sm:$0xff]
      %v1120 = vld [vmem:[%s282 + $0x11b] sm:$0xff]
      %v1121 = vld [vmem:[%s282 + $0x123] sm:$0xff]
      %v1122 = vld [vmem:[%s282 + $0x12b] sm:$0xff]
      %s1123 = scalar_lea.vmem %s286, 512
      %v1124 = vld [vmem:[%s1123] sm:$0xff]
      %v1125 = vld [vmem:[%s1123 + $0x8] sm:$0xff]
      %v1126 = vld [vmem:[%s1123 + $0x10] sm:$0xff]
      %v1127 = vld [vmem:[%s1123 + $0x18] sm:$0xff]
      %v1128 = vld [vmem:[%s1123 + $0x20] sm:$0xff]
      %v1129 = vld [vmem:[%s1123 + $0x28] sm:$0xff]
      %v1130 = vld [vmem:[%s1123 + $0x30] sm:$0xff]
      %v1131 = vld [vmem:[%s1123 + $0x38] sm:$0xff]
      %v1132 = vld [vmem:[%s1123 + $0x40] sm:$0xff]
      %v1133 = vld [vmem:[%s1123 + $0x48] sm:$0xff]
      %v1134 = vld [vmem:[%s1123 + $0x50] sm:$0xff]
      %v1135 = vld [vmem:[%s1123 + $0x58] sm:$0xff]
      %v1136 = vld [vmem:[%s1123 + $0x60] sm:$0xff]
      %v1137 = vld [vmem:[%s1123 + $0x68] sm:$0xff]
      %v1138 = vld [vmem:[%s1123 + $0x70] sm:$0xff]
      %v1139 = vld [vmem:[%s1123 + $0x78] sm:$0xff]
      %1140 = vmatpush.msra.mxu0 %v1139
      %1141 = vmatpush.msra.mxu0 %v1138
      %1142 = vmatpush.msra.mxu0 %v1137
      %1143 = vmatpush.msra.mxu0 %v1136
      %1144 = vmatpush.msra.mxu0 %v1135
      %1145 = vmatpush.msra.mxu0 %v1134
      %1146 = vmatpush.msra.mxu0 %v1133
      %1147 = vmatpush.msra.mxu0 %v1132
      %1148 = vmatpush.msra.mxu0 %v1131
      %1149 = vmatpush.msra.mxu0 %v1130
      %1150 = vmatpush.msra.mxu0 %v1129
      %1151 = vmatpush.msra.mxu0 %v1128
      %1152 = vmatpush.msra.mxu0 %v1127
      %1153 = vmatpush.msra.mxu0 %v1126
      %1154 = vmatpush.msra.mxu0 %v1125
      %1155 = vmatpush.msra.mxu0 %v1124
      %1156 = vmatmul.f32.gmra.mxu0 %v1087
      %v1157 = vpop.f32.mrf.mxu0
      %v1158 = vadd.f32 0.0, %v1157
      %1159 = vmatmul.f32.gmra.mxu0 %v1088
      %v1160 = vpop.f32.mrf.mxu0
      %v1161 = vadd.f32 0.0, %v1160
      %1162 = vmatmul.f32.gmra.mxu0 %v1089
      %v1163 = vpop.f32.mrf.mxu0
      %v1164 = vadd.f32 0.0, %v1163
      %1165 = vmatmul.f32.gmra.mxu0 %v1090
      %v1166 = vpop.f32.mrf.mxu0
      %v1167 = vadd.f32 0.0, %v1166
      %1168 = vmatmul.f32.gmra.mxu0 %v1091
      %v1169 = vpop.f32.mrf.mxu0
      %v1170 = vadd.f32 0.0, %v1169
      %1171 = vmatmul.f32.gmra.mxu0 %v1092
      %v1172 = vpop.f32.mrf.mxu0
      %v1173 = vadd.f32 0.0, %v1172
      %1174 = vmatmul.f32.gmra.mxu0 %v1093
      %v1175 = vpop.f32.mrf.mxu0
      %v1176 = vadd.f32 0.0, %v1175
      %1177 = vmatmul.f32.gmra.mxu0 %v1094
      %v1178 = vpop.f32.mrf.mxu0
      %v1179 = vadd.f32 0.0, %v1178
      %1180 = vmatmul.f32.gmra.mxu0 %v1095
      %v1181 = vpop.f32.mrf.mxu0
      %v1182 = vadd.f32 0.0, %v1181
      %1183 = vmatmul.f32.gmra.mxu0 %v1096
      %v1184 = vpop.f32.mrf.mxu0
      %v1185 = vadd.f32 0.0, %v1184
      %1186 = vmatmul.f32.gmra.mxu0 %v1097
      %v1187 = vpop.f32.mrf.mxu0
      %v1188 = vadd.f32 0.0, %v1187
      %1189 = vmatmul.f32.gmra.mxu0 %v1098
      %v1190 = vpop.f32.mrf.mxu0
      %v1191 = vadd.f32 0.0, %v1190
      %1192 = vmatmul.f32.gmra.mxu0 %v1099
      %v1193 = vpop.f32.mrf.mxu0
      %v1194 = vadd.f32 0.0, %v1193
      %1195 = vmatmul.f32.gmra.mxu0 %v1100
      %v1196 = vpop.f32.mrf.mxu0
      %v1197 = vadd.f32 0.0, %v1196
      %1198 = vmatmul.f32.gmra.mxu0 %v1101
      %v1199 = vpop.f32.mrf.mxu0
      %v1200 = vadd.f32 0.0, %v1199
      %1201 = vmatmul.f32.gmra.mxu0 %v1102
      %v1202 = vpop.f32.mrf.mxu0
      %v1203 = vadd.f32 0.0, %v1202
      %1204 = vmatmul.f32.gmra.mxu0 %v1103
      %v1205 = vpop.f32.mrf.mxu0
      %v1206 = vadd.f32 0.0, %v1205
      %1207 = vmatmul.f32.gmra.mxu0 %v1104
      %v1208 = vpop.f32.mrf.mxu0
      %v1209 = vadd.f32 0.0, %v1208
      %1210 = vmatmul.f32.gmra.mxu0 %v1105
      %v1211 = vpop.f32.mrf.mxu0
      %v1212 = vadd.f32 0.0, %v1211
      %1213 = vmatmul.f32.gmra.mxu0 %v1106
      %v1214 = vpop.f32.mrf.mxu0
      %v1215 = vadd.f32 0.0, %v1214
      %1216 = vmatmul.f32.gmra.mxu0 %v1107
      %v1217 = vpop.f32.mrf.mxu0
      %v1218 = vadd.f32 0.0, %v1217
      %1219 = vmatmul.f32.gmra.mxu0 %v1108
      %v1220 = vpop.f32.mrf.mxu0
      %v1221 = vadd.f32 0.0, %v1220
      %1222 = vmatmul.f32.gmra.mxu0 %v1109
      %v1223 = vpop.f32.mrf.mxu0
      %v1224 = vadd.f32 0.0, %v1223
      %1225 = vmatmul.f32.gmra.mxu0 %v1110
      %v1226 = vpop.f32.mrf.mxu0
      %v1227 = vadd.f32 0.0, %v1226
      %1228 = vmatmul.f32.gmra.mxu0 %v1111
      %v1229 = vpop.f32.mrf.mxu0
      %v1230 = vadd.f32 0.0, %v1229
      %1231 = vmatmul.f32.gmra.mxu0 %v1112
      %v1232 = vpop.f32.mrf.mxu0
      %v1233 = vadd.f32 0.0, %v1232
      %1234 = vmatmul.f32.gmra.mxu0 %v1113
      %v1235 = vpop.f32.mrf.mxu0
      %v1236 = vadd.f32 0.0, %v1235
      %1237 = vmatmul.f32.gmra.mxu0 %v1114
      %v1238 = vpop.f32.mrf.mxu0
      %v1239 = vadd.f32 0.0, %v1238
      %1240 = vmatmul.f32.gmra.mxu0 %v1115
      %v1241 = vpop.f32.mrf.mxu0
      %v1242 = vadd.f32 0.0, %v1241
      %1243 = vmatmul.f32.gmra.mxu0 %v1116
      %v1244 = vpop.f32.mrf.mxu0
      %v1245 = vadd.f32 0.0, %v1244
      %1246 = vmatmul.f32.gmra.mxu0 %v1117
      %v1247 = vpop.f32.mrf.mxu0
      %v1248 = vadd.f32 0.0, %v1247
      %1249 = vmatmul.f32.gmra.mxu0 %v1118
      %v1250 = vpop.f32.mrf.mxu0
      %v1251 = vadd.f32 0.0, %v1250
      %1252 = vmatmul.f32.gmra.mxu0 %v1119
      %v1253 = vpop.f32.mrf.mxu0
      %v1254 = vadd.f32 0.0, %v1253
      %1255 = vmatmul.f32.gmra.mxu0 %v1120
      %v1256 = vpop.f32.mrf.mxu0
      %v1257 = vadd.f32 0.0, %v1256
      %1258 = vmatmul.f32.gmra.mxu0 %v1121
      %v1259 = vpop.f32.mrf.mxu0
      %v1260 = vadd.f32 0.0, %v1259
      %1261 = vmatmul.f32.gmra.mxu0 %v1122
      %v1262 = vpop.f32.mrf.mxu0
      %v1263 = vadd.f32 0.0, %v1262
      %1264 = vdwg.mxu0
      %v1265 = vadd.f32 %v1051, %v1158
      %v1266 = vadd.f32 %v1052, %v1161
      %v1267 = vadd.f32 %v1053, %v1164
      %v1268 = vadd.f32 %v1054, %v1167
      %v1269 = vadd.f32 %v1055, %v1170
      %v1270 = vadd.f32 %v1056, %v1173
      %v1271 = vadd.f32 %v1057, %v1176
      %v1272 = vadd.f32 %v1058, %v1179
      %v1273 = vadd.f32 %v1059, %v1182
      %v1274 = vadd.f32 %v1060, %v1185
      %v1275 = vadd.f32 %v1061, %v1188
      %v1276 = vadd.f32 %v1062, %v1191
      %v1277 = vadd.f32 %v1063, %v1194
      %v1278 = vadd.f32 %v1064, %v1197
      %v1279 = vadd.f32 %v1065, %v1200
      %v1280 = vadd.f32 %v1066, %v1203
      %v1281 = vadd.f32 %v1067, %v1206
      %v1282 = vadd.f32 %v1068, %v1209
      %v1283 = vadd.f32 %v1069, %v1212
      %v1284 = vadd.f32 %v1070, %v1215
      %v1285 = vadd.f32 %v1071, %v1218
      %v1286 = vadd.f32 %v1072, %v1221
      %v1287 = vadd.f32 %v1073, %v1224
      %v1288 = vadd.f32 %v1074, %v1227
      %v1289 = vadd.f32 %v1075, %v1230
      %v1290 = vadd.f32 %v1076, %v1233
      %v1291 = vadd.f32 %v1077, %v1236
      %v1292 = vadd.f32 %v1078, %v1239
      %v1293 = vadd.f32 %v1079, %v1242
      %v1294 = vadd.f32 %v1080, %v1245
      %v1295 = vadd.f32 %v1081, %v1248
      %v1296 = vadd.f32 %v1082, %v1251
      %v1297 = vadd.f32 %v1083, %v1254
      %v1298 = vadd.f32 %v1084, %v1257
      %v1299 = vadd.f32 %v1085, %v1260
      %v1300 = vadd.f32 %v1086, %v1263
      %v1301 = vld [vmem:[%s282 + $0x14] sm:$0xff]
      %v1302 = vld [vmem:[%s282 + $0x1c] sm:$0xff]
      %v1303 = vld [vmem:[%s282 + $0x24] sm:$0xff]
      %v1304 = vld [vmem:[%s282 + $0x2c] sm:$0xff]
      %v1305 = vld [vmem:[%s282 + $0x34] sm:$0xff]
      %v1306 = vld [vmem:[%s282 + $0x3c] sm:$0xff]
      %v1307 = vld [vmem:[%s282 + $0x44] sm:$0xff]
      %v1308 = vld [vmem:[%s282 + $0x4c] sm:$0xff]
      %v1309 = vld [vmem:[%s282 + $0x54] sm:$0xff]
      %v1310 = vld [vmem:[%s282 + $0x5c] sm:$0xff]
      %v1311 = vld [vmem:[%s282 + $0x64] sm:$0xff]
      %v1312 = vld [vmem:[%s282 + $0x6c] sm:$0xff]
      %v1313 = vld [vmem:[%s282 + $0x74] sm:$0xff]
      %v1314 = vld [vmem:[%s282 + $0x7c] sm:$0xff]
      %v1315 = vld [vmem:[%s282 + $0x84] sm:$0xff]
      %v1316 = vld [vmem:[%s282 + $0x8c] sm:$0xff]
      %v1317 = vld [vmem:[%s282 + $0x94] sm:$0xff]
      %v1318 = vld [vmem:[%s282 + $0x9c] sm:$0xff]
      %v1319 = vld [vmem:[%s282 + $0xa4] sm:$0xff]
      %v1320 = vld [vmem:[%s282 + $0xac] sm:$0xff]
      %v1321 = vld [vmem:[%s282 + $0xb4] sm:$0xff]
      %v1322 = vld [vmem:[%s282 + $0xbc] sm:$0xff]
      %v1323 = vld [vmem:[%s282 + $0xc4] sm:$0xff]
      %v1324 = vld [vmem:[%s282 + $0xcc] sm:$0xff]
      %v1325 = vld [vmem:[%s282 + $0xd4] sm:$0xff]
      %v1326 = vld [vmem:[%s282 + $0xdc] sm:$0xff]
      %v1327 = vld [vmem:[%s282 + $0xe4] sm:$0xff]
      %v1328 = vld [vmem:[%s282 + $0xec] sm:$0xff]
      %v1329 = vld [vmem:[%s282 + $0xf4] sm:$0xff]
      %v1330 = vld [vmem:[%s282 + $0xfc] sm:$0xff]
      %v1331 = vld [vmem:[%s282 + $0x104] sm:$0xff]
      %v1332 = vld [vmem:[%s282 + $0x10c] sm:$0xff]
      %v1333 = vld [vmem:[%s282 + $0x114] sm:$0xff]
      %v1334 = vld [vmem:[%s282 + $0x11c] sm:$0xff]
      %v1335 = vld [vmem:[%s282 + $0x124] sm:$0xff]
      %v1336 = vld [vmem:[%s282 + $0x12c] sm:$0xff]
      %s1337 = scalar_lea.vmem %s286, 640
      %v1338 = vld [vmem:[%s1337] sm:$0xff]
      %v1339 = vld [vmem:[%s1337 + $0x8] sm:$0xff]
      %v1340 = vld [vmem:[%s1337 + $0x10] sm:$0xff]
      %v1341 = vld [vmem:[%s1337 + $0x18] sm:$0xff]
      %v1342 = vld [vmem:[%s1337 + $0x20] sm:$0xff]
      %v1343 = vld [vmem:[%s1337 + $0x28] sm:$0xff]
      %v1344 = vld [vmem:[%s1337 + $0x30] sm:$0xff]
      %v1345 = vld [vmem:[%s1337 + $0x38] sm:$0xff]
      %v1346 = vld [vmem:[%s1337 + $0x40] sm:$0xff]
      %v1347 = vld [vmem:[%s1337 + $0x48] sm:$0xff]
      %v1348 = vld [vmem:[%s1337 + $0x50] sm:$0xff]
      %v1349 = vld [vmem:[%s1337 + $0x58] sm:$0xff]
      %v1350 = vld [vmem:[%s1337 + $0x60] sm:$0xff]
      %v1351 = vld [vmem:[%s1337 + $0x68] sm:$0xff]
      %v1352 = vld [vmem:[%s1337 + $0x70] sm:$0xff]
      %v1353 = vld [vmem:[%s1337 + $0x78] sm:$0xff]
      %1354 = vmatpush.msra.mxu0 %v1353
      %1355 = vmatpush.msra.mxu0 %v1352
      %1356 = vmatpush.msra.mxu0 %v1351
      %1357 = vmatpush.msra.mxu0 %v1350
      %1358 = vmatpush.msra.mxu0 %v1349
      %1359 = vmatpush.msra.mxu0 %v1348
      %1360 = vmatpush.msra.mxu0 %v1347
      %1361 = vmatpush.msra.mxu0 %v1346
      %1362 = vmatpush.msra.mxu0 %v1345
      %1363 = vmatpush.msra.mxu0 %v1344
      %1364 = vmatpush.msra.mxu0 %v1343
      %1365 = vmatpush.msra.mxu0 %v1342
      %1366 = vmatpush.msra.mxu0 %v1341
      %1367 = vmatpush.msra.mxu0 %v1340
      %1368 = vmatpush.msra.mxu0 %v1339
      %1369 = vmatpush.msra.mxu0 %v1338
      %1370 = vmatmul.f32.gmra.mxu0 %v1301
      %v1371 = vpop.f32.mrf.mxu0
      %v1372 = vadd.f32 0.0, %v1371
      %1373 = vmatmul.f32.gmra.mxu0 %v1302
      %v1374 = vpop.f32.mrf.mxu0
      %v1375 = vadd.f32 0.0, %v1374
      %1376 = vmatmul.f32.gmra.mxu0 %v1303
      %v1377 = vpop.f32.mrf.mxu0
      %v1378 = vadd.f32 0.0, %v1377
      %1379 = vmatmul.f32.gmra.mxu0 %v1304
      %v1380 = vpop.f32.mrf.mxu0
      %v1381 = vadd.f32 0.0, %v1380
      %1382 = vmatmul.f32.gmra.mxu0 %v1305
      %v1383 = vpop.f32.mrf.mxu0
      %v1384 = vadd.f32 0.0, %v1383
      %1385 = vmatmul.f32.gmra.mxu0 %v1306
      %v1386 = vpop.f32.mrf.mxu0
      %v1387 = vadd.f32 0.0, %v1386
      %1388 = vmatmul.f32.gmra.mxu0 %v1307
      %v1389 = vpop.f32.mrf.mxu0
      %v1390 = vadd.f32 0.0, %v1389
      %1391 = vmatmul.f32.gmra.mxu0 %v1308
      %v1392 = vpop.f32.mrf.mxu0
      %v1393 = vadd.f32 0.0, %v1392
      %1394 = vmatmul.f32.gmra.mxu0 %v1309
      %v1395 = vpop.f32.mrf.mxu0
      %v1396 = vadd.f32 0.0, %v1395
      %1397 = vmatmul.f32.gmra.mxu0 %v1310
      %v1398 = vpop.f32.mrf.mxu0
      %v1399 = vadd.f32 0.0, %v1398
      %1400 = vmatmul.f32.gmra.mxu0 %v1311
      %v1401 = vpop.f32.mrf.mxu0
      %v1402 = vadd.f32 0.0, %v1401
      %1403 = vmatmul.f32.gmra.mxu0 %v1312
      %v1404 = vpop.f32.mrf.mxu0
      %v1405 = vadd.f32 0.0, %v1404
      %1406 = vmatmul.f32.gmra.mxu0 %v1313
      %v1407 = vpop.f32.mrf.mxu0
      %v1408 = vadd.f32 0.0, %v1407
      %1409 = vmatmul.f32.gmra.mxu0 %v1314
      %v1410 = vpop.f32.mrf.mxu0
      %v1411 = vadd.f32 0.0, %v1410
      %1412 = vmatmul.f32.gmra.mxu0 %v1315
      %v1413 = vpop.f32.mrf.mxu0
      %v1414 = vadd.f32 0.0, %v1413
      %1415 = vmatmul.f32.gmra.mxu0 %v1316
      %v1416 = vpop.f32.mrf.mxu0
      %v1417 = vadd.f32 0.0, %v1416
      %1418 = vmatmul.f32.gmra.mxu0 %v1317
      %v1419 = vpop.f32.mrf.mxu0
      %v1420 = vadd.f32 0.0, %v1419
      %1421 = vmatmul.f32.gmra.mxu0 %v1318
      %v1422 = vpop.f32.mrf.mxu0
      %v1423 = vadd.f32 0.0, %v1422
      %1424 = vmatmul.f32.gmra.mxu0 %v1319
      %v1425 = vpop.f32.mrf.mxu0
      %v1426 = vadd.f32 0.0, %v1425
      %1427 = vmatmul.f32.gmra.mxu0 %v1320
      %v1428 = vpop.f32.mrf.mxu0
      %v1429 = vadd.f32 0.0, %v1428
      %1430 = vmatmul.f32.gmra.mxu0 %v1321
      %v1431 = vpop.f32.mrf.mxu0
      %v1432 = vadd.f32 0.0, %v1431
      %1433 = vmatmul.f32.gmra.mxu0 %v1322
      %v1434 = vpop.f32.mrf.mxu0
      %v1435 = vadd.f32 0.0, %v1434
      %1436 = vmatmul.f32.gmra.mxu0 %v1323
      %v1437 = vpop.f32.mrf.mxu0
      %v1438 = vadd.f32 0.0, %v1437
      %1439 = vmatmul.f32.gmra.mxu0 %v1324
      %v1440 = vpop.f32.mrf.mxu0
      %v1441 = vadd.f32 0.0, %v1440
      %1442 = vmatmul.f32.gmra.mxu0 %v1325
      %v1443 = vpop.f32.mrf.mxu0
      %v1444 = vadd.f32 0.0, %v1443
      %1445 = vmatmul.f32.gmra.mxu0 %v1326
      %v1446 = vpop.f32.mrf.mxu0
      %v1447 = vadd.f32 0.0, %v1446
      %1448 = vmatmul.f32.gmra.mxu0 %v1327
      %v1449 = vpop.f32.mrf.mxu0
      %v1450 = vadd.f32 0.0, %v1449
      %1451 = vmatmul.f32.gmra.mxu0 %v1328
      %v1452 = vpop.f32.mrf.mxu0
      %v1453 = vadd.f32 0.0, %v1452
      %1454 = vmatmul.f32.gmra.mxu0 %v1329
      %v1455 = vpop.f32.mrf.mxu0
      %v1456 = vadd.f32 0.0, %v1455
      %1457 = vmatmul.f32.gmra.mxu0 %v1330
      %v1458 = vpop.f32.mrf.mxu0
      %v1459 = vadd.f32 0.0, %v1458
      %1460 = vmatmul.f32.gmra.mxu0 %v1331
      %v1461 = vpop.f32.mrf.mxu0
      %v1462 = vadd.f32 0.0, %v1461
      %1463 = vmatmul.f32.gmra.mxu0 %v1332
      %v1464 = vpop.f32.mrf.mxu0
      %v1465 = vadd.f32 0.0, %v1464
      %1466 = vmatmul.f32.gmra.mxu0 %v1333
      %v1467 = vpop.f32.mrf.mxu0
      %v1468 = vadd.f32 0.0, %v1467
      %1469 = vmatmul.f32.gmra.mxu0 %v1334
      %v1470 = vpop.f32.mrf.mxu0
      %v1471 = vadd.f32 0.0, %v1470
      %1472 = vmatmul.f32.gmra.mxu0 %v1335
      %v1473 = vpop.f32.mrf.mxu0
      %v1474 = vadd.f32 0.0, %v1473
      %1475 = vmatmul.f32.gmra.mxu0 %v1336
      %v1476 = vpop.f32.mrf.mxu0
      %v1477 = vadd.f32 0.0, %v1476
      %1478 = vdwg.mxu0
      %v1479 = vadd.f32 %v1265, %v1372
      %v1480 = vadd.f32 %v1266, %v1375
      %v1481 = vadd.f32 %v1267, %v1378
      %v1482 = vadd.f32 %v1268, %v1381
      %v1483 = vadd.f32 %v1269, %v1384
      %v1484 = vadd.f32 %v1270, %v1387
      %v1485 = vadd.f32 %v1271, %v1390
      %v1486 = vadd.f32 %v1272, %v1393
      %v1487 = vadd.f32 %v1273, %v1396
      %v1488 = vadd.f32 %v1274, %v1399
      %v1489 = vadd.f32 %v1275, %v1402
      %v1490 = vadd.f32 %v1276, %v1405
      %v1491 = vadd.f32 %v1277, %v1408
      %v1492 = vadd.f32 %v1278, %v1411
      %v1493 = vadd.f32 %v1279, %v1414
      %v1494 = vadd.f32 %v1280, %v1417
      %v1495 = vadd.f32 %v1281, %v1420
      %v1496 = vadd.f32 %v1282, %v1423
      %v1497 = vadd.f32 %v1283, %v1426
      %v1498 = vadd.f32 %v1284, %v1429
      %v1499 = vadd.f32 %v1285, %v1432
      %v1500 = vadd.f32 %v1286, %v1435
      %v1501 = vadd.f32 %v1287, %v1438
      %v1502 = vadd.f32 %v1288, %v1441
      %v1503 = vadd.f32 %v1289, %v1444
      %v1504 = vadd.f32 %v1290, %v1447
      %v1505 = vadd.f32 %v1291, %v1450
      %v1506 = vadd.f32 %v1292, %v1453
      %v1507 = vadd.f32 %v1293, %v1456
      %v1508 = vadd.f32 %v1294, %v1459
      %v1509 = vadd.f32 %v1295, %v1462
      %v1510 = vadd.f32 %v1296, %v1465
      %v1511 = vadd.f32 %v1297, %v1468
      %v1512 = vadd.f32 %v1298, %v1471
      %v1513 = vadd.f32 %v1299, %v1474
      %v1514 = vadd.f32 %v1300, %v1477
      %v1515 = vld [vmem:[%s282 + $0x24] sm:$0xff]
      %v1516 = vld [vmem:[%s282 + $0x2c] sm:$0xff]
      %v1517 = vld [vmem:[%s282 + $0x34] sm:$0xff]
      %v1518 = vld [vmem:[%s282 + $0x3c] sm:$0xff]
      %v1519 = vld [vmem:[%s282 + $0x44] sm:$0xff]
      %v1520 = vld [vmem:[%s282 + $0x4c] sm:$0xff]
      %v1521 = vld [vmem:[%s282 + $0x54] sm:$0xff]
      %v1522 = vld [vmem:[%s282 + $0x5c] sm:$0xff]
      %v1523 = vld [vmem:[%s282 + $0x64] sm:$0xff]
      %v1524 = vld [vmem:[%s282 + $0x6c] sm:$0xff]
      %v1525 = vld [vmem:[%s282 + $0x74] sm:$0xff]
      %v1526 = vld [vmem:[%s282 + $0x7c] sm:$0xff]
      %v1527 = vld [vmem:[%s282 + $0x84] sm:$0xff]
      %v1528 = vld [vmem:[%s282 + $0x8c] sm:$0xff]
      %v1529 = vld [vmem:[%s282 + $0x94] sm:$0xff]
      %v1530 = vld [vmem:[%s282 + $0x9c] sm:$0xff]
      %v1531 = vld [vmem:[%s282 + $0xa4] sm:$0xff]
      %v1532 = vld [vmem:[%s282 + $0xac] sm:$0xff]
      %v1533 = vld [vmem:[%s282 + $0xb4] sm:$0xff]
      %v1534 = vld [vmem:[%s282 + $0xbc] sm:$0xff]
      %v1535 = vld [vmem:[%s282 + $0xc4] sm:$0xff]
      %v1536 = vld [vmem:[%s282 + $0xcc] sm:$0xff]
      %v1537 = vld [vmem:[%s282 + $0xd4] sm:$0xff]
      %v1538 = vld [vmem:[%s282 + $0xdc] sm:$0xff]
      %v1539 = vld [vmem:[%s282 + $0xe4] sm:$0xff]
      %v1540 = vld [vmem:[%s282 + $0xec] sm:$0xff]
      %v1541 = vld [vmem:[%s282 + $0xf4] sm:$0xff]
      %v1542 = vld [vmem:[%s282 + $0xfc] sm:$0xff]
      %v1543 = vld [vmem:[%s282 + $0x104] sm:$0xff]
      %v1544 = vld [vmem:[%s282 + $0x10c] sm:$0xff]
      %v1545 = vld [vmem:[%s282 + $0x114] sm:$0xff]
      %v1546 = vld [vmem:[%s282 + $0x11c] sm:$0xff]
      %v1547 = vld [vmem:[%s282 + $0x124] sm:$0xff]
      %v1548 = vld [vmem:[%s282 + $0x12c] sm:$0xff]
      %v1549 = vld [vmem:[%s282 + $0x134] sm:$0xff]
      %v1550 = vld [vmem:[%s282 + $0x13c] sm:$0xff]
      %s1551 = scalar_lea.vmem %s286, 768
      %v1552 = vld [vmem:[%s1551] sm:$0xff]
      %v1553 = vld [vmem:[%s1551 + $0x8] sm:$0xff]
      %v1554 = vld [vmem:[%s1551 + $0x10] sm:$0xff]
      %v1555 = vld [vmem:[%s1551 + $0x18] sm:$0xff]
      %v1556 = vld [vmem:[%s1551 + $0x20] sm:$0xff]
      %v1557 = vld [vmem:[%s1551 + $0x28] sm:$0xff]
      %v1558 = vld [vmem:[%s1551 + $0x30] sm:$0xff]
      %v1559 = vld [vmem:[%s1551 + $0x38] sm:$0xff]
      %v1560 = vld [vmem:[%s1551 + $0x40] sm:$0xff]
      %v1561 = vld [vmem:[%s1551 + $0x48] sm:$0xff]
      %v1562 = vld [vmem:[%s1551 + $0x50] sm:$0xff]
      %v1563 = vld [vmem:[%s1551 + $0x58] sm:$0xff]
      %v1564 = vld [vmem:[%s1551 + $0x60] sm:$0xff]
      %v1565 = vld [vmem:[%s1551 + $0x68] sm:$0xff]
      %v1566 = vld [vmem:[%s1551 + $0x70] sm:$0xff]
      %v1567 = vld [vmem:[%s1551 + $0x78] sm:$0xff]
      %1568 = vmatpush.msra.mxu0 %v1567
      %1569 = vmatpush.msra.mxu0 %v1566
      %1570 = vmatpush.msra.mxu0 %v1565
      %1571 = vmatpush.msra.mxu0 %v1564
      %1572 = vmatpush.msra.mxu0 %v1563
      %1573 = vmatpush.msra.mxu0 %v1562
      %1574 = vmatpush.msra.mxu0 %v1561
      %1575 = vmatpush.msra.mxu0 %v1560
      %1576 = vmatpush.msra.mxu0 %v1559
      %1577 = vmatpush.msra.mxu0 %v1558
      %1578 = vmatpush.msra.mxu0 %v1557
      %1579 = vmatpush.msra.mxu0 %v1556
      %1580 = vmatpush.msra.mxu0 %v1555
      %1581 = vmatpush.msra.mxu0 %v1554
      %1582 = vmatpush.msra.mxu0 %v1553
      %1583 = vmatpush.msra.mxu0 %v1552
      %1584 = vmatmul.f32.gmra.mxu0 %v1515
      %v1585 = vpop.f32.mrf.mxu0
      %v1586 = vadd.f32 0.0, %v1585
      %1587 = vmatmul.f32.gmra.mxu0 %v1516
      %v1588 = vpop.f32.mrf.mxu0
      %v1589 = vadd.f32 0.0, %v1588
      %1590 = vmatmul.f32.gmra.mxu0 %v1517
      %v1591 = vpop.f32.mrf.mxu0
      %v1592 = vadd.f32 0.0, %v1591
      %1593 = vmatmul.f32.gmra.mxu0 %v1518
      %v1594 = vpop.f32.mrf.mxu0
      %v1595 = vadd.f32 0.0, %v1594
      %1596 = vmatmul.f32.gmra.mxu0 %v1519
      %v1597 = vpop.f32.mrf.mxu0
      %v1598 = vadd.f32 0.0, %v1597
      %1599 = vmatmul.f32.gmra.mxu0 %v1520
      %v1600 = vpop.f32.mrf.mxu0
      %v1601 = vadd.f32 0.0, %v1600
      %1602 = vmatmul.f32.gmra.mxu0 %v1521
      %v1603 = vpop.f32.mrf.mxu0
      %v1604 = vadd.f32 0.0, %v1603
      %1605 = vmatmul.f32.gmra.mxu0 %v1522
      %v1606 = vpop.f32.mrf.mxu0
      %v1607 = vadd.f32 0.0, %v1606
      %1608 = vmatmul.f32.gmra.mxu0 %v1523
      %v1609 = vpop.f32.mrf.mxu0
      %v1610 = vadd.f32 0.0, %v1609
      %1611 = vmatmul.f32.gmra.mxu0 %v1524
      %v1612 = vpop.f32.mrf.mxu0
      %v1613 = vadd.f32 0.0, %v1612
      %1614 = vmatmul.f32.gmra.mxu0 %v1525
      %v1615 = vpop.f32.mrf.mxu0
      %v1616 = vadd.f32 0.0, %v1615
      %1617 = vmatmul.f32.gmra.mxu0 %v1526
      %v1618 = vpop.f32.mrf.mxu0
      %v1619 = vadd.f32 0.0, %v1618
      %1620 = vmatmul.f32.gmra.mxu0 %v1527
      %v1621 = vpop.f32.mrf.mxu0
      %v1622 = vadd.f32 0.0, %v1621
      %1623 = vmatmul.f32.gmra.mxu0 %v1528
      %v1624 = vpop.f32.mrf.mxu0
      %v1625 = vadd.f32 0.0, %v1624
      %1626 = vmatmul.f32.gmra.mxu0 %v1529
      %v1627 = vpop.f32.mrf.mxu0
      %v1628 = vadd.f32 0.0, %v1627
      %1629 = vmatmul.f32.gmra.mxu0 %v1530
      %v1630 = vpop.f32.mrf.mxu0
      %v1631 = vadd.f32 0.0, %v1630
      %1632 = vmatmul.f32.gmra.mxu0 %v1531
      %v1633 = vpop.f32.mrf.mxu0
      %v1634 = vadd.f32 0.0, %v1633
      %1635 = vmatmul.f32.gmra.mxu0 %v1532
      %v1636 = vpop.f32.mrf.mxu0
      %v1637 = vadd.f32 0.0, %v1636
      %1638 = vmatmul.f32.gmra.mxu0 %v1533
      %v1639 = vpop.f32.mrf.mxu0
      %v1640 = vadd.f32 0.0, %v1639
      %1641 = vmatmul.f32.gmra.mxu0 %v1534
      %v1642 = vpop.f32.mrf.mxu0
      %v1643 = vadd.f32 0.0, %v1642
      %1644 = vmatmul.f32.gmra.mxu0 %v1535
      %v1645 = vpop.f32.mrf.mxu0
      %v1646 = vadd.f32 0.0, %v1645
      %1647 = vmatmul.f32.gmra.mxu0 %v1536
      %v1648 = vpop.f32.mrf.mxu0
      %v1649 = vadd.f32 0.0, %v1648
      %1650 = vmatmul.f32.gmra.mxu0 %v1537
      %v1651 = vpop.f32.mrf.mxu0
      %v1652 = vadd.f32 0.0, %v1651
      %1653 = vmatmul.f32.gmra.mxu0 %v1538
      %v1654 = vpop.f32.mrf.mxu0
      %v1655 = vadd.f32 0.0, %v1654
      %1656 = vmatmul.f32.gmra.mxu0 %v1539
      %v1657 = vpop.f32.mrf.mxu0
      %v1658 = vadd.f32 0.0, %v1657
      %1659 = vmatmul.f32.gmra.mxu0 %v1540
      %v1660 = vpop.f32.mrf.mxu0
      %v1661 = vadd.f32 0.0, %v1660
      %1662 = vmatmul.f32.gmra.mxu0 %v1541
      %v1663 = vpop.f32.mrf.mxu0
      %v1664 = vadd.f32 0.0, %v1663
      %1665 = vmatmul.f32.gmra.mxu0 %v1542
      %v1666 = vpop.f32.mrf.mxu0
      %v1667 = vadd.f32 0.0, %v1666
      %1668 = vmatmul.f32.gmra.mxu0 %v1543
      %v1669 = vpop.f32.mrf.mxu0
      %v1670 = vadd.f32 0.0, %v1669
      %1671 = vmatmul.f32.gmra.mxu0 %v1544
      %v1672 = vpop.f32.mrf.mxu0
      %v1673 = vadd.f32 0.0, %v1672
      %1674 = vmatmul.f32.gmra.mxu0 %v1545
      %v1675 = vpop.f32.mrf.mxu0
      %v1676 = vadd.f32 0.0, %v1675
      %1677 = vmatmul.f32.gmra.mxu0 %v1546
      %v1678 = vpop.f32.mrf.mxu0
      %v1679 = vadd.f32 0.0, %v1678
      %1680 = vmatmul.f32.gmra.mxu0 %v1547
      %v1681 = vpop.f32.mrf.mxu0
      %v1682 = vadd.f32 0.0, %v1681
      %1683 = vmatmul.f32.gmra.mxu0 %v1548
      %v1684 = vpop.f32.mrf.mxu0
      %v1685 = vadd.f32 0.0, %v1684
      %1686 = vmatmul.f32.gmra.mxu0 %v1549
      %v1687 = vpop.f32.mrf.mxu0
      %v1688 = vadd.f32 0.0, %v1687
      %1689 = vmatmul.f32.gmra.mxu0 %v1550
      %v1690 = vpop.f32.mrf.mxu0
      %v1691 = vadd.f32 0.0, %v1690
      %1692 = vdwg.mxu0
      %v1693 = vadd.f32 %v1479, %v1586
      %v1694 = vadd.f32 %v1480, %v1589
      %v1695 = vadd.f32 %v1481, %v1592
      %v1696 = vadd.f32 %v1482, %v1595
      %v1697 = vadd.f32 %v1483, %v1598
      %v1698 = vadd.f32 %v1484, %v1601
      %v1699 = vadd.f32 %v1485, %v1604
      %v1700 = vadd.f32 %v1486, %v1607
      %v1701 = vadd.f32 %v1487, %v1610
      %v1702 = vadd.f32 %v1488, %v1613
      %v1703 = vadd.f32 %v1489, %v1616
      %v1704 = vadd.f32 %v1490, %v1619
      %v1705 = vadd.f32 %v1491, %v1622
      %v1706 = vadd.f32 %v1492, %v1625
      %v1707 = vadd.f32 %v1493, %v1628
      %v1708 = vadd.f32 %v1494, %v1631
      %v1709 = vadd.f32 %v1495, %v1634
      %v1710 = vadd.f32 %v1496, %v1637
      %v1711 = vadd.f32 %v1497, %v1640
      %v1712 = vadd.f32 %v1498, %v1643
      %v1713 = vadd.f32 %v1499, %v1646
      %v1714 = vadd.f32 %v1500, %v1649
      %v1715 = vadd.f32 %v1501, %v1652
      %v1716 = vadd.f32 %v1502, %v1655
      %v1717 = vadd.f32 %v1503, %v1658
      %v1718 = vadd.f32 %v1504, %v1661
      %v1719 = vadd.f32 %v1505, %v1664
      %v1720 = vadd.f32 %v1506, %v1667
      %v1721 = vadd.f32 %v1507, %v1670
      %v1722 = vadd.f32 %v1508, %v1673
      %v1723 = vadd.f32 %v1509, %v1676
      %v1724 = vadd.f32 %v1510, %v1679
      %v1725 = vadd.f32 %v1511, %v1682
      %v1726 = vadd.f32 %v1512, %v1685
      %v1727 = vadd.f32 %v1513, %v1688
      %v1728 = vadd.f32 %v1514, %v1691
      %v1729 = vld [vmem:[%s282 + $0x25] sm:$0xff]
      %v1730 = vld [vmem:[%s282 + $0x2d] sm:$0xff]
      %v1731 = vld [vmem:[%s282 + $0x35] sm:$0xff]
      %v1732 = vld [vmem:[%s282 + $0x3d] sm:$0xff]
      %v1733 = vld [vmem:[%s282 + $0x45] sm:$0xff]
      %v1734 = vld [vmem:[%s282 + $0x4d] sm:$0xff]
      %v1735 = vld [vmem:[%s282 + $0x55] sm:$0xff]
      %v1736 = vld [vmem:[%s282 + $0x5d] sm:$0xff]
      %v1737 = vld [vmem:[%s282 + $0x65] sm:$0xff]
      %v1738 = vld [vmem:[%s282 + $0x6d] sm:$0xff]
      %v1739 = vld [vmem:[%s282 + $0x75] sm:$0xff]
      %v1740 = vld [vmem:[%s282 + $0x7d] sm:$0xff]
      %v1741 = vld [vmem:[%s282 + $0x85] sm:$0xff]
      %v1742 = vld [vmem:[%s282 + $0x8d] sm:$0xff]
      %v1743 = vld [vmem:[%s282 + $0x95] sm:$0xff]
      %v1744 = vld [vmem:[%s282 + $0x9d] sm:$0xff]
      %v1745 = vld [vmem:[%s282 + $0xa5] sm:$0xff]
      %v1746 = vld [vmem:[%s282 + $0xad] sm:$0xff]
      %v1747 = vld [vmem:[%s282 + $0xb5] sm:$0xff]
      %v1748 = vld [vmem:[%s282 + $0xbd] sm:$0xff]
      %v1749 = vld [vmem:[%s282 + $0xc5] sm:$0xff]
      %v1750 = vld [vmem:[%s282 + $0xcd] sm:$0xff]
      %v1751 = vld [vmem:[%s282 + $0xd5] sm:$0xff]
      %v1752 = vld [vmem:[%s282 + $0xdd] sm:$0xff]
      %v1753 = vld [vmem:[%s282 + $0xe5] sm:$0xff]
      %v1754 = vld [vmem:[%s282 + $0xed] sm:$0xff]
      %v1755 = vld [vmem:[%s282 + $0xf5] sm:$0xff]
      %v1756 = vld [vmem:[%s282 + $0xfd] sm:$0xff]
      %v1757 = vld [vmem:[%s282 + $0x105] sm:$0xff]
      %v1758 = vld [vmem:[%s282 + $0x10d] sm:$0xff]
      %v1759 = vld [vmem:[%s282 + $0x115] sm:$0xff]
      %v1760 = vld [vmem:[%s282 + $0x11d] sm:$0xff]
      %v1761 = vld [vmem:[%s282 + $0x125] sm:$0xff]
      %v1762 = vld [vmem:[%s282 + $0x12d] sm:$0xff]
      %v1763 = vld [vmem:[%s282 + $0x135] sm:$0xff]
      %v1764 = vld [vmem:[%s282 + $0x13d] sm:$0xff]
      %s1765 = scalar_lea.vmem %s286, 896
      %v1766 = vld [vmem:[%s1765] sm:$0xff]
      %v1767 = vld [vmem:[%s1765 + $0x8] sm:$0xff]
      %v1768 = vld [vmem:[%s1765 + $0x10] sm:$0xff]
      %v1769 = vld [vmem:[%s1765 + $0x18] sm:$0xff]
      %v1770 = vld [vmem:[%s1765 + $0x20] sm:$0xff]
      %v1771 = vld [vmem:[%s1765 + $0x28] sm:$0xff]
      %v1772 = vld [vmem:[%s1765 + $0x30] sm:$0xff]
      %v1773 = vld [vmem:[%s1765 + $0x38] sm:$0xff]
      %v1774 = vld [vmem:[%s1765 + $0x40] sm:$0xff]
      %v1775 = vld [vmem:[%s1765 + $0x48] sm:$0xff]
      %v1776 = vld [vmem:[%s1765 + $0x50] sm:$0xff]
      %v1777 = vld [vmem:[%s1765 + $0x58] sm:$0xff]
      %v1778 = vld [vmem:[%s1765 + $0x60] sm:$0xff]
      %v1779 = vld [vmem:[%s1765 + $0x68] sm:$0xff]
      %v1780 = vld [vmem:[%s1765 + $0x70] sm:$0xff]
      %v1781 = vld [vmem:[%s1765 + $0x78] sm:$0xff]
      %1782 = vmatpush.msra.mxu0 %v1781
      %1783 = vmatpush.msra.mxu0 %v1780
      %1784 = vmatpush.msra.mxu0 %v1779
      %1785 = vmatpush.msra.mxu0 %v1778
      %1786 = vmatpush.msra.mxu0 %v1777
      %1787 = vmatpush.msra.mxu0 %v1776
      %1788 = vmatpush.msra.mxu0 %v1775
      %1789 = vmatpush.msra.mxu0 %v1774
      %1790 = vmatpush.msra.mxu0 %v1773
      %1791 = vmatpush.msra.mxu0 %v1772
      %1792 = vmatpush.msra.mxu0 %v1771
      %1793 = vmatpush.msra.mxu0 %v1770
      %1794 = vmatpush.msra.mxu0 %v1769
      %1795 = vmatpush.msra.mxu0 %v1768
      %1796 = vmatpush.msra.mxu0 %v1767
      %1797 = vmatpush.msra.mxu0 %v1766
      %1798 = vmatmul.f32.gmra.mxu0 %v1729
      %v1799 = vpop.f32.mrf.mxu0
      %v1800 = vadd.f32 0.0, %v1799
      %1801 = vmatmul.f32.gmra.mxu0 %v1730
      %v1802 = vpop.f32.mrf.mxu0
      %v1803 = vadd.f32 0.0, %v1802
      %1804 = vmatmul.f32.gmra.mxu0 %v1731
      %v1805 = vpop.f32.mrf.mxu0
      %v1806 = vadd.f32 0.0, %v1805
      %1807 = vmatmul.f32.gmra.mxu0 %v1732
      %v1808 = vpop.f32.mrf.mxu0
      %v1809 = vadd.f32 0.0, %v1808
      %1810 = vmatmul.f32.gmra.mxu0 %v1733
      %v1811 = vpop.f32.mrf.mxu0
      %v1812 = vadd.f32 0.0, %v1811
      %1813 = vmatmul.f32.gmra.mxu0 %v1734
      %v1814 = vpop.f32.mrf.mxu0
      %v1815 = vadd.f32 0.0, %v1814
      %1816 = vmatmul.f32.gmra.mxu0 %v1735
      %v1817 = vpop.f32.mrf.mxu0
      %v1818 = vadd.f32 0.0, %v1817
      %1819 = vmatmul.f32.gmra.mxu0 %v1736
      %v1820 = vpop.f32.mrf.mxu0
      %v1821 = vadd.f32 0.0, %v1820
      %1822 = vmatmul.f32.gmra.mxu0 %v1737
      %v1823 = vpop.f32.mrf.mxu0
      %v1824 = vadd.f32 0.0, %v1823
      %1825 = vmatmul.f32.gmra.mxu0 %v1738
      %v1826 = vpop.f32.mrf.mxu0
      %v1827 = vadd.f32 0.0, %v1826
      %1828 = vmatmul.f32.gmra.mxu0 %v1739
      %v1829 = vpop.f32.mrf.mxu0
      %v1830 = vadd.f32 0.0, %v1829
      %1831 = vmatmul.f32.gmra.mxu0 %v1740
      %v1832 = vpop.f32.mrf.mxu0
      %v1833 = vadd.f32 0.0, %v1832
      %1834 = vmatmul.f32.gmra.mxu0 %v1741
      %v1835 = vpop.f32.mrf.mxu0
      %v1836 = vadd.f32 0.0, %v1835
      %1837 = vmatmul.f32.gmra.mxu0 %v1742
      %v1838 = vpop.f32.mrf.mxu0
      %v1839 = vadd.f32 0.0, %v1838
      %1840 = vmatmul.f32.gmra.mxu0 %v1743
      %v1841 = vpop.f32.mrf.mxu0
      %v1842 = vadd.f32 0.0, %v1841
      %1843 = vmatmul.f32.gmra.mxu0 %v1744
      %v1844 = vpop.f32.mrf.mxu0
      %v1845 = vadd.f32 0.0, %v1844
      %1846 = vmatmul.f32.gmra.mxu0 %v1745
      %v1847 = vpop.f32.mrf.mxu0
      %v1848 = vadd.f32 0.0, %v1847
      %1849 = vmatmul.f32.gmra.mxu0 %v1746
      %v1850 = vpop.f32.mrf.mxu0
      %v1851 = vadd.f32 0.0, %v1850
      %1852 = vmatmul.f32.gmra.mxu0 %v1747
      %v1853 = vpop.f32.mrf.mxu0
      %v1854 = vadd.f32 0.0, %v1853
      %1855 = vmatmul.f32.gmra.mxu0 %v1748
      %v1856 = vpop.f32.mrf.mxu0
      %v1857 = vadd.f32 0.0, %v1856
      %1858 = vmatmul.f32.gmra.mxu0 %v1749
      %v1859 = vpop.f32.mrf.mxu0
      %v1860 = vadd.f32 0.0, %v1859
      %1861 = vmatmul.f32.gmra.mxu0 %v1750
      %v1862 = vpop.f32.mrf.mxu0
      %v1863 = vadd.f32 0.0, %v1862
      %1864 = vmatmul.f32.gmra.mxu0 %v1751
      %v1865 = vpop.f32.mrf.mxu0
      %v1866 = vadd.f32 0.0, %v1865
      %1867 = vmatmul.f32.gmra.mxu0 %v1752
      %v1868 = vpop.f32.mrf.mxu0
      %v1869 = vadd.f32 0.0, %v1868
      %1870 = vmatmul.f32.gmra.mxu0 %v1753
      %v1871 = vpop.f32.mrf.mxu0
      %v1872 = vadd.f32 0.0, %v1871
      %1873 = vmatmul.f32.gmra.mxu0 %v1754
      %v1874 = vpop.f32.mrf.mxu0
      %v1875 = vadd.f32 0.0, %v1874
      %1876 = vmatmul.f32.gmra.mxu0 %v1755
      %v1877 = vpop.f32.mrf.mxu0
      %v1878 = vadd.f32 0.0, %v1877
      %1879 = vmatmul.f32.gmra.mxu0 %v1756
      %v1880 = vpop.f32.mrf.mxu0
      %v1881 = vadd.f32 0.0, %v1880
      %1882 = vmatmul.f32.gmra.mxu0 %v1757
      %v1883 = vpop.f32.mrf.mxu0
      %v1884 = vadd.f32 0.0, %v1883
      %1885 = vmatmul.f32.gmra.mxu0 %v1758
      %v1886 = vpop.f32.mrf.mxu0
      %v1887 = vadd.f32 0.0, %v1886
      %1888 = vmatmul.f32.gmra.mxu0 %v1759
      %v1889 = vpop.f32.mrf.mxu0
      %v1890 = vadd.f32 0.0, %v1889
      %1891 = vmatmul.f32.gmra.mxu0 %v1760
      %v1892 = vpop.f32.mrf.mxu0
      %v1893 = vadd.f32 0.0, %v1892
      %1894 = vmatmul.f32.gmra.mxu0 %v1761
      %v1895 = vpop.f32.mrf.mxu0
      %v1896 = vadd.f32 0.0, %v1895
      %1897 = vmatmul.f32.gmra.mxu0 %v1762
      %v1898 = vpop.f32.mrf.mxu0
      %v1899 = vadd.f32 0.0, %v1898
      %1900 = vmatmul.f32.gmra.mxu0 %v1763
      %v1901 = vpop.f32.mrf.mxu0
      %v1902 = vadd.f32 0.0, %v1901
      %1903 = vmatmul.f32.gmra.mxu0 %v1764
      %v1904 = vpop.f32.mrf.mxu0
      %v1905 = vadd.f32 0.0, %v1904
      %1906 = vdwg.mxu0
      %v1907 = vadd.f32 %v1693, %v1800
      %v1908 = vadd.f32 %v1694, %v1803
      %v1909 = vadd.f32 %v1695, %v1806
      %v1910 = vadd.f32 %v1696, %v1809
      %v1911 = vadd.f32 %v1697, %v1812
      %v1912 = vadd.f32 %v1698, %v1815
      %v1913 = vadd.f32 %v1699, %v1818
      %v1914 = vadd.f32 %v1700, %v1821
      %v1915 = vadd.f32 %v1701, %v1824
      %v1916 = vadd.f32 %v1702, %v1827
      %v1917 = vadd.f32 %v1703, %v1830
      %v1918 = vadd.f32 %v1704, %v1833
      %v1919 = vadd.f32 %v1705, %v1836
      %v1920 = vadd.f32 %v1706, %v1839
      %v1921 = vadd.f32 %v1707, %v1842
      %v1922 = vadd.f32 %v1708, %v1845
      %v1923 = vadd.f32 %v1709, %v1848
      %v1924 = vadd.f32 %v1710, %v1851
      %v1925 = vadd.f32 %v1711, %v1854
      %v1926 = vadd.f32 %v1712, %v1857
      %v1927 = vadd.f32 %v1713, %v1860
      %v1928 = vadd.f32 %v1714, %v1863
      %v1929 = vadd.f32 %v1715, %v1866
      %v1930 = vadd.f32 %v1716, %v1869
      %v1931 = vadd.f32 %v1717, %v1872
      %v1932 = vadd.f32 %v1718, %v1875
      %v1933 = vadd.f32 %v1719, %v1878
      %v1934 = vadd.f32 %v1720, %v1881
      %v1935 = vadd.f32 %v1721, %v1884
      %v1936 = vadd.f32 %v1722, %v1887
      %v1937 = vadd.f32 %v1723, %v1890
      %v1938 = vadd.f32 %v1724, %v1893
      %v1939 = vadd.f32 %v1725, %v1896
      %v1940 = vadd.f32 %v1726, %v1899
      %v1941 = vadd.f32 %v1727, %v1902
      %v1942 = vadd.f32 %v1728, %v1905
      %v1943 = vld [vmem:[%s282 + $0x26] sm:$0xff]
      %v1944 = vld [vmem:[%s282 + $0x2e] sm:$0xff]
      %v1945 = vld [vmem:[%s282 + $0x36] sm:$0xff]
      %v1946 = vld [vmem:[%s282 + $0x3e] sm:$0xff]
      %v1947 = vld [vmem:[%s282 + $0x46] sm:$0xff]
      %v1948 = vld [vmem:[%s282 + $0x4e] sm:$0xff]
      %v1949 = vld [vmem:[%s282 + $0x56] sm:$0xff]
      %v1950 = vld [vmem:[%s282 + $0x5e] sm:$0xff]
      %v1951 = vld [vmem:[%s282 + $0x66] sm:$0xff]
      %v1952 = vld [vmem:[%s282 + $0x6e] sm:$0xff]
      %v1953 = vld [vmem:[%s282 + $0x76] sm:$0xff]
      %v1954 = vld [vmem:[%s282 + $0x7e] sm:$0xff]
      %v1955 = vld [vmem:[%s282 + $0x86] sm:$0xff]
      %v1956 = vld [vmem:[%s282 + $0x8e] sm:$0xff]
      %v1957 = vld [vmem:[%s282 + $0x96] sm:$0xff]
      %v1958 = vld [vmem:[%s282 + $0x9e] sm:$0xff]
      %v1959 = vld [vmem:[%s282 + $0xa6] sm:$0xff]
      %v1960 = vld [vmem:[%s282 + $0xae] sm:$0xff]
      %v1961 = vld [vmem:[%s282 + $0xb6] sm:$0xff]
      %v1962 = vld [vmem:[%s282 + $0xbe] sm:$0xff]
      %v1963 = vld [vmem:[%s282 + $0xc6] sm:$0xff]
      %v1964 = vld [vmem:[%s282 + $0xce] sm:$0xff]
      %v1965 = vld [vmem:[%s282 + $0xd6] sm:$0xff]
      %v1966 = vld [vmem:[%s282 + $0xde] sm:$0xff]
      %v1967 = vld [vmem:[%s282 + $0xe6] sm:$0xff]
      %v1968 = vld [vmem:[%s282 + $0xee] sm:$0xff]
      %v1969 = vld [vmem:[%s282 + $0xf6] sm:$0xff]
      %v1970 = vld [vmem:[%s282 + $0xfe] sm:$0xff]
      %v1971 = vld [vmem:[%s282 + $0x106] sm:$0xff]
      %v1972 = vld [vmem:[%s282 + $0x10e] sm:$0xff]
      %v1973 = vld [vmem:[%s282 + $0x116] sm:$0xff]
      %v1974 = vld [vmem:[%s282 + $0x11e] sm:$0xff]
      %v1975 = vld [vmem:[%s282 + $0x126] sm:$0xff]
      %v1976 = vld [vmem:[%s282 + $0x12e] sm:$0xff]
      %v1977 = vld [vmem:[%s282 + $0x136] sm:$0xff]
      %v1978 = vld [vmem:[%s282 + $0x13e] sm:$0xff]
      %s1979 = scalar_lea.vmem %s286, 1024
      %v1980 = vld [vmem:[%s1979] sm:$0xff]
      %v1981 = vld [vmem:[%s1979 + $0x8] sm:$0xff]
      %v1982 = vld [vmem:[%s1979 + $0x10] sm:$0xff]
      %v1983 = vld [vmem:[%s1979 + $0x18] sm:$0xff]
      %v1984 = vld [vmem:[%s1979 + $0x20] sm:$0xff]
      %v1985 = vld [vmem:[%s1979 + $0x28] sm:$0xff]
      %v1986 = vld [vmem:[%s1979 + $0x30] sm:$0xff]
      %v1987 = vld [vmem:[%s1979 + $0x38] sm:$0xff]
      %v1988 = vld [vmem:[%s1979 + $0x40] sm:$0xff]
      %v1989 = vld [vmem:[%s1979 + $0x48] sm:$0xff]
      %v1990 = vld [vmem:[%s1979 + $0x50] sm:$0xff]
      %v1991 = vld [vmem:[%s1979 + $0x58] sm:$0xff]
      %v1992 = vld [vmem:[%s1979 + $0x60] sm:$0xff]
      %v1993 = vld [vmem:[%s1979 + $0x68] sm:$0xff]
      %v1994 = vld [vmem:[%s1979 + $0x70] sm:$0xff]
      %v1995 = vld [vmem:[%s1979 + $0x78] sm:$0xff]
      %1996 = vmatpush.msra.mxu0 %v1995
      %1997 = vmatpush.msra.mxu0 %v1994
      %1998 = vmatpush.msra.mxu0 %v1993
      %1999 = vmatpush.msra.mxu0 %v1992
      %2000 = vmatpush.msra.mxu0 %v1991
      %2001 = vmatpush.msra.mxu0 %v1990
      %2002 = vmatpush.msra.mxu0 %v1989
      %2003 = vmatpush.msra.mxu0 %v1988
      %2004 = vmatpush.msra.mxu0 %v1987
      %2005 = vmatpush.msra.mxu0 %v1986
      %2006 = vmatpush.msra.mxu0 %v1985
      %2007 = vmatpush.msra.mxu0 %v1984
      %2008 = vmatpush.msra.mxu0 %v1983
      %2009 = vmatpush.msra.mxu0 %v1982
      %2010 = vmatpush.msra.mxu0 %v1981
      %2011 = vmatpush.msra.mxu0 %v1980
      %2012 = vmatmul.f32.gmra.mxu0 %v1943
      %v2013 = vpop.f32.mrf.mxu0
      %v2014 = vadd.f32 0.0, %v2013
      %2015 = vmatmul.f32.gmra.mxu0 %v1944
      %v2016 = vpop.f32.mrf.mxu0
      %v2017 = vadd.f32 0.0, %v2016
      %2018 = vmatmul.f32.gmra.mxu0 %v1945
      %v2019 = vpop.f32.mrf.mxu0
      %v2020 = vadd.f32 0.0, %v2019
      %2021 = vmatmul.f32.gmra.mxu0 %v1946
      %v2022 = vpop.f32.mrf.mxu0
      %v2023 = vadd.f32 0.0, %v2022
      %2024 = vmatmul.f32.gmra.mxu0 %v1947
      %v2025 = vpop.f32.mrf.mxu0
      %v2026 = vadd.f32 0.0, %v2025
      %2027 = vmatmul.f32.gmra.mxu0 %v1948
      %v2028 = vpop.f32.mrf.mxu0
      %v2029 = vadd.f32 0.0, %v2028
      %2030 = vmatmul.f32.gmra.mxu0 %v1949
      %v2031 = vpop.f32.mrf.mxu0
      %v2032 = vadd.f32 0.0, %v2031
      %2033 = vmatmul.f32.gmra.mxu0 %v1950
      %v2034 = vpop.f32.mrf.mxu0
      %v2035 = vadd.f32 0.0, %v2034
      %2036 = vmatmul.f32.gmra.mxu0 %v1951
      %v2037 = vpop.f32.mrf.mxu0
      %v2038 = vadd.f32 0.0, %v2037
      %2039 = vmatmul.f32.gmra.mxu0 %v1952
      %v2040 = vpop.f32.mrf.mxu0
      %v2041 = vadd.f32 0.0, %v2040
      %2042 = vmatmul.f32.gmra.mxu0 %v1953
      %v2043 = vpop.f32.mrf.mxu0
      %v2044 = vadd.f32 0.0, %v2043
      %2045 = vmatmul.f32.gmra.mxu0 %v1954
      %v2046 = vpop.f32.mrf.mxu0
      %v2047 = vadd.f32 0.0, %v2046
      %2048 = vmatmul.f32.gmra.mxu0 %v1955
      %v2049 = vpop.f32.mrf.mxu0
      %v2050 = vadd.f32 0.0, %v2049
      %2051 = vmatmul.f32.gmra.mxu0 %v1956
      %v2052 = vpop.f32.mrf.mxu0
      %v2053 = vadd.f32 0.0, %v2052
      %2054 = vmatmul.f32.gmra.mxu0 %v1957
      %v2055 = vpop.f32.mrf.mxu0
      %v2056 = vadd.f32 0.0, %v2055
      %2057 = vmatmul.f32.gmra.mxu0 %v1958
      %v2058 = vpop.f32.mrf.mxu0
      %v2059 = vadd.f32 0.0, %v2058
      %2060 = vmatmul.f32.gmra.mxu0 %v1959
      %v2061 = vpop.f32.mrf.mxu0
      %v2062 = vadd.f32 0.0, %v2061
      %2063 = vmatmul.f32.gmra.mxu0 %v1960
      %v2064 = vpop.f32.mrf.mxu0
      %v2065 = vadd.f32 0.0, %v2064
      %2066 = vmatmul.f32.gmra.mxu0 %v1961
      %v2067 = vpop.f32.mrf.mxu0
      %v2068 = vadd.f32 0.0, %v2067
      %2069 = vmatmul.f32.gmra.mxu0 %v1962
      %v2070 = vpop.f32.mrf.mxu0
      %v2071 = vadd.f32 0.0, %v2070
      %2072 = vmatmul.f32.gmra.mxu0 %v1963
      %v2073 = vpop.f32.mrf.mxu0
      %v2074 = vadd.f32 0.0, %v2073
      %2075 = vmatmul.f32.gmra.mxu0 %v1964
      %v2076 = vpop.f32.mrf.mxu0
      %v2077 = vadd.f32 0.0, %v2076
      %2078 = vmatmul.f32.gmra.mxu0 %v1965
      %v2079 = vpop.f32.mrf.mxu0
      %v2080 = vadd.f32 0.0, %v2079
      %2081 = vmatmul.f32.gmra.mxu0 %v1966
      %v2082 = vpop.f32.mrf.mxu0
      %v2083 = vadd.f32 0.0, %v2082
      %2084 = vmatmul.f32.gmra.mxu0 %v1967
      %v2085 = vpop.f32.mrf.mxu0
      %v2086 = vadd.f32 0.0, %v2085
      %2087 = vmatmul.f32.gmra.mxu0 %v1968
      %v2088 = vpop.f32.mrf.mxu0
      %v2089 = vadd.f32 0.0, %v2088
      %2090 = vmatmul.f32.gmra.mxu0 %v1969
      %v2091 = vpop.f32.mrf.mxu0
      %v2092 = vadd.f32 0.0, %v2091
      %2093 = vmatmul.f32.gmra.mxu0 %v1970
      %v2094 = vpop.f32.mrf.mxu0
      %v2095 = vadd.f32 0.0, %v2094
      %2096 = vmatmul.f32.gmra.mxu0 %v1971
      %v2097 = vpop.f32.mrf.mxu0
      %v2098 = vadd.f32 0.0, %v2097
      %2099 = vmatmul.f32.gmra.mxu0 %v1972
      %v2100 = vpop.f32.mrf.mxu0
      %v2101 = vadd.f32 0.0, %v2100
      %2102 = vmatmul.f32.gmra.mxu0 %v1973
      %v2103 = vpop.f32.mrf.mxu0
      %v2104 = vadd.f32 0.0, %v2103
      %2105 = vmatmul.f32.gmra.mxu0 %v1974
      %v2106 = vpop.f32.mrf.mxu0
      %v2107 = vadd.f32 0.0, %v2106
      %2108 = vmatmul.f32.gmra.mxu0 %v1975
      %v2109 = vpop.f32.mrf.mxu0
      %v2110 = vadd.f32 0.0, %v2109
      %2111 = vmatmul.f32.gmra.mxu0 %v1976
      %v2112 = vpop.f32.mrf.mxu0
      %v2113 = vadd.f32 0.0, %v2112
      %2114 = vmatmul.f32.gmra.mxu0 %v1977
      %v2115 = vpop.f32.mrf.mxu0
      %v2116 = vadd.f32 0.0, %v2115
      %2117 = vmatmul.f32.gmra.mxu0 %v1978
      %v2118 = vpop.f32.mrf.mxu0
      %v2119 = vadd.f32 0.0, %v2118
      %2120 = vdwg.mxu0
      %v2121 = vadd.f32 %v1907, %v2014
      %v2122 = vadd.f32 %v1908, %v2017
      %v2123 = vadd.f32 %v1909, %v2020
      %v2124 = vadd.f32 %v1910, %v2023
      %v2125 = vadd.f32 %v1911, %v2026
      %v2126 = vadd.f32 %v1912, %v2029
      %v2127 = vadd.f32 %v1913, %v2032
      %v2128 = vadd.f32 %v1914, %v2035
      %v2129 = vadd.f32 %v1915, %v2038
      %v2130 = vadd.f32 %v1916, %v2041
      %v2131 = vadd.f32 %v1917, %v2044
      %v2132 = vadd.f32 %v1918, %v2047
      %v2133 = vadd.f32 %v1919, %v2050
      %v2134 = vadd.f32 %v1920, %v2053
      %v2135 = vadd.f32 %v1921, %v2056
      %v2136 = vadd.f32 %v1922, %v2059
      %v2137 = vadd.f32 %v1923, %v2062
      %v2138 = vadd.f32 %v1924, %v2065
      %v2139 = vadd.f32 %v1925, %v2068
      %v2140 = vadd.f32 %v1926, %v2071
      %v2141 = vadd.f32 %v1927, %v2074
      %v2142 = vadd.f32 %v1928, %v2077
      %v2143 = vadd.f32 %v1929, %v2080
      %v2144 = vadd.f32 %v1930, %v2083
      %v2145 = vadd.f32 %v1931, %v2086
      %v2146 = vadd.f32 %v1932, %v2089
      %v2147 = vadd.f32 %v1933, %v2092
      %v2148 = vadd.f32 %v1934, %v2095
      %v2149 = vadd.f32 %v1935, %v2098
      %v2150 = vadd.f32 %v1936, %v2101
      %v2151 = vadd.f32 %v1937, %v2104
      %v2152 = vadd.f32 %v1938, %v2107
      %v2153 = vadd.f32 %v1939, %v2110
      %v2154 = vadd.f32 %v1940, %v2113
      %v2155 = vadd.f32 %v1941, %v2116
      %v2156 = vadd.f32 %v1942, %v2119
      %v2157 = vld [vmem:[%s289] sm:$0x1]
      %v2159 = vperm.slane %v2157, 0
      %v2161 = vadd.f32 %v2121, %v2159
      %v2162 = vadd.f32 %v2122, %v2159
      %v2163 = vadd.f32 %v2123, %v2159
      %v2164 = vadd.f32 %v2124, %v2159
      %v2165 = vadd.f32 %v2125, %v2159
      %v2166 = vadd.f32 %v2126, %v2159
      %v2167 = vadd.f32 %v2127, %v2159
      %v2168 = vadd.f32 %v2128, %v2159
      %v2169 = vadd.f32 %v2129, %v2159
      %v2170 = vadd.f32 %v2130, %v2159
      %v2171 = vadd.f32 %v2131, %v2159
      %v2172 = vadd.f32 %v2132, %v2159
      %v2173 = vadd.f32 %v2133, %v2159
      %v2174 = vadd.f32 %v2134, %v2159
      %v2175 = vadd.f32 %v2135, %v2159
      %v2176 = vadd.f32 %v2136, %v2159
      %v2177 = vadd.f32 %v2137, %v2159
      %v2178 = vadd.f32 %v2138, %v2159
      %v2179 = vadd.f32 %v2139, %v2159
      %v2180 = vadd.f32 %v2140, %v2159
      %v2181 = vadd.f32 %v2141, %v2159
      %v2182 = vadd.f32 %v2142, %v2159
      %v2183 = vadd.f32 %v2143, %v2159
      %v2184 = vadd.f32 %v2144, %v2159
      %v2185 = vadd.f32 %v2145, %v2159
      %v2186 = vadd.f32 %v2146, %v2159
      %v2187 = vadd.f32 %v2147, %v2159
      %v2188 = vadd.f32 %v2148, %v2159
      %v2189 = vadd.f32 %v2149, %v2159
      %v2190 = vadd.f32 %v2150, %v2159
      %v2191 = vadd.f32 %v2151, %v2159
      %v2192 = vadd.f32 %v2152, %v2159
      %v2193 = vadd.f32 %v2153, %v2159
      %v2194 = vadd.f32 %v2154, %v2159
      %v2195 = vadd.f32 %v2155, %v2159
      %v2196 = vadd.f32 %v2156, %v2159
      %v2197 = vlaneseq
      %v2198 = vshrl.u32 %v2197, 7
      %v2199 = vadd.s32 %v2198, 8
      %v2200 = vadd.s32 %v2198, 16
      %v2201 = vadd.s32 %v2198, 24
      %v2202 = vadd.s32 %v2198, 32
      %v2203 = vadd.s32 %v2198, 40
      %v2204 = vadd.s32 %v2198, 48
      %v2205 = vadd.s32 %v2198, 56
      %v2206 = vadd.s32 %v2198, 64
      %v2207 = vadd.s32 %v2198, 72
      %v2208 = vadd.s32 %v2198, 80
      %v2209 = vadd.s32 %v2198, 88
      %v2210 = vadd.s32 %v2198, 96
      %v2211 = vadd.s32 %v2198, 104
      %v2212 = vadd.s32 %v2198, 112
      %v2213 = vadd.s32 %v2198, 120
      %v2214 = vadd.s32 %v2198, 128
      %v2215 = vadd.s32 %v2198, 136
      %v2216 = vadd.s32 %v2198, 144
      %v2217 = vadd.s32 %v2198, 152
      %v2218 = vadd.s32 %v2198, 160
      %v2219 = vadd.s32 %v2198, 168
      %v2220 = vadd.s32 %v2198, 176
      %v2221 = vadd.s32 %v2198, 184
      %v2222 = vadd.s32 %v2198, 192
      %v2223 = vadd.s32 %v2198, 200
      %v2224 = vadd.s32 %v2198, 208
      %v2225 = vadd.s32 %v2198, 216
      %v2226 = vadd.s32 %v2198, 224
      %v2227 = vadd.s32 %v2198, 232
      %v2228 = vadd.s32 %v2198, 240
      %v2229 = vadd.s32 %v2198, 248
      %v2230 = vadd.s32 %v2198, 256
      %v2231 = vadd.s32 %v2198, 264
      %v2232 = vadd.s32 %v2198, 272
      %v2233 = vadd.s32 %v2198, 280
      %vm2234 = vcmp.lt.s32.totalorder %v2198, 0
      %v2235 = vsub.s32 0, %v2198
      %v2236 = vsel %vm2234, %v2235, %v2198
      %v2237 = vand.u32 %v2236, 65535
      %v2238 = vshrl.u32 %v2236, 16
      %v2240 = vmul.u32 %v2237, 14564
      %v2241 = vmul.u32 %v2237, 58254
      %v2242 = vmul.u32 %v2238, 14564
      %v2243 = vmul.u32 %v2238, 58254
      %v2244 = vshll.u32 %v2241, 16
      %v2245 = vshrl.u32 %v2241, 16
      %v2246 = vshll.u32 %v2242, 16
      %v2247 = vshrl.u32 %v2242, 16
      %vm2248 = vc.u32 %v2240, %v2244
      %v2249 = vsel %vm2248, 1, 0
      %v2250 = vadd.s32 %v2240, %v2244
      %v2251 = vadd.s32 %v2243, %v2249
      %vm2252 = vc.u32 %v2250, %v2246
      %v2253 = vsel %vm2252, 1, 0
      %v2254 = vadd.s32 %v2250, %v2246
      %v2255 = vadd.s32 %v2251, %v2253
      %v2256 = vadd.s32 %v2255, %v2245
      %v2257 = vadd.s32 %v2256, %v2247
      %v2258 = vshrl.u32 %v2257, 4
      %v2259 = vmul.u32 %v2258, 18
      %v2260 = vsub.s32 %v2236, %v2259
      %v2261 = vsub.s32 0, %v2260
      %v2262 = vsel %vm2234, %v2261, %v2260
      %vm2263 = vcmp.lt.s32.totalorder %v2199, 0
      %v2264 = vsub.s32 0, %v2199
      %v2265 = vsel %vm2263, %v2264, %v2199
      %v2266 = vand.u32 %v2265, 65535
      %v2267 = vshrl.u32 %v2265, 16
      %v2269 = vmul.u32 %v2266, 14564
      %v2270 = vmul.u32 %v2266, 58254
      %v2271 = vmul.u32 %v2267, 14564
      %v2272 = vmul.u32 %v2267, 58254
      %v2273 = vshll.u32 %v2270, 16
      %v2274 = vshrl.u32 %v2270, 16
      %v2275 = vshll.u32 %v2271, 16
      %v2276 = vshrl.u32 %v2271, 16
      %vm2277 = vc.u32 %v2269, %v2273
      %v2278 = vsel %vm2277, 1, 0
      %v2279 = vadd.s32 %v2269, %v2273
      %v2280 = vadd.s32 %v2272, %v2278
      %vm2281 = vc.u32 %v2279, %v2275
      %v2282 = vsel %vm2281, 1, 0
      %v2283 = vadd.s32 %v2279, %v2275
      %v2284 = vadd.s32 %v2280, %v2282
      %v2285 = vadd.s32 %v2284, %v2274
      %v2286 = vadd.s32 %v2285, %v2276
      %v2287 = vshrl.u32 %v2286, 4
      %v2288 = vmul.u32 %v2287, 18
      %v2289 = vsub.s32 %v2265, %v2288
      %v2290 = vsub.s32 0, %v2289
      %v2291 = vsel %vm2263, %v2290, %v2289
      %vm2292 = vcmp.lt.s32.totalorder %v2200, 0
      %v2293 = vsub.s32 0, %v2200
      %v2294 = vsel %vm2292, %v2293, %v2200
      %v2295 = vand.u32 %v2294, 65535
      %v2296 = vshrl.u32 %v2294, 16
      %v2298 = vmul.u32 %v2295, 14564
      %v2299 = vmul.u32 %v2295, 58254
      %v2300 = vmul.u32 %v2296, 14564
      %v2301 = vmul.u32 %v2296, 58254
      %v2302 = vshll.u32 %v2299, 16
      %v2303 = vshrl.u32 %v2299, 16
      %v2304 = vshll.u32 %v2300, 16
      %v2305 = vshrl.u32 %v2300, 16
      %vm2306 = vc.u32 %v2298, %v2302
      %v2307 = vsel %vm2306, 1, 0
      %v2308 = vadd.s32 %v2298, %v2302
      %v2309 = vadd.s32 %v2301, %v2307
      %vm2310 = vc.u32 %v2308, %v2304
      %v2311 = vsel %vm2310, 1, 0
      %v2312 = vadd.s32 %v2308, %v2304
      %v2313 = vadd.s32 %v2309, %v2311
      %v2314 = vadd.s32 %v2313, %v2303
      %v2315 = vadd.s32 %v2314, %v2305
      %v2316 = vshrl.u32 %v2315, 4
      %v2317 = vmul.u32 %v2316, 18
      %v2318 = vsub.s32 %v2294, %v2317
      %v2319 = vsub.s32 0, %v2318
      %v2320 = vsel %vm2292, %v2319, %v2318
      %vm2321 = vcmp.lt.s32.totalorder %v2201, 0
      %v2322 = vsub.s32 0, %v2201
      %v2323 = vsel %vm2321, %v2322, %v2201
      %v2324 = vand.u32 %v2323, 65535
      %v2325 = vshrl.u32 %v2323, 16
      %v2327 = vmul.u32 %v2324, 14564
      %v2328 = vmul.u32 %v2324, 58254
      %v2329 = vmul.u32 %v2325, 14564
      %v2330 = vmul.u32 %v2325, 58254
      %v2331 = vshll.u32 %v2328, 16
      %v2332 = vshrl.u32 %v2328, 16
      %v2333 = vshll.u32 %v2329, 16
      %v2334 = vshrl.u32 %v2329, 16
      %vm2335 = vc.u32 %v2327, %v2331
      %v2336 = vsel %vm2335, 1, 0
      %v2337 = vadd.s32 %v2327, %v2331
      %v2338 = vadd.s32 %v2330, %v2336
      %vm2339 = vc.u32 %v2337, %v2333
      %v2340 = vsel %vm2339, 1, 0
      %v2341 = vadd.s32 %v2337, %v2333
      %v2342 = vadd.s32 %v2338, %v2340
      %v2343 = vadd.s32 %v2342, %v2332
      %v2344 = vadd.s32 %v2343, %v2334
      %v2345 = vshrl.u32 %v2344, 4
      %v2346 = vmul.u32 %v2345, 18
      %v2347 = vsub.s32 %v2323, %v2346
      %v2348 = vsub.s32 0, %v2347
      %v2349 = vsel %vm2321, %v2348, %v2347
      %vm2350 = vcmp.lt.s32.totalorder %v2202, 0
      %v2351 = vsub.s32 0, %v2202
      %v2352 = vsel %vm2350, %v2351, %v2202
      %v2353 = vand.u32 %v2352, 65535
      %v2354 = vshrl.u32 %v2352, 16
      %v2356 = vmul.u32 %v2353, 14564
      %v2357 = vmul.u32 %v2353, 58254
      %v2358 = vmul.u32 %v2354, 14564
      %v2359 = vmul.u32 %v2354, 58254
      %v2360 = vshll.u32 %v2357, 16
      %v2361 = vshrl.u32 %v2357, 16
      %v2362 = vshll.u32 %v2358, 16
      %v2363 = vshrl.u32 %v2358, 16
      %vm2364 = vc.u32 %v2356, %v2360
      %v2365 = vsel %vm2364, 1, 0
      %v2366 = vadd.s32 %v2356, %v2360
      %v2367 = vadd.s32 %v2359, %v2365
      %vm2368 = vc.u32 %v2366, %v2362
      %v2369 = vsel %vm2368, 1, 0
      %v2370 = vadd.s32 %v2366, %v2362
      %v2371 = vadd.s32 %v2367, %v2369
      %v2372 = vadd.s32 %v2371, %v2361
      %v2373 = vadd.s32 %v2372, %v2363
      %v2374 = vshrl.u32 %v2373, 4
      %v2375 = vmul.u32 %v2374, 18
      %v2376 = vsub.s32 %v2352, %v2375
      %v2377 = vsub.s32 0, %v2376
      %v2378 = vsel %vm2350, %v2377, %v2376
      %vm2379 = vcmp.lt.s32.totalorder %v2203, 0
      %v2380 = vsub.s32 0, %v2203
      %v2381 = vsel %vm2379, %v2380, %v2203
      %v2382 = vand.u32 %v2381, 65535
      %v2383 = vshrl.u32 %v2381, 16
      %v2385 = vmul.u32 %v2382, 14564
      %v2386 = vmul.u32 %v2382, 58254
      %v2387 = vmul.u32 %v2383, 14564
      %v2388 = vmul.u32 %v2383, 58254
      %v2389 = vshll.u32 %v2386, 16
      %v2390 = vshrl.u32 %v2386, 16
      %v2391 = vshll.u32 %v2387, 16
      %v2392 = vshrl.u32 %v2387, 16
      %vm2393 = vc.u32 %v2385, %v2389
      %v2394 = vsel %vm2393, 1, 0
      %v2395 = vadd.s32 %v2385, %v2389
      %v2396 = vadd.s32 %v2388, %v2394
      %vm2397 = vc.u32 %v2395, %v2391
      %v2398 = vsel %vm2397, 1, 0
      %v2399 = vadd.s32 %v2395, %v2391
      %v2400 = vadd.s32 %v2396, %v2398
      %v2401 = vadd.s32 %v2400, %v2390
      %v2402 = vadd.s32 %v2401, %v2392
      %v2403 = vshrl.u32 %v2402, 4
      %v2404 = vmul.u32 %v2403, 18
      %v2405 = vsub.s32 %v2381, %v2404
      %v2406 = vsub.s32 0, %v2405
      %v2407 = vsel %vm2379, %v2406, %v2405
      %vm2408 = vcmp.lt.s32.totalorder %v2204, 0
      %v2409 = vsub.s32 0, %v2204
      %v2410 = vsel %vm2408, %v2409, %v2204
      %v2411 = vand.u32 %v2410, 65535
      %v2412 = vshrl.u32 %v2410, 16
      %v2414 = vmul.u32 %v2411, 14564
      %v2415 = vmul.u32 %v2411, 58254
      %v2416 = vmul.u32 %v2412, 14564
      %v2417 = vmul.u32 %v2412, 58254
      %v2418 = vshll.u32 %v2415, 16
      %v2419 = vshrl.u32 %v2415, 16
      %v2420 = vshll.u32 %v2416, 16
      %v2421 = vshrl.u32 %v2416, 16
      %vm2422 = vc.u32 %v2414, %v2418
      %v2423 = vsel %vm2422, 1, 0
      %v2424 = vadd.s32 %v2414, %v2418
      %v2425 = vadd.s32 %v2417, %v2423
      %vm2426 = vc.u32 %v2424, %v2420
      %v2427 = vsel %vm2426, 1, 0
      %v2428 = vadd.s32 %v2424, %v2420
      %v2429 = vadd.s32 %v2425, %v2427
      %v2430 = vadd.s32 %v2429, %v2419
      %v2431 = vadd.s32 %v2430, %v2421
      %v2432 = vshrl.u32 %v2431, 4
      %v2433 = vmul.u32 %v2432, 18
      %v2434 = vsub.s32 %v2410, %v2433
      %v2435 = vsub.s32 0, %v2434
      %v2436 = vsel %vm2408, %v2435, %v2434
      %vm2437 = vcmp.lt.s32.totalorder %v2205, 0
      %v2438 = vsub.s32 0, %v2205
      %v2439 = vsel %vm2437, %v2438, %v2205
      %v2440 = vand.u32 %v2439, 65535
      %v2441 = vshrl.u32 %v2439, 16
      %v2443 = vmul.u32 %v2440, 14564
      %v2444 = vmul.u32 %v2440, 58254
      %v2445 = vmul.u32 %v2441, 14564
      %v2446 = vmul.u32 %v2441, 58254
      %v2447 = vshll.u32 %v2444, 16
      %v2448 = vshrl.u32 %v2444, 16
      %v2449 = vshll.u32 %v2445, 16
      %v2450 = vshrl.u32 %v2445, 16
      %vm2451 = vc.u32 %v2443, %v2447
      %v2452 = vsel %vm2451, 1, 0
      %v2453 = vadd.s32 %v2443, %v2447
      %v2454 = vadd.s32 %v2446, %v2452
      %vm2455 = vc.u32 %v2453, %v2449
      %v2456 = vsel %vm2455, 1, 0
      %v2457 = vadd.s32 %v2453, %v2449
      %v2458 = vadd.s32 %v2454, %v2456
      %v2459 = vadd.s32 %v2458, %v2448
      %v2460 = vadd.s32 %v2459, %v2450
      %v2461 = vshrl.u32 %v2460, 4
      %v2462 = vmul.u32 %v2461, 18
      %v2463 = vsub.s32 %v2439, %v2462
      %v2464 = vsub.s32 0, %v2463
      %v2465 = vsel %vm2437, %v2464, %v2463
      %vm2466 = vcmp.lt.s32.totalorder %v2206, 0
      %v2467 = vsub.s32 0, %v2206
      %v2468 = vsel %vm2466, %v2467, %v2206
      %v2469 = vand.u32 %v2468, 65535
      %v2470 = vshrl.u32 %v2468, 16
      %v2472 = vmul.u32 %v2469, 14564
      %v2473 = vmul.u32 %v2469, 58254
      %v2474 = vmul.u32 %v2470, 14564
      %v2475 = vmul.u32 %v2470, 58254
      %v2476 = vshll.u32 %v2473, 16
      %v2477 = vshrl.u32 %v2473, 16
      %v2478 = vshll.u32 %v2474, 16
      %v2479 = vshrl.u32 %v2474, 16
      %vm2480 = vc.u32 %v2472, %v2476
      %v2481 = vsel %vm2480, 1, 0
      %v2482 = vadd.s32 %v2472, %v2476
      %v2483 = vadd.s32 %v2475, %v2481
      %vm2484 = vc.u32 %v2482, %v2478
      %v2485 = vsel %vm2484, 1, 0
      %v2486 = vadd.s32 %v2482, %v2478
      %v2487 = vadd.s32 %v2483, %v2485
      %v2488 = vadd.s32 %v2487, %v2477
      %v2489 = vadd.s32 %v2488, %v2479
      %v2490 = vshrl.u32 %v2489, 4
      %v2491 = vmul.u32 %v2490, 18
      %v2492 = vsub.s32 %v2468, %v2491
      %v2493 = vsub.s32 0, %v2492
      %v2494 = vsel %vm2466, %v2493, %v2492
      %vm2495 = vcmp.lt.s32.totalorder %v2207, 0
      %v2496 = vsub.s32 0, %v2207
      %v2497 = vsel %vm2495, %v2496, %v2207
      %v2498 = vand.u32 %v2497, 65535
      %v2499 = vshrl.u32 %v2497, 16
      %v2501 = vmul.u32 %v2498, 14564
      %v2502 = vmul.u32 %v2498, 58254
      %v2503 = vmul.u32 %v2499, 14564
      %v2504 = vmul.u32 %v2499, 58254
      %v2505 = vshll.u32 %v2502, 16
      %v2506 = vshrl.u32 %v2502, 16
      %v2507 = vshll.u32 %v2503, 16
      %v2508 = vshrl.u32 %v2503, 16
      %vm2509 = vc.u32 %v2501, %v2505
      %v2510 = vsel %vm2509, 1, 0
      %v2511 = vadd.s32 %v2501, %v2505
      %v2512 = vadd.s32 %v2504, %v2510
      %vm2513 = vc.u32 %v2511, %v2507
      %v2514 = vsel %vm2513, 1, 0
      %v2515 = vadd.s32 %v2511, %v2507
      %v2516 = vadd.s32 %v2512, %v2514
      %v2517 = vadd.s32 %v2516, %v2506
      %v2518 = vadd.s32 %v2517, %v2508
      %v2519 = vshrl.u32 %v2518, 4
      %v2520 = vmul.u32 %v2519, 18
      %v2521 = vsub.s32 %v2497, %v2520
      %v2522 = vsub.s32 0, %v2521
      %v2523 = vsel %vm2495, %v2522, %v2521
      %vm2524 = vcmp.lt.s32.totalorder %v2208, 0
      %v2525 = vsub.s32 0, %v2208
      %v2526 = vsel %vm2524, %v2525, %v2208
      %v2527 = vand.u32 %v2526, 65535
      %v2528 = vshrl.u32 %v2526, 16
      %v2530 = vmul.u32 %v2527, 14564
      %v2531 = vmul.u32 %v2527, 58254
      %v2532 = vmul.u32 %v2528, 14564
      %v2533 = vmul.u32 %v2528, 58254
      %v2534 = vshll.u32 %v2531, 16
      %v2535 = vshrl.u32 %v2531, 16
      %v2536 = vshll.u32 %v2532, 16
      %v2537 = vshrl.u32 %v2532, 16
      %vm2538 = vc.u32 %v2530, %v2534
      %v2539 = vsel %vm2538, 1, 0
      %v2540 = vadd.s32 %v2530, %v2534
      %v2541 = vadd.s32 %v2533, %v2539
      %vm2542 = vc.u32 %v2540, %v2536
      %v2543 = vsel %vm2542, 1, 0
      %v2544 = vadd.s32 %v2540, %v2536
      %v2545 = vadd.s32 %v2541, %v2543
      %v2546 = vadd.s32 %v2545, %v2535
      %v2547 = vadd.s32 %v2546, %v2537
      %v2548 = vshrl.u32 %v2547, 4
      %v2549 = vmul.u32 %v2548, 18
      %v2550 = vsub.s32 %v2526, %v2549
      %v2551 = vsub.s32 0, %v2550
      %v2552 = vsel %vm2524, %v2551, %v2550
      %vm2553 = vcmp.lt.s32.totalorder %v2209, 0
      %v2554 = vsub.s32 0, %v2209
      %v2555 = vsel %vm2553, %v2554, %v2209
      %v2556 = vand.u32 %v2555, 65535
      %v2557 = vshrl.u32 %v2555, 16
      %v2559 = vmul.u32 %v2556, 14564
      %v2560 = vmul.u32 %v2556, 58254
      %v2561 = vmul.u32 %v2557, 14564
      %v2562 = vmul.u32 %v2557, 58254
      %v2563 = vshll.u32 %v2560, 16
      %v2564 = vshrl.u32 %v2560, 16
      %v2565 = vshll.u32 %v2561, 16
      %v2566 = vshrl.u32 %v2561, 16
      %vm2567 = vc.u32 %v2559, %v2563
      %v2568 = vsel %vm2567, 1, 0
      %v2569 = vadd.s32 %v2559, %v2563
      %v2570 = vadd.s32 %v2562, %v2568
      %vm2571 = vc.u32 %v2569, %v2565
      %v2572 = vsel %vm2571, 1, 0
      %v2573 = vadd.s32 %v2569, %v2565
      %v2574 = vadd.s32 %v2570, %v2572
      %v2575 = vadd.s32 %v2574, %v2564
      %v2576 = vadd.s32 %v2575, %v2566
      %v2577 = vshrl.u32 %v2576, 4
      %v2578 = vmul.u32 %v2577, 18
      %v2579 = vsub.s32 %v2555, %v2578
      %v2580 = vsub.s32 0, %v2579
      %v2581 = vsel %vm2553, %v2580, %v2579
      %vm2582 = vcmp.lt.s32.totalorder %v2210, 0
      %v2583 = vsub.s32 0, %v2210
      %v2584 = vsel %vm2582, %v2583, %v2210
      %v2585 = vand.u32 %v2584, 65535
      %v2586 = vshrl.u32 %v2584, 16
      %v2588 = vmul.u32 %v2585, 14564
      %v2589 = vmul.u32 %v2585, 58254
      %v2590 = vmul.u32 %v2586, 14564
      %v2591 = vmul.u32 %v2586, 58254
      %v2592 = vshll.u32 %v2589, 16
      %v2593 = vshrl.u32 %v2589, 16
      %v2594 = vshll.u32 %v2590, 16
      %v2595 = vshrl.u32 %v2590, 16
      %vm2596 = vc.u32 %v2588, %v2592
      %v2597 = vsel %vm2596, 1, 0
      %v2598 = vadd.s32 %v2588, %v2592
      %v2599 = vadd.s32 %v2591, %v2597
      %vm2600 = vc.u32 %v2598, %v2594
      %v2601 = vsel %vm2600, 1, 0
      %v2602 = vadd.s32 %v2598, %v2594
      %v2603 = vadd.s32 %v2599, %v2601
      %v2604 = vadd.s32 %v2603, %v2593
      %v2605 = vadd.s32 %v2604, %v2595
      %v2606 = vshrl.u32 %v2605, 4
      %v2607 = vmul.u32 %v2606, 18
      %v2608 = vsub.s32 %v2584, %v2607
      %v2609 = vsub.s32 0, %v2608
      %v2610 = vsel %vm2582, %v2609, %v2608
      %vm2611 = vcmp.lt.s32.totalorder %v2211, 0
      %v2612 = vsub.s32 0, %v2211
      %v2613 = vsel %vm2611, %v2612, %v2211
      %v2614 = vand.u32 %v2613, 65535
      %v2615 = vshrl.u32 %v2613, 16
      %v2617 = vmul.u32 %v2614, 14564
      %v2618 = vmul.u32 %v2614, 58254
      %v2619 = vmul.u32 %v2615, 14564
      %v2620 = vmul.u32 %v2615, 58254
      %v2621 = vshll.u32 %v2618, 16
      %v2622 = vshrl.u32 %v2618, 16
      %v2623 = vshll.u32 %v2619, 16
      %v2624 = vshrl.u32 %v2619, 16
      %vm2625 = vc.u32 %v2617, %v2621
      %v2626 = vsel %vm2625, 1, 0
      %v2627 = vadd.s32 %v2617, %v2621
      %v2628 = vadd.s32 %v2620, %v2626
      %vm2629 = vc.u32 %v2627, %v2623
      %v2630 = vsel %vm2629, 1, 0
      %v2631 = vadd.s32 %v2627, %v2623
      %v2632 = vadd.s32 %v2628, %v2630
      %v2633 = vadd.s32 %v2632, %v2622
      %v2634 = vadd.s32 %v2633, %v2624
      %v2635 = vshrl.u32 %v2634, 4
      %v2636 = vmul.u32 %v2635, 18
      %v2637 = vsub.s32 %v2613, %v2636
      %v2638 = vsub.s32 0, %v2637
      %v2639 = vsel %vm2611, %v2638, %v2637
      %vm2640 = vcmp.lt.s32.totalorder %v2212, 0
      %v2641 = vsub.s32 0, %v2212
      %v2642 = vsel %vm2640, %v2641, %v2212
      %v2643 = vand.u32 %v2642, 65535
      %v2644 = vshrl.u32 %v2642, 16
      %v2646 = vmul.u32 %v2643, 14564
      %v2647 = vmul.u32 %v2643, 58254
      %v2648 = vmul.u32 %v2644, 14564
      %v2649 = vmul.u32 %v2644, 58254
      %v2650 = vshll.u32 %v2647, 16
      %v2651 = vshrl.u32 %v2647, 16
      %v2652 = vshll.u32 %v2648, 16
      %v2653 = vshrl.u32 %v2648, 16
      %vm2654 = vc.u32 %v2646, %v2650
      %v2655 = vsel %vm2654, 1, 0
      %v2656 = vadd.s32 %v2646, %v2650
      %v2657 = vadd.s32 %v2649, %v2655
      %vm2658 = vc.u32 %v2656, %v2652
      %v2659 = vsel %vm2658, 1, 0
      %v2660 = vadd.s32 %v2656, %v2652
      %v2661 = vadd.s32 %v2657, %v2659
      %v2662 = vadd.s32 %v2661, %v2651
      %v2663 = vadd.s32 %v2662, %v2653
      %v2664 = vshrl.u32 %v2663, 4
      %v2665 = vmul.u32 %v2664, 18
      %v2666 = vsub.s32 %v2642, %v2665
      %v2667 = vsub.s32 0, %v2666
      %v2668 = vsel %vm2640, %v2667, %v2666
      %vm2669 = vcmp.lt.s32.totalorder %v2213, 0
      %v2670 = vsub.s32 0, %v2213
      %v2671 = vsel %vm2669, %v2670, %v2213
      %v2672 = vand.u32 %v2671, 65535
      %v2673 = vshrl.u32 %v2671, 16
      %v2675 = vmul.u32 %v2672, 14564
      %v2676 = vmul.u32 %v2672, 58254
      %v2677 = vmul.u32 %v2673, 14564
      %v2678 = vmul.u32 %v2673, 58254
      %v2679 = vshll.u32 %v2676, 16
      %v2680 = vshrl.u32 %v2676, 16
      %v2681 = vshll.u32 %v2677, 16
      %v2682 = vshrl.u32 %v2677, 16
      %vm2683 = vc.u32 %v2675, %v2679
      %v2684 = vsel %vm2683, 1, 0
      %v2685 = vadd.s32 %v2675, %v2679
      %v2686 = vadd.s32 %v2678, %v2684
      %vm2687 = vc.u32 %v2685, %v2681
      %v2688 = vsel %vm2687, 1, 0
      %v2689 = vadd.s32 %v2685, %v2681
      %v2690 = vadd.s32 %v2686, %v2688
      %v2691 = vadd.s32 %v2690, %v2680
      %v2692 = vadd.s32 %v2691, %v2682
      %v2693 = vshrl.u32 %v2692, 4
      %v2694 = vmul.u32 %v2693, 18
      %v2695 = vsub.s32 %v2671, %v2694
      %v2696 = vsub.s32 0, %v2695
      %v2697 = vsel %vm2669, %v2696, %v2695
      %vm2698 = vcmp.lt.s32.totalorder %v2214, 0
      %v2699 = vsub.s32 0, %v2214
      %v2700 = vsel %vm2698, %v2699, %v2214
      %v2701 = vand.u32 %v2700, 65535
      %v2702 = vshrl.u32 %v2700, 16
      %v2704 = vmul.u32 %v2701, 14564
      %v2705 = vmul.u32 %v2701, 58254
      %v2706 = vmul.u32 %v2702, 14564
      %v2707 = vmul.u32 %v2702, 58254
      %v2708 = vshll.u32 %v2705, 16
      %v2709 = vshrl.u32 %v2705, 16
      %v2710 = vshll.u32 %v2706, 16
      %v2711 = vshrl.u32 %v2706, 16
      %vm2712 = vc.u32 %v2704, %v2708
      %v2713 = vsel %vm2712, 1, 0
      %v2714 = vadd.s32 %v2704, %v2708
      %v2715 = vadd.s32 %v2707, %v2713
      %vm2716 = vc.u32 %v2714, %v2710
      %v2717 = vsel %vm2716, 1, 0
      %v2718 = vadd.s32 %v2714, %v2710
      %v2719 = vadd.s32 %v2715, %v2717
      %v2720 = vadd.s32 %v2719, %v2709
      %v2721 = vadd.s32 %v2720, %v2711
      %v2722 = vshrl.u32 %v2721, 4
      %v2723 = vmul.u32 %v2722, 18
      %v2724 = vsub.s32 %v2700, %v2723
      %v2725 = vsub.s32 0, %v2724
      %v2726 = vsel %vm2698, %v2725, %v2724
      %vm2727 = vcmp.lt.s32.totalorder %v2215, 0
      %v2728 = vsub.s32 0, %v2215
      %v2729 = vsel %vm2727, %v2728, %v2215
      %v2730 = vand.u32 %v2729, 65535
      %v2731 = vshrl.u32 %v2729, 16
      %v2733 = vmul.u32 %v2730, 14564
      %v2734 = vmul.u32 %v2730, 58254
      %v2735 = vmul.u32 %v2731, 14564
      %v2736 = vmul.u32 %v2731, 58254
      %v2737 = vshll.u32 %v2734, 16
      %v2738 = vshrl.u32 %v2734, 16
      %v2739 = vshll.u32 %v2735, 16
      %v2740 = vshrl.u32 %v2735, 16
      %vm2741 = vc.u32 %v2733, %v2737
      %v2742 = vsel %vm2741, 1, 0
      %v2743 = vadd.s32 %v2733, %v2737
      %v2744 = vadd.s32 %v2736, %v2742
      %vm2745 = vc.u32 %v2743, %v2739
      %v2746 = vsel %vm2745, 1, 0
      %v2747 = vadd.s32 %v2743, %v2739
      %v2748 = vadd.s32 %v2744, %v2746
      %v2749 = vadd.s32 %v2748, %v2738
      %v2750 = vadd.s32 %v2749, %v2740
      %v2751 = vshrl.u32 %v2750, 4
      %v2752 = vmul.u32 %v2751, 18
      %v2753 = vsub.s32 %v2729, %v2752
      %v2754 = vsub.s32 0, %v2753
      %v2755 = vsel %vm2727, %v2754, %v2753
      %vm2756 = vcmp.lt.s32.totalorder %v2216, 0
      %v2757 = vsub.s32 0, %v2216
      %v2758 = vsel %vm2756, %v2757, %v2216
      %v2759 = vand.u32 %v2758, 65535
      %v2760 = vshrl.u32 %v2758, 16
      %v2762 = vmul.u32 %v2759, 14564
      %v2763 = vmul.u32 %v2759, 58254
      %v2764 = vmul.u32 %v2760, 14564
      %v2765 = vmul.u32 %v2760, 58254
      %v2766 = vshll.u32 %v2763, 16
      %v2767 = vshrl.u32 %v2763, 16
      %v2768 = vshll.u32 %v2764, 16
      %v2769 = vshrl.u32 %v2764, 16
      %vm2770 = vc.u32 %v2762, %v2766
      %v2771 = vsel %vm2770, 1, 0
      %v2772 = vadd.s32 %v2762, %v2766
      %v2773 = vadd.s32 %v2765, %v2771
      %vm2774 = vc.u32 %v2772, %v2768
      %v2775 = vsel %vm2774, 1, 0
      %v2776 = vadd.s32 %v2772, %v2768
      %v2777 = vadd.s32 %v2773, %v2775
      %v2778 = vadd.s32 %v2777, %v2767
      %v2779 = vadd.s32 %v2778, %v2769
      %v2780 = vshrl.u32 %v2779, 4
      %v2781 = vmul.u32 %v2780, 18
      %v2782 = vsub.s32 %v2758, %v2781
      %v2783 = vsub.s32 0, %v2782
      %v2784 = vsel %vm2756, %v2783, %v2782
      %vm2785 = vcmp.lt.s32.totalorder %v2217, 0
      %v2786 = vsub.s32 0, %v2217
      %v2787 = vsel %vm2785, %v2786, %v2217
      %v2788 = vand.u32 %v2787, 65535
      %v2789 = vshrl.u32 %v2787, 16
      %v2791 = vmul.u32 %v2788, 14564
      %v2792 = vmul.u32 %v2788, 58254
      %v2793 = vmul.u32 %v2789, 14564
      %v2794 = vmul.u32 %v2789, 58254
      %v2795 = vshll.u32 %v2792, 16
      %v2796 = vshrl.u32 %v2792, 16
      %v2797 = vshll.u32 %v2793, 16
      %v2798 = vshrl.u32 %v2793, 16
      %vm2799 = vc.u32 %v2791, %v2795
      %v2800 = vsel %vm2799, 1, 0
      %v2801 = vadd.s32 %v2791, %v2795
      %v2802 = vadd.s32 %v2794, %v2800
      %vm2803 = vc.u32 %v2801, %v2797
      %v2804 = vsel %vm2803, 1, 0
      %v2805 = vadd.s32 %v2801, %v2797
      %v2806 = vadd.s32 %v2802, %v2804
      %v2807 = vadd.s32 %v2806, %v2796
      %v2808 = vadd.s32 %v2807, %v2798
      %v2809 = vshrl.u32 %v2808, 4
      %v2810 = vmul.u32 %v2809, 18
      %v2811 = vsub.s32 %v2787, %v2810
      %v2812 = vsub.s32 0, %v2811
      %v2813 = vsel %vm2785, %v2812, %v2811
      %vm2814 = vcmp.lt.s32.totalorder %v2218, 0
      %v2815 = vsub.s32 0, %v2218
      %v2816 = vsel %vm2814, %v2815, %v2218
      %v2817 = vand.u32 %v2816, 65535
      %v2818 = vshrl.u32 %v2816, 16
      %v2820 = vmul.u32 %v2817, 14564
      %v2821 = vmul.u32 %v2817, 58254
      %v2822 = vmul.u32 %v2818, 14564
      %v2823 = vmul.u32 %v2818, 58254
      %v2824 = vshll.u32 %v2821, 16
      %v2825 = vshrl.u32 %v2821, 16
      %v2826 = vshll.u32 %v2822, 16
      %v2827 = vshrl.u32 %v2822, 16
      %vm2828 = vc.u32 %v2820, %v2824
      %v2829 = vsel %vm2828, 1, 0
      %v2830 = vadd.s32 %v2820, %v2824
      %v2831 = vadd.s32 %v2823, %v2829
      %vm2832 = vc.u32 %v2830, %v2826
      %v2833 = vsel %vm2832, 1, 0
      %v2834 = vadd.s32 %v2830, %v2826
      %v2835 = vadd.s32 %v2831, %v2833
      %v2836 = vadd.s32 %v2835, %v2825
      %v2837 = vadd.s32 %v2836, %v2827
      %v2838 = vshrl.u32 %v2837, 4
      %v2839 = vmul.u32 %v2838, 18
      %v2840 = vsub.s32 %v2816, %v2839
      %v2841 = vsub.s32 0, %v2840
      %v2842 = vsel %vm2814, %v2841, %v2840
      %vm2843 = vcmp.lt.s32.totalorder %v2219, 0
      %v2844 = vsub.s32 0, %v2219
      %v2845 = vsel %vm2843, %v2844, %v2219
      %v2846 = vand.u32 %v2845, 65535
      %v2847 = vshrl.u32 %v2845, 16
      %v2849 = vmul.u32 %v2846, 14564
      %v2850 = vmul.u32 %v2846, 58254
      %v2851 = vmul.u32 %v2847, 14564
      %v2852 = vmul.u32 %v2847, 58254
      %v2853 = vshll.u32 %v2850, 16
      %v2854 = vshrl.u32 %v2850, 16
      %v2855 = vshll.u32 %v2851, 16
      %v2856 = vshrl.u32 %v2851, 16
      %vm2857 = vc.u32 %v2849, %v2853
      %v2858 = vsel %vm2857, 1, 0
      %v2859 = vadd.s32 %v2849, %v2853
      %v2860 = vadd.s32 %v2852, %v2858
      %vm2861 = vc.u32 %v2859, %v2855
      %v2862 = vsel %vm2861, 1, 0
      %v2863 = vadd.s32 %v2859, %v2855
      %v2864 = vadd.s32 %v2860, %v2862
      %v2865 = vadd.s32 %v2864, %v2854
      %v2866 = vadd.s32 %v2865, %v2856
      %v2867 = vshrl.u32 %v2866, 4
      %v2868 = vmul.u32 %v2867, 18
      %v2869 = vsub.s32 %v2845, %v2868
      %v2870 = vsub.s32 0, %v2869
      %v2871 = vsel %vm2843, %v2870, %v2869
      %vm2872 = vcmp.lt.s32.totalorder %v2220, 0
      %v2873 = vsub.s32 0, %v2220
      %v2874 = vsel %vm2872, %v2873, %v2220
      %v2875 = vand.u32 %v2874, 65535
      %v2876 = vshrl.u32 %v2874, 16
      %v2878 = vmul.u32 %v2875, 14564
      %v2879 = vmul.u32 %v2875, 58254
      %v2880 = vmul.u32 %v2876, 14564
      %v2881 = vmul.u32 %v2876, 58254
      %v2882 = vshll.u32 %v2879, 16
      %v2883 = vshrl.u32 %v2879, 16
      %v2884 = vshll.u32 %v2880, 16
      %v2885 = vshrl.u32 %v2880, 16
      %vm2886 = vc.u32 %v2878, %v2882
      %v2887 = vsel %vm2886, 1, 0
      %v2888 = vadd.s32 %v2878, %v2882
      %v2889 = vadd.s32 %v2881, %v2887
      %vm2890 = vc.u32 %v2888, %v2884
      %v2891 = vsel %vm2890, 1, 0
      %v2892 = vadd.s32 %v2888, %v2884
      %v2893 = vadd.s32 %v2889, %v2891
      %v2894 = vadd.s32 %v2893, %v2883
      %v2895 = vadd.s32 %v2894, %v2885
      %v2896 = vshrl.u32 %v2895, 4
      %v2897 = vmul.u32 %v2896, 18
      %v2898 = vsub.s32 %v2874, %v2897
      %v2899 = vsub.s32 0, %v2898
      %v2900 = vsel %vm2872, %v2899, %v2898
      %vm2901 = vcmp.lt.s32.totalorder %v2221, 0
      %v2902 = vsub.s32 0, %v2221
      %v2903 = vsel %vm2901, %v2902, %v2221
      %v2904 = vand.u32 %v2903, 65535
      %v2905 = vshrl.u32 %v2903, 16
      %v2907 = vmul.u32 %v2904, 14564
      %v2908 = vmul.u32 %v2904, 58254
      %v2909 = vmul.u32 %v2905, 14564
      %v2910 = vmul.u32 %v2905, 58254
      %v2911 = vshll.u32 %v2908, 16
      %v2912 = vshrl.u32 %v2908, 16
      %v2913 = vshll.u32 %v2909, 16
      %v2914 = vshrl.u32 %v2909, 16
      %vm2915 = vc.u32 %v2907, %v2911
      %v2916 = vsel %vm2915, 1, 0
      %v2917 = vadd.s32 %v2907, %v2911
      %v2918 = vadd.s32 %v2910, %v2916
      %vm2919 = vc.u32 %v2917, %v2913
      %v2920 = vsel %vm2919, 1, 0
      %v2921 = vadd.s32 %v2917, %v2913
      %v2922 = vadd.s32 %v2918, %v2920
      %v2923 = vadd.s32 %v2922, %v2912
      %v2924 = vadd.s32 %v2923, %v2914
      %v2925 = vshrl.u32 %v2924, 4
      %v2926 = vmul.u32 %v2925, 18
      %v2927 = vsub.s32 %v2903, %v2926
      %v2928 = vsub.s32 0, %v2927
      %v2929 = vsel %vm2901, %v2928, %v2927
      %vm2930 = vcmp.lt.s32.totalorder %v2222, 0
      %v2931 = vsub.s32 0, %v2222
      %v2932 = vsel %vm2930, %v2931, %v2222
      %v2933 = vand.u32 %v2932, 65535
      %v2934 = vshrl.u32 %v2932, 16
      %v2936 = vmul.u32 %v2933, 14564
      %v2937 = vmul.u32 %v2933, 58254
      %v2938 = vmul.u32 %v2934, 14564
      %v2939 = vmul.u32 %v2934, 58254
      %v2940 = vshll.u32 %v2937, 16
      %v2941 = vshrl.u32 %v2937, 16
      %v2942 = vshll.u32 %v2938, 16
      %v2943 = vshrl.u32 %v2938, 16
      %vm2944 = vc.u32 %v2936, %v2940
      %v2945 = vsel %vm2944, 1, 0
      %v2946 = vadd.s32 %v2936, %v2940
      %v2947 = vadd.s32 %v2939, %v2945
      %vm2948 = vc.u32 %v2946, %v2942
      %v2949 = vsel %vm2948, 1, 0
      %v2950 = vadd.s32 %v2946, %v2942
      %v2951 = vadd.s32 %v2947, %v2949
      %v2952 = vadd.s32 %v2951, %v2941
      %v2953 = vadd.s32 %v2952, %v2943
      %v2954 = vshrl.u32 %v2953, 4
      %v2955 = vmul.u32 %v2954, 18
      %v2956 = vsub.s32 %v2932, %v2955
      %v2957 = vsub.s32 0, %v2956
      %v2958 = vsel %vm2930, %v2957, %v2956
      %vm2959 = vcmp.lt.s32.totalorder %v2223, 0
      %v2960 = vsub.s32 0, %v2223
      %v2961 = vsel %vm2959, %v2960, %v2223
      %v2962 = vand.u32 %v2961, 65535
      %v2963 = vshrl.u32 %v2961, 16
      %v2965 = vmul.u32 %v2962, 14564
      %v2966 = vmul.u32 %v2962, 58254
      %v2967 = vmul.u32 %v2963, 14564
      %v2968 = vmul.u32 %v2963, 58254
      %v2969 = vshll.u32 %v2966, 16
      %v2970 = vshrl.u32 %v2966, 16
      %v2971 = vshll.u32 %v2967, 16
      %v2972 = vshrl.u32 %v2967, 16
      %vm2973 = vc.u32 %v2965, %v2969
      %v2974 = vsel %vm2973, 1, 0
      %v2975 = vadd.s32 %v2965, %v2969
      %v2976 = vadd.s32 %v2968, %v2974
      %vm2977 = vc.u32 %v2975, %v2971
      %v2978 = vsel %vm2977, 1, 0
      %v2979 = vadd.s32 %v2975, %v2971
      %v2980 = vadd.s32 %v2976, %v2978
      %v2981 = vadd.s32 %v2980, %v2970
      %v2982 = vadd.s32 %v2981, %v2972
      %v2983 = vshrl.u32 %v2982, 4
      %v2984 = vmul.u32 %v2983, 18
      %v2985 = vsub.s32 %v2961, %v2984
      %v2986 = vsub.s32 0, %v2985
      %v2987 = vsel %vm2959, %v2986, %v2985
      %vm2988 = vcmp.lt.s32.totalorder %v2224, 0
      %v2989 = vsub.s32 0, %v2224
      %v2990 = vsel %vm2988, %v2989, %v2224
      %v2991 = vand.u32 %v2990, 65535
      %v2992 = vshrl.u32 %v2990, 16
      %v2994 = vmul.u32 %v2991, 14564
      %v2995 = vmul.u32 %v2991, 58254
      %v2996 = vmul.u32 %v2992, 14564
      %v2997 = vmul.u32 %v2992, 58254
      %v2998 = vshll.u32 %v2995, 16
      %v2999 = vshrl.u32 %v2995, 16
      %v3000 = vshll.u32 %v2996, 16
      %v3001 = vshrl.u32 %v2996, 16
      %vm3002 = vc.u32 %v2994, %v2998
      %v3003 = vsel %vm3002, 1, 0
      %v3004 = vadd.s32 %v2994, %v2998
      %v3005 = vadd.s32 %v2997, %v3003
      %vm3006 = vc.u32 %v3004, %v3000
      %v3007 = vsel %vm3006, 1, 0
      %v3008 = vadd.s32 %v3004, %v3000
      %v3009 = vadd.s32 %v3005, %v3007
      %v3010 = vadd.s32 %v3009, %v2999
      %v3011 = vadd.s32 %v3010, %v3001
      %v3012 = vshrl.u32 %v3011, 4
      %v3013 = vmul.u32 %v3012, 18
      %v3014 = vsub.s32 %v2990, %v3013
      %v3015 = vsub.s32 0, %v3014
      %v3016 = vsel %vm2988, %v3015, %v3014
      %vm3017 = vcmp.lt.s32.totalorder %v2225, 0
      %v3018 = vsub.s32 0, %v2225
      %v3019 = vsel %vm3017, %v3018, %v2225
      %v3020 = vand.u32 %v3019, 65535
      %v3021 = vshrl.u32 %v3019, 16
      %v3023 = vmul.u32 %v3020, 14564
      %v3024 = vmul.u32 %v3020, 58254
      %v3025 = vmul.u32 %v3021, 14564
      %v3026 = vmul.u32 %v3021, 58254
      %v3027 = vshll.u32 %v3024, 16
      %v3028 = vshrl.u32 %v3024, 16
      %v3029 = vshll.u32 %v3025, 16
      %v3030 = vshrl.u32 %v3025, 16
      %vm3031 = vc.u32 %v3023, %v3027
      %v3032 = vsel %vm3031, 1, 0
      %v3033 = vadd.s32 %v3023, %v3027
      %v3034 = vadd.s32 %v3026, %v3032
      %vm3035 = vc.u32 %v3033, %v3029
      %v3036 = vsel %vm3035, 1, 0
      %v3037 = vadd.s32 %v3033, %v3029
      %v3038 = vadd.s32 %v3034, %v3036
      %v3039 = vadd.s32 %v3038, %v3028
      %v3040 = vadd.s32 %v3039, %v3030
      %v3041 = vshrl.u32 %v3040, 4
      %v3042 = vmul.u32 %v3041, 18
      %v3043 = vsub.s32 %v3019, %v3042
      %v3044 = vsub.s32 0, %v3043
      %v3045 = vsel %vm3017, %v3044, %v3043
      %vm3046 = vcmp.lt.s32.totalorder %v2226, 0
      %v3047 = vsub.s32 0, %v2226
      %v3048 = vsel %vm3046, %v3047, %v2226
      %v3049 = vand.u32 %v3048, 65535
      %v3050 = vshrl.u32 %v3048, 16
      %v3052 = vmul.u32 %v3049, 14564
      %v3053 = vmul.u32 %v3049, 58254
      %v3054 = vmul.u32 %v3050, 14564
      %v3055 = vmul.u32 %v3050, 58254
      %v3056 = vshll.u32 %v3053, 16
      %v3057 = vshrl.u32 %v3053, 16
      %v3058 = vshll.u32 %v3054, 16
      %v3059 = vshrl.u32 %v3054, 16
      %vm3060 = vc.u32 %v3052, %v3056
      %v3061 = vsel %vm3060, 1, 0
      %v3062 = vadd.s32 %v3052, %v3056
      %v3063 = vadd.s32 %v3055, %v3061
      %vm3064 = vc.u32 %v3062, %v3058
      %v3065 = vsel %vm3064, 1, 0
      %v3066 = vadd.s32 %v3062, %v3058
      %v3067 = vadd.s32 %v3063, %v3065
      %v3068 = vadd.s32 %v3067, %v3057
      %v3069 = vadd.s32 %v3068, %v3059
      %v3070 = vshrl.u32 %v3069, 4
      %v3071 = vmul.u32 %v3070, 18
      %v3072 = vsub.s32 %v3048, %v3071
      %v3073 = vsub.s32 0, %v3072
      %v3074 = vsel %vm3046, %v3073, %v3072
      %vm3075 = vcmp.lt.s32.totalorder %v2227, 0
      %v3076 = vsub.s32 0, %v2227
      %v3077 = vsel %vm3075, %v3076, %v2227
      %v3078 = vand.u32 %v3077, 65535
      %v3079 = vshrl.u32 %v3077, 16
      %v3081 = vmul.u32 %v3078, 14564
      %v3082 = vmul.u32 %v3078, 58254
      %v3083 = vmul.u32 %v3079, 14564
      %v3084 = vmul.u32 %v3079, 58254
      %v3085 = vshll.u32 %v3082, 16
      %v3086 = vshrl.u32 %v3082, 16
      %v3087 = vshll.u32 %v3083, 16
      %v3088 = vshrl.u32 %v3083, 16
      %vm3089 = vc.u32 %v3081, %v3085
      %v3090 = vsel %vm3089, 1, 0
      %v3091 = vadd.s32 %v3081, %v3085
      %v3092 = vadd.s32 %v3084, %v3090
      %vm3093 = vc.u32 %v3091, %v3087
      %v3094 = vsel %vm3093, 1, 0
      %v3095 = vadd.s32 %v3091, %v3087
      %v3096 = vadd.s32 %v3092, %v3094
      %v3097 = vadd.s32 %v3096, %v3086
      %v3098 = vadd.s32 %v3097, %v3088
      %v3099 = vshrl.u32 %v3098, 4
      %v3100 = vmul.u32 %v3099, 18
      %v3101 = vsub.s32 %v3077, %v3100
      %v3102 = vsub.s32 0, %v3101
      %v3103 = vsel %vm3075, %v3102, %v3101
      %vm3104 = vcmp.lt.s32.totalorder %v2228, 0
      %v3105 = vsub.s32 0, %v2228
      %v3106 = vsel %vm3104, %v3105, %v2228
      %v3107 = vand.u32 %v3106, 65535
      %v3108 = vshrl.u32 %v3106, 16
      %v3110 = vmul.u32 %v3107, 14564
      %v3111 = vmul.u32 %v3107, 58254
      %v3112 = vmul.u32 %v3108, 14564
      %v3113 = vmul.u32 %v3108, 58254
      %v3114 = vshll.u32 %v3111, 16
      %v3115 = vshrl.u32 %v3111, 16
      %v3116 = vshll.u32 %v3112, 16
      %v3117 = vshrl.u32 %v3112, 16
      %vm3118 = vc.u32 %v3110, %v3114
      %v3119 = vsel %vm3118, 1, 0
      %v3120 = vadd.s32 %v3110, %v3114
      %v3121 = vadd.s32 %v3113, %v3119
      %vm3122 = vc.u32 %v3120, %v3116
      %v3123 = vsel %vm3122, 1, 0
      %v3124 = vadd.s32 %v3120, %v3116
      %v3125 = vadd.s32 %v3121, %v3123
      %v3126 = vadd.s32 %v3125, %v3115
      %v3127 = vadd.s32 %v3126, %v3117
      %v3128 = vshrl.u32 %v3127, 4
      %v3129 = vmul.u32 %v3128, 18
      %v3130 = vsub.s32 %v3106, %v3129
      %v3131 = vsub.s32 0, %v3130
      %v3132 = vsel %vm3104, %v3131, %v3130
      %vm3133 = vcmp.lt.s32.totalorder %v2229, 0
      %v3134 = vsub.s32 0, %v2229
      %v3135 = vsel %vm3133, %v3134, %v2229
      %v3136 = vand.u32 %v3135, 65535
      %v3137 = vshrl.u32 %v3135, 16
      %v3139 = vmul.u32 %v3136, 14564
      %v3140 = vmul.u32 %v3136, 58254
      %v3141 = vmul.u32 %v3137, 14564
      %v3142 = vmul.u32 %v3137, 58254
      %v3143 = vshll.u32 %v3140, 16
      %v3144 = vshrl.u32 %v3140, 16
      %v3145 = vshll.u32 %v3141, 16
      %v3146 = vshrl.u32 %v3141, 16
      %vm3147 = vc.u32 %v3139, %v3143
      %v3148 = vsel %vm3147, 1, 0
      %v3149 = vadd.s32 %v3139, %v3143
      %v3150 = vadd.s32 %v3142, %v3148
      %vm3151 = vc.u32 %v3149, %v3145
      %v3152 = vsel %vm3151, 1, 0
      %v3153 = vadd.s32 %v3149, %v3145
      %v3154 = vadd.s32 %v3150, %v3152
      %v3155 = vadd.s32 %v3154, %v3144
      %v3156 = vadd.s32 %v3155, %v3146
      %v3157 = vshrl.u32 %v3156, 4
      %v3158 = vmul.u32 %v3157, 18
      %v3159 = vsub.s32 %v3135, %v3158
      %v3160 = vsub.s32 0, %v3159
      %v3161 = vsel %vm3133, %v3160, %v3159
      %vm3162 = vcmp.lt.s32.totalorder %v2230, 0
      %v3163 = vsub.s32 0, %v2230
      %v3164 = vsel %vm3162, %v3163, %v2230
      %v3165 = vand.u32 %v3164, 65535
      %v3166 = vshrl.u32 %v3164, 16
      %v3168 = vmul.u32 %v3165, 14564
      %v3169 = vmul.u32 %v3165, 58254
      %v3170 = vmul.u32 %v3166, 14564
      %v3171 = vmul.u32 %v3166, 58254
      %v3172 = vshll.u32 %v3169, 16
      %v3173 = vshrl.u32 %v3169, 16
      %v3174 = vshll.u32 %v3170, 16
      %v3175 = vshrl.u32 %v3170, 16
      %vm3176 = vc.u32 %v3168, %v3172
      %v3177 = vsel %vm3176, 1, 0
      %v3178 = vadd.s32 %v3168, %v3172
      %v3179 = vadd.s32 %v3171, %v3177
      %vm3180 = vc.u32 %v3178, %v3174
      %v3181 = vsel %vm3180, 1, 0
      %v3182 = vadd.s32 %v3178, %v3174
      %v3183 = vadd.s32 %v3179, %v3181
      %v3184 = vadd.s32 %v3183, %v3173
      %v3185 = vadd.s32 %v3184, %v3175
      %v3186 = vshrl.u32 %v3185, 4
      %v3187 = vmul.u32 %v3186, 18
      %v3188 = vsub.s32 %v3164, %v3187
      %v3189 = vsub.s32 0, %v3188
      %v3190 = vsel %vm3162, %v3189, %v3188
      %vm3191 = vcmp.lt.s32.totalorder %v2231, 0
      %v3192 = vsub.s32 0, %v2231
      %v3193 = vsel %vm3191, %v3192, %v2231
      %v3194 = vand.u32 %v3193, 65535
      %v3195 = vshrl.u32 %v3193, 16
      %v3197 = vmul.u32 %v3194, 14564
      %v3198 = vmul.u32 %v3194, 58254
      %v3199 = vmul.u32 %v3195, 14564
      %v3200 = vmul.u32 %v3195, 58254
      %v3201 = vshll.u32 %v3198, 16
      %v3202 = vshrl.u32 %v3198, 16
      %v3203 = vshll.u32 %v3199, 16
      %v3204 = vshrl.u32 %v3199, 16
      %vm3205 = vc.u32 %v3197, %v3201
      %v3206 = vsel %vm3205, 1, 0
      %v3207 = vadd.s32 %v3197, %v3201
      %v3208 = vadd.s32 %v3200, %v3206
      %vm3209 = vc.u32 %v3207, %v3203
      %v3210 = vsel %vm3209, 1, 0
      %v3211 = vadd.s32 %v3207, %v3203
      %v3212 = vadd.s32 %v3208, %v3210
      %v3213 = vadd.s32 %v3212, %v3202
      %v3214 = vadd.s32 %v3213, %v3204
      %v3215 = vshrl.u32 %v3214, 4
      %v3216 = vmul.u32 %v3215, 18
      %v3217 = vsub.s32 %v3193, %v3216
      %v3218 = vsub.s32 0, %v3217
      %v3219 = vsel %vm3191, %v3218, %v3217
      %vm3220 = vcmp.lt.s32.totalorder %v2232, 0
      %v3221 = vsub.s32 0, %v2232
      %v3222 = vsel %vm3220, %v3221, %v2232
      %v3223 = vand.u32 %v3222, 65535
      %v3224 = vshrl.u32 %v3222, 16
      %v3226 = vmul.u32 %v3223, 14564
      %v3227 = vmul.u32 %v3223, 58254
      %v3228 = vmul.u32 %v3224, 14564
      %v3229 = vmul.u32 %v3224, 58254
      %v3230 = vshll.u32 %v3227, 16
      %v3231 = vshrl.u32 %v3227, 16
      %v3232 = vshll.u32 %v3228, 16
      %v3233 = vshrl.u32 %v3228, 16
      %vm3234 = vc.u32 %v3226, %v3230
      %v3235 = vsel %vm3234, 1, 0
      %v3236 = vadd.s32 %v3226, %v3230
      %v3237 = vadd.s32 %v3229, %v3235
      %vm3238 = vc.u32 %v3236, %v3232
      %v3239 = vsel %vm3238, 1, 0
      %v3240 = vadd.s32 %v3236, %v3232
      %v3241 = vadd.s32 %v3237, %v3239
      %v3242 = vadd.s32 %v3241, %v3231
      %v3243 = vadd.s32 %v3242, %v3233
      %v3244 = vshrl.u32 %v3243, 4
      %v3245 = vmul.u32 %v3244, 18
      %v3246 = vsub.s32 %v3222, %v3245
      %v3247 = vsub.s32 0, %v3246
      %v3248 = vsel %vm3220, %v3247, %v3246
      %vm3249 = vcmp.lt.s32.totalorder %v2233, 0
      %v3250 = vsub.s32 0, %v2233
      %v3251 = vsel %vm3249, %v3250, %v2233
      %v3252 = vand.u32 %v3251, 65535
      %v3253 = vshrl.u32 %v3251, 16
      %v3255 = vmul.u32 %v3252, 14564
      %v3256 = vmul.u32 %v3252, 58254
      %v3257 = vmul.u32 %v3253, 14564
      %v3258 = vmul.u32 %v3253, 58254
      %v3259 = vshll.u32 %v3256, 16
      %v3260 = vshrl.u32 %v3256, 16
      %v3261 = vshll.u32 %v3257, 16
      %v3262 = vshrl.u32 %v3257, 16
      %vm3263 = vc.u32 %v3255, %v3259
      %v3264 = vsel %vm3263, 1, 0
      %v3265 = vadd.s32 %v3255, %v3259
      %v3266 = vadd.s32 %v3258, %v3264
      %vm3267 = vc.u32 %v3265, %v3261
      %v3268 = vsel %vm3267, 1, 0
      %v3269 = vadd.s32 %v3265, %v3261
      %v3270 = vadd.s32 %v3266, %v3268
      %v3271 = vadd.s32 %v3270, %v3260
      %v3272 = vadd.s32 %v3271, %v3262
      %v3273 = vshrl.u32 %v3272, 4
      %v3274 = vmul.u32 %v3273, 18
      %v3275 = vsub.s32 %v3251, %v3274
      %v3276 = vsub.s32 0, %v3275
      %v3277 = vsel %vm3249, %v3276, %v3275
      %vm3278 = vcmp.ne.s32.totalorder %v2262, 0
      %vm3279 = vcmp.ne.s32.totalorder %v2291, 0
      %vm3280 = vcmp.ne.s32.totalorder %v2320, 0
      %vm3281 = vcmp.ne.s32.totalorder %v2349, 0
      %vm3282 = vcmp.ne.s32.totalorder %v2378, 0
      %vm3283 = vcmp.ne.s32.totalorder %v2407, 0
      %vm3284 = vcmp.ne.s32.totalorder %v2436, 0
      %vm3285 = vcmp.ne.s32.totalorder %v2465, 0
      %vm3286 = vcmp.ne.s32.totalorder %v2494, 0
      %vm3287 = vcmp.ne.s32.totalorder %v2523, 0
      %vm3288 = vcmp.ne.s32.totalorder %v2552, 0
      %vm3289 = vcmp.ne.s32.totalorder %v2581, 0
      %vm3290 = vcmp.ne.s32.totalorder %v2610, 0
      %vm3291 = vcmp.ne.s32.totalorder %v2639, 0
      %vm3292 = vcmp.ne.s32.totalorder %v2668, 0
      %vm3293 = vcmp.ne.s32.totalorder %v2697, 0
      %vm3294 = vcmp.ne.s32.totalorder %v2726, 0
      %vm3295 = vcmp.ne.s32.totalorder %v2755, 0
      %vm3296 = vcmp.ne.s32.totalorder %v2784, 0
      %vm3297 = vcmp.ne.s32.totalorder %v2813, 0
      %vm3298 = vcmp.ne.s32.totalorder %v2842, 0
      %vm3299 = vcmp.ne.s32.totalorder %v2871, 0
      %vm3300 = vcmp.ne.s32.totalorder %v2900, 0
      %vm3301 = vcmp.ne.s32.totalorder %v2929, 0
      %vm3302 = vcmp.ne.s32.totalorder %v2958, 0
      %vm3303 = vcmp.ne.s32.totalorder %v2987, 0
      %vm3304 = vcmp.ne.s32.totalorder %v3016, 0
      %vm3305 = vcmp.ne.s32.totalorder %v3045, 0
      %vm3306 = vcmp.ne.s32.totalorder %v3074, 0
      %vm3307 = vcmp.ne.s32.totalorder %v3103, 0
      %vm3308 = vcmp.ne.s32.totalorder %v3132, 0
      %vm3309 = vcmp.ne.s32.totalorder %v3161, 0
      %vm3310 = vcmp.ne.s32.totalorder %v3190, 0
      %vm3311 = vcmp.ne.s32.totalorder %v3219, 0
      %vm3312 = vcmp.ne.s32.totalorder %v3248, 0
      %vm3313 = vcmp.ne.s32.totalorder %v3277, 0
      %vm3314 = vcmp.lt.s32.totalorder %v2262, 0
      %vm3315 = vcmp.lt.s32.totalorder %v2291, 0
      %vm3316 = vcmp.lt.s32.totalorder %v2320, 0
      %vm3317 = vcmp.lt.s32.totalorder %v2349, 0
      %vm3318 = vcmp.lt.s32.totalorder %v2378, 0
      %vm3319 = vcmp.lt.s32.totalorder %v2407, 0
      %vm3320 = vcmp.lt.s32.totalorder %v2436, 0
      %vm3321 = vcmp.lt.s32.totalorder %v2465, 0
      %vm3322 = vcmp.lt.s32.totalorder %v2494, 0
      %vm3323 = vcmp.lt.s32.totalorder %v2523, 0
      %vm3324 = vcmp.lt.s32.totalorder %v2552, 0
      %vm3325 = vcmp.lt.s32.totalorder %v2581, 0
      %vm3326 = vcmp.lt.s32.totalorder %v2610, 0
      %vm3327 = vcmp.lt.s32.totalorder %v2639, 0
      %vm3328 = vcmp.lt.s32.totalorder %v2668, 0
      %vm3329 = vcmp.lt.s32.totalorder %v2697, 0
      %vm3330 = vcmp.lt.s32.totalorder %v2726, 0
      %vm3331 = vcmp.lt.s32.totalorder %v2755, 0
      %vm3332 = vcmp.lt.s32.totalorder %v2784, 0
      %vm3333 = vcmp.lt.s32.totalorder %v2813, 0
      %vm3334 = vcmp.lt.s32.totalorder %v2842, 0
      %vm3335 = vcmp.lt.s32.totalorder %v2871, 0
      %vm3336 = vcmp.lt.s32.totalorder %v2900, 0
      %vm3337 = vcmp.lt.s32.totalorder %v2929, 0
      %vm3338 = vcmp.lt.s32.totalorder %v2958, 0
      %vm3339 = vcmp.lt.s32.totalorder %v2987, 0
      %vm3340 = vcmp.lt.s32.totalorder %v3016, 0
      %vm3341 = vcmp.lt.s32.totalorder %v3045, 0
      %vm3342 = vcmp.lt.s32.totalorder %v3074, 0
      %vm3343 = vcmp.lt.s32.totalorder %v3103, 0
      %vm3344 = vcmp.lt.s32.totalorder %v3132, 0
      %vm3345 = vcmp.lt.s32.totalorder %v3161, 0
      %vm3346 = vcmp.lt.s32.totalorder %v3190, 0
      %vm3347 = vcmp.lt.s32.totalorder %v3219, 0
      %vm3348 = vcmp.lt.s32.totalorder %v3248, 0
      %vm3349 = vcmp.lt.s32.totalorder %v3277, 0
      %vm3350 = vmand %vm3314, %vm3278
      %vm3351 = vmand %vm3315, %vm3279
      %vm3352 = vmand %vm3316, %vm3280
      %vm3353 = vmand %vm3317, %vm3281
      %vm3354 = vmand %vm3318, %vm3282
      %vm3355 = vmand %vm3319, %vm3283
      %vm3356 = vmand %vm3320, %vm3284
      %vm3357 = vmand %vm3321, %vm3285
      %vm3358 = vmand %vm3322, %vm3286
      %vm3359 = vmand %vm3323, %vm3287
      %vm3360 = vmand %vm3324, %vm3288
      %vm3361 = vmand %vm3325, %vm3289
      %vm3362 = vmand %vm3326, %vm3290
      %vm3363 = vmand %vm3327, %vm3291
      %vm3364 = vmand %vm3328, %vm3292
      %vm3365 = vmand %vm3329, %vm3293
      %vm3366 = vmand %vm3330, %vm3294
      %vm3367 = vmand %vm3331, %vm3295
      %vm3368 = vmand %vm3332, %vm3296
      %vm3369 = vmand %vm3333, %vm3297
      %vm3370 = vmand %vm3334, %vm3298
      %vm3371 = vmand %vm3335, %vm3299
      %vm3372 = vmand %vm3336, %vm3300
      %vm3373 = vmand %vm3337, %vm3301
      %vm3374 = vmand %vm3338, %vm3302
      %vm3375 = vmand %vm3339, %vm3303
      %vm3376 = vmand %vm3340, %vm3304
      %vm3377 = vmand %vm3341, %vm3305
      %vm3378 = vmand %vm3342, %vm3306
      %vm3379 = vmand %vm3343, %vm3307
      %vm3380 = vmand %vm3344, %vm3308
      %vm3381 = vmand %vm3345, %vm3309
      %vm3382 = vmand %vm3346, %vm3310
      %vm3383 = vmand %vm3347, %vm3311
      %vm3384 = vmand %vm3348, %vm3312
      %vm3385 = vmand %vm3349, %vm3313
      %v3386 = vadd.s32 %v2262, 18
      %v3387 = vadd.s32 %v2291, 18
      %v3388 = vadd.s32 %v2320, 18
      %v3389 = vadd.s32 %v2349, 18
      %v3390 = vadd.s32 %v2378, 18
      %v3391 = vadd.s32 %v2407, 18
      %v3392 = vadd.s32 %v2436, 18
      %v3393 = vadd.s32 %v2465, 18
      %v3394 = vadd.s32 %v2494, 18
      %v3395 = vadd.s32 %v2523, 18
      %v3396 = vadd.s32 %v2552, 18
      %v3397 = vadd.s32 %v2581, 18
      %v3398 = vadd.s32 %v2610, 18
      %v3399 = vadd.s32 %v2639, 18
      %v3400 = vadd.s32 %v2668, 18
      %v3401 = vadd.s32 %v2697, 18
      %v3402 = vadd.s32 %v2726, 18
      %v3403 = vadd.s32 %v2755, 18
      %v3404 = vadd.s32 %v2784, 18
      %v3405 = vadd.s32 %v2813, 18
      %v3406 = vadd.s32 %v2842, 18
      %v3407 = vadd.s32 %v2871, 18
      %v3408 = vadd.s32 %v2900, 18
      %v3409 = vadd.s32 %v2929, 18
      %v3410 = vadd.s32 %v2958, 18
      %v3411 = vadd.s32 %v2987, 18
      %v3412 = vadd.s32 %v3016, 18
      %v3413 = vadd.s32 %v3045, 18
      %v3414 = vadd.s32 %v3074, 18
      %v3415 = vadd.s32 %v3103, 18
      %v3416 = vadd.s32 %v3132, 18
      %v3417 = vadd.s32 %v3161, 18
      %v3418 = vadd.s32 %v3190, 18
      %v3419 = vadd.s32 %v3219, 18
      %v3420 = vadd.s32 %v3248, 18
      %v3421 = vadd.s32 %v3277, 18
      %v3422 = vsel %vm3350, %v3386, %v2262
      %v3423 = vsel %vm3351, %v3387, %v2291
      %v3424 = vsel %vm3352, %v3388, %v2320
      %v3425 = vsel %vm3353, %v3389, %v2349
      %v3426 = vsel %vm3354, %v3390, %v2378
      %v3427 = vsel %vm3355, %v3391, %v2407
      %v3428 = vsel %vm3356, %v3392, %v2436
      %v3429 = vsel %vm3357, %v3393, %v2465
      %v3430 = vsel %vm3358, %v3394, %v2494
      %v3431 = vsel %vm3359, %v3395, %v2523
      %v3432 = vsel %vm3360, %v3396, %v2552
      %v3433 = vsel %vm3361, %v3397, %v2581
      %v3434 = vsel %vm3362, %v3398, %v2610
      %v3435 = vsel %vm3363, %v3399, %v2639
      %v3436 = vsel %vm3364, %v3400, %v2668
      %v3437 = vsel %vm3365, %v3401, %v2697
      %v3438 = vsel %vm3366, %v3402, %v2726
      %v3439 = vsel %vm3367, %v3403, %v2755
      %v3440 = vsel %vm3368, %v3404, %v2784
      %v3441 = vsel %vm3369, %v3405, %v2813
      %v3442 = vsel %vm3370, %v3406, %v2842
      %v3443 = vsel %vm3371, %v3407, %v2871
      %v3444 = vsel %vm3372, %v3408, %v2900
      %v3445 = vsel %vm3373, %v3409, %v2929
      %v3446 = vsel %vm3374, %v3410, %v2958
      %v3447 = vsel %vm3375, %v3411, %v2987
      %v3448 = vsel %vm3376, %v3412, %v3016
      %v3449 = vsel %vm3377, %v3413, %v3045
      %v3450 = vsel %vm3378, %v3414, %v3074
      %v3451 = vsel %vm3379, %v3415, %v3103
      %v3452 = vsel %vm3380, %v3416, %v3132
      %v3453 = vsel %vm3381, %v3417, %v3161
      %v3454 = vsel %vm3382, %v3418, %v3190
      %v3455 = vsel %vm3383, %v3419, %v3219
      %v3456 = vsel %vm3384, %v3420, %v3248
      %v3457 = vsel %vm3385, %v3421, %v3277
      %vm3458 = vcmp.lt.s32.totalorder %v3422, 16
      %vm3459 = vcmp.lt.s32.totalorder %v3423, 16
      %vm3460 = vcmp.lt.s32.totalorder %v3424, 16
      %vm3461 = vcmp.lt.s32.totalorder %v3425, 16
      %vm3462 = vcmp.lt.s32.totalorder %v3426, 16
      %vm3463 = vcmp.lt.s32.totalorder %v3427, 16
      %vm3464 = vcmp.lt.s32.totalorder %v3428, 16
      %vm3465 = vcmp.lt.s32.totalorder %v3429, 16
      %vm3466 = vcmp.lt.s32.totalorder %v3430, 16
      %vm3467 = vcmp.lt.s32.totalorder %v3431, 16
      %vm3468 = vcmp.lt.s32.totalorder %v3432, 16
      %vm3469 = vcmp.lt.s32.totalorder %v3433, 16
      %vm3470 = vcmp.lt.s32.totalorder %v3434, 16
      %vm3471 = vcmp.lt.s32.totalorder %v3435, 16
      %vm3472 = vcmp.lt.s32.totalorder %v3436, 16
      %vm3473 = vcmp.lt.s32.totalorder %v3437, 16
      %vm3474 = vcmp.lt.s32.totalorder %v3438, 16
      %vm3475 = vcmp.lt.s32.totalorder %v3439, 16
      %vm3476 = vcmp.lt.s32.totalorder %v3440, 16
      %vm3477 = vcmp.lt.s32.totalorder %v3441, 16
      %vm3478 = vcmp.lt.s32.totalorder %v3442, 16
      %vm3479 = vcmp.lt.s32.totalorder %v3443, 16
      %vm3480 = vcmp.lt.s32.totalorder %v3444, 16
      %vm3481 = vcmp.lt.s32.totalorder %v3445, 16
      %vm3482 = vcmp.lt.s32.totalorder %v3446, 16
      %vm3483 = vcmp.lt.s32.totalorder %v3447, 16
      %vm3484 = vcmp.lt.s32.totalorder %v3448, 16
      %vm3485 = vcmp.lt.s32.totalorder %v3449, 16
      %vm3486 = vcmp.lt.s32.totalorder %v3450, 16
      %vm3487 = vcmp.lt.s32.totalorder %v3451, 16
      %vm3488 = vcmp.lt.s32.totalorder %v3452, 16
      %vm3489 = vcmp.lt.s32.totalorder %v3453, 16
      %vm3490 = vcmp.lt.s32.totalorder %v3454, 16
      %vm3491 = vcmp.lt.s32.totalorder %v3455, 16
      %vm3492 = vcmp.lt.s32.totalorder %v3456, 16
      %vm3493 = vcmp.lt.s32.totalorder %v3457, 16
      %v3494 = vsel %vm3458, 1, 0
      %v3495 = vsel %vm3459, 1, 0
      %v3496 = vsel %vm3460, 1, 0
      %v3497 = vsel %vm3461, 1, 0
      %v3498 = vsel %vm3462, 1, 0
      %v3499 = vsel %vm3463, 1, 0
      %v3500 = vsel %vm3464, 1, 0
      %v3501 = vsel %vm3465, 1, 0
      %v3502 = vsel %vm3466, 1, 0
      %v3503 = vsel %vm3467, 1, 0
      %v3504 = vsel %vm3468, 1, 0
      %v3505 = vsel %vm3469, 1, 0
      %v3506 = vsel %vm3470, 1, 0
      %v3507 = vsel %vm3471, 1, 0
      %v3508 = vsel %vm3472, 1, 0
      %v3509 = vsel %vm3473, 1, 0
      %v3510 = vsel %vm3474, 1, 0
      %v3511 = vsel %vm3475, 1, 0
      %v3512 = vsel %vm3476, 1, 0
      %v3513 = vsel %vm3477, 1, 0
      %v3514 = vsel %vm3478, 1, 0
      %v3515 = vsel %vm3479, 1, 0
      %v3516 = vsel %vm3480, 1, 0
      %v3517 = vsel %vm3481, 1, 0
      %v3518 = vsel %vm3482, 1, 0
      %v3519 = vsel %vm3483, 1, 0
      %v3520 = vsel %vm3484, 1, 0
      %v3521 = vsel %vm3485, 1, 0
      %v3522 = vsel %vm3486, 1, 0
      %v3523 = vsel %vm3487, 1, 0
      %v3524 = vsel %vm3488, 1, 0
      %v3525 = vsel %vm3489, 1, 0
      %v3526 = vsel %vm3490, 1, 0
      %v3527 = vsel %vm3491, 1, 0
      %v3528 = vsel %vm3492, 1, 0
      %v3529 = vsel %vm3493, 1, 0
      %v3530 = vcvt.s32.f32 %v3494
      %v3531 = vcvt.s32.f32 %v3495
      %v3532 = vcvt.s32.f32 %v3496
      %v3533 = vcvt.s32.f32 %v3497
      %v3534 = vcvt.s32.f32 %v3498
      %v3535 = vcvt.s32.f32 %v3499
      %v3536 = vcvt.s32.f32 %v3500
      %v3537 = vcvt.s32.f32 %v3501
      %v3538 = vcvt.s32.f32 %v3502
      %v3539 = vcvt.s32.f32 %v3503
      %v3540 = vcvt.s32.f32 %v3504
      %v3541 = vcvt.s32.f32 %v3505
      %v3542 = vcvt.s32.f32 %v3506
      %v3543 = vcvt.s32.f32 %v3507
      %v3544 = vcvt.s32.f32 %v3508
      %v3545 = vcvt.s32.f32 %v3509
      %v3546 = vcvt.s32.f32 %v3510
      %v3547 = vcvt.s32.f32 %v3511
      %v3548 = vcvt.s32.f32 %v3512
      %v3549 = vcvt.s32.f32 %v3513
      %v3550 = vcvt.s32.f32 %v3514
      %v3551 = vcvt.s32.f32 %v3515
      %v3552 = vcvt.s32.f32 %v3516
      %v3553 = vcvt.s32.f32 %v3517
      %v3554 = vcvt.s32.f32 %v3518
      %v3555 = vcvt.s32.f32 %v3519
      %v3556 = vcvt.s32.f32 %v3520
      %v3557 = vcvt.s32.f32 %v3521
      %v3558 = vcvt.s32.f32 %v3522
      %v3559 = vcvt.s32.f32 %v3523
      %v3560 = vcvt.s32.f32 %v3524
      %v3561 = vcvt.s32.f32 %v3525
      %v3562 = vcvt.s32.f32 %v3526
      %v3563 = vcvt.s32.f32 %v3527
      %v3564 = vcvt.s32.f32 %v3528
      %v3565 = vcvt.s32.f32 %v3529
      %v3566 = vmul.f32 %v2161, %v3530
      %v3567 = vmul.f32 %v2162, %v3531
      %v3568 = vmul.f32 %v2163, %v3532
      %v3569 = vmul.f32 %v2164, %v3533
      %v3570 = vmul.f32 %v2165, %v3534
      %v3571 = vmul.f32 %v2166, %v3535
      %v3572 = vmul.f32 %v2167, %v3536
      %v3573 = vmul.f32 %v2168, %v3537
      %v3574 = vmul.f32 %v2169, %v3538
      %v3575 = vmul.f32 %v2170, %v3539
      %v3576 = vmul.f32 %v2171, %v3540
      %v3577 = vmul.f32 %v2172, %v3541
      %v3578 = vmul.f32 %v2173, %v3542
      %v3579 = vmul.f32 %v2174, %v3543
      %v3580 = vmul.f32 %v2175, %v3544
      %v3581 = vmul.f32 %v2176, %v3545
      %v3582 = vmul.f32 %v2177, %v3546
      %v3583 = vmul.f32 %v2178, %v3547
      %v3584 = vmul.f32 %v2179, %v3548
      %v3585 = vmul.f32 %v2180, %v3549
      %v3586 = vmul.f32 %v2181, %v3550
      %v3587 = vmul.f32 %v2182, %v3551
      %v3588 = vmul.f32 %v2183, %v3552
      %v3589 = vmul.f32 %v2184, %v3553
      %v3590 = vmul.f32 %v2185, %v3554
      %v3591 = vmul.f32 %v2186, %v3555
      %v3592 = vmul.f32 %v2187, %v3556
      %v3593 = vmul.f32 %v2188, %v3557
      %v3594 = vmul.f32 %v2189, %v3558
      %v3595 = vmul.f32 %v2190, %v3559
      %v3596 = vmul.f32 %v2191, %v3560
      %v3597 = vmul.f32 %v2192, %v3561
      %v3598 = vmul.f32 %v2193, %v3562
      %v3599 = vmul.f32 %v2194, %v3563
      %v3600 = vmul.f32 %v2195, %v3564
      %v3601 = vmul.f32 %v2196, %v3565
      %v3602 = vadd.f32 %v3566, %v3567
      %v3603 = vadd.f32 %v3602, %v3568
      %v3604 = vadd.f32 %v3603, %v3569
      %v3605 = vadd.f32 %v3604, %v3570
      %v3606 = vadd.f32 %v3605, %v3571
      %v3607 = vadd.f32 %v3606, %v3572
      %v3608 = vadd.f32 %v3607, %v3573
      %v3609 = vadd.f32 %v3608, %v3574
      %v3610 = vadd.f32 %v3609, %v3575
      %v3611 = vadd.f32 %v3610, %v3576
      %v3612 = vadd.f32 %v3611, %v3577
      %v3613 = vadd.f32 %v3612, %v3578
      %v3614 = vadd.f32 %v3613, %v3579
      %v3615 = vadd.f32 %v3614, %v3580
      %v3616 = vadd.f32 %v3615, %v3581
      %v3617 = vadd.f32 %v3616, %v3582
      %v3618 = vadd.f32 %v3617, %v3583
      %v3619 = vadd.f32 %v3618, %v3584
      %v3620 = vadd.f32 %v3619, %v3585
      %v3621 = vadd.f32 %v3620, %v3586
      %v3622 = vadd.f32 %v3621, %v3587
      %v3623 = vadd.f32 %v3622, %v3588
      %v3624 = vadd.f32 %v3623, %v3589
      %v3625 = vadd.f32 %v3624, %v3590
      %v3626 = vadd.f32 %v3625, %v3591
      %v3627 = vadd.f32 %v3626, %v3592
      %v3628 = vadd.f32 %v3627, %v3593
      %v3629 = vadd.f32 %v3628, %v3594
      %v3630 = vadd.f32 %v3629, %v3595
      %v3631 = vadd.f32 %v3630, %v3596
      %v3632 = vadd.f32 %v3631, %v3597
      %v3633 = vadd.f32 %v3632, %v3598
      %v3634 = vadd.f32 %v3633, %v3599
      %v3635 = vadd.f32 %v3634, %v3600
      %v3636 = vadd.f32 %v3635, %v3601
      %v3637 = vrot.slane %v3636, 4
      %v3638 = vadd.f32 %v3636, %v3637
      %v3639 = vrot.slane %v3638, 2
      %v3640 = vadd.f32 %v3638, %v3639
      %v3641 = vrot.slane %v3640, 1
      %v3642 = vadd.f32 %v3640, %v3641
      %v3643 = vmul.f32 %v3642, 0.00390625
      %v3644 = vsub.f32 %v2161, %v3643
      %v3645 = vsub.f32 %v2162, %v3643
      %v3646 = vsub.f32 %v2163, %v3643
      %v3647 = vsub.f32 %v2164, %v3643
      %v3648 = vsub.f32 %v2165, %v3643
      %v3649 = vsub.f32 %v2166, %v3643
      %v3650 = vsub.f32 %v2167, %v3643
      %v3651 = vsub.f32 %v2168, %v3643
      %v3652 = vsub.f32 %v2169, %v3643
      %v3653 = vsub.f32 %v2170, %v3643
      %v3654 = vsub.f32 %v2171, %v3643
      %v3655 = vsub.f32 %v2172, %v3643
      %v3656 = vsub.f32 %v2173, %v3643
      %v3657 = vsub.f32 %v2174, %v3643
      %v3658 = vsub.f32 %v2175, %v3643
      %v3659 = vsub.f32 %v2176, %v3643
      %v3660 = vsub.f32 %v2177, %v3643
      %v3661 = vsub.f32 %v2178, %v3643
      %v3662 = vsub.f32 %v2179, %v3643
      %v3663 = vsub.f32 %v2180, %v3643
      %v3664 = vsub.f32 %v2181, %v3643
      %v3665 = vsub.f32 %v2182, %v3643
      %v3666 = vsub.f32 %v2183, %v3643
      %v3667 = vsub.f32 %v2184, %v3643
      %v3668 = vsub.f32 %v2185, %v3643
      %v3669 = vsub.f32 %v2186, %v3643
      %v3670 = vsub.f32 %v2187, %v3643
      %v3671 = vsub.f32 %v2188, %v3643
      %v3672 = vsub.f32 %v2189, %v3643
      %v3673 = vsub.f32 %v2190, %v3643
      %v3674 = vsub.f32 %v2191, %v3643
      %v3675 = vsub.f32 %v2192, %v3643
      %v3676 = vsub.f32 %v2193, %v3643
      %v3677 = vsub.f32 %v2194, %v3643
      %v3678 = vsub.f32 %v2195, %v3643
      %v3679 = vsub.f32 %v2196, %v3643
      %v3680 = vmul.f32 %v3644, %v3644
      %v3681 = vmul.f32 %v3645, %v3645
      %v3682 = vmul.f32 %v3646, %v3646
      %v3683 = vmul.f32 %v3647, %v3647
      %v3684 = vmul.f32 %v3648, %v3648
      %v3685 = vmul.f32 %v3649, %v3649
      %v3686 = vmul.f32 %v3650, %v3650
      %v3687 = vmul.f32 %v3651, %v3651
      %v3688 = vmul.f32 %v3652, %v3652
      %v3689 = vmul.f32 %v3653, %v3653
      %v3690 = vmul.f32 %v3654, %v3654
      %v3691 = vmul.f32 %v3655, %v3655
      %v3692 = vmul.f32 %v3656, %v3656
      %v3693 = vmul.f32 %v3657, %v3657
      %v3694 = vmul.f32 %v3658, %v3658
      %v3695 = vmul.f32 %v3659, %v3659
      %v3696 = vmul.f32 %v3660, %v3660
      %v3697 = vmul.f32 %v3661, %v3661
      %v3698 = vmul.f32 %v3662, %v3662
      %v3699 = vmul.f32 %v3663, %v3663
      %v3700 = vmul.f32 %v3664, %v3664
      %v3701 = vmul.f32 %v3665, %v3665
      %v3702 = vmul.f32 %v3666, %v3666
      %v3703 = vmul.f32 %v3667, %v3667
      %v3704 = vmul.f32 %v3668, %v3668
      %v3705 = vmul.f32 %v3669, %v3669
      %v3706 = vmul.f32 %v3670, %v3670
      %v3707 = vmul.f32 %v3671, %v3671
      %v3708 = vmul.f32 %v3672, %v3672
      %v3709 = vmul.f32 %v3673, %v3673
      %v3710 = vmul.f32 %v3674, %v3674
      %v3711 = vmul.f32 %v3675, %v3675
      %v3712 = vmul.f32 %v3676, %v3676
      %v3713 = vmul.f32 %v3677, %v3677
      %v3714 = vmul.f32 %v3678, %v3678
      %v3715 = vmul.f32 %v3679, %v3679
      %v3716 = vmul.f32 %v3680, %v3530
      %v3717 = vmul.f32 %v3681, %v3531
      %v3718 = vmul.f32 %v3682, %v3532
      %v3719 = vmul.f32 %v3683, %v3533
      %v3720 = vmul.f32 %v3684, %v3534
      %v3721 = vmul.f32 %v3685, %v3535
      %v3722 = vmul.f32 %v3686, %v3536
      %v3723 = vmul.f32 %v3687, %v3537
      %v3724 = vmul.f32 %v3688, %v3538
      %v3725 = vmul.f32 %v3689, %v3539
      %v3726 = vmul.f32 %v3690, %v3540
      %v3727 = vmul.f32 %v3691, %v3541
      %v3728 = vmul.f32 %v3692, %v3542
      %v3729 = vmul.f32 %v3693, %v3543
      %v3730 = vmul.f32 %v3694, %v3544
      %v3731 = vmul.f32 %v3695, %v3545
      %v3732 = vmul.f32 %v3696, %v3546
      %v3733 = vmul.f32 %v3697, %v3547
      %v3734 = vmul.f32 %v3698, %v3548
      %v3735 = vmul.f32 %v3699, %v3549
      %v3736 = vmul.f32 %v3700, %v3550
      %v3737 = vmul.f32 %v3701, %v3551
      %v3738 = vmul.f32 %v3702, %v3552
      %v3739 = vmul.f32 %v3703, %v3553
      %v3740 = vmul.f32 %v3704, %v3554
      %v3741 = vmul.f32 %v3705, %v3555
      %v3742 = vmul.f32 %v3706, %v3556
      %v3743 = vmul.f32 %v3707, %v3557
      %v3744 = vmul.f32 %v3708, %v3558
      %v3745 = vmul.f32 %v3709, %v3559
      %v3746 = vmul.f32 %v3710, %v3560
      %v3747 = vmul.f32 %v3711, %v3561
      %v3748 = vmul.f32 %v3712, %v3562
      %v3749 = vmul.f32 %v3713, %v3563
      %v3750 = vmul.f32 %v3714, %v3564
      %v3751 = vmul.f32 %v3715, %v3565
      %v3752 = vadd.f32 %v3716, %v3717
      %v3753 = vadd.f32 %v3752, %v3718
      %v3754 = vadd.f32 %v3753, %v3719
      %v3755 = vadd.f32 %v3754, %v3720
      %v3756 = vadd.f32 %v3755, %v3721
      %v3757 = vadd.f32 %v3756, %v3722
      %v3758 = vadd.f32 %v3757, %v3723
      %v3759 = vadd.f32 %v3758, %v3724
      %v3760 = vadd.f32 %v3759, %v3725
      %v3761 = vadd.f32 %v3760, %v3726
      %v3762 = vadd.f32 %v3761, %v3727
      %v3763 = vadd.f32 %v3762, %v3728
      %v3764 = vadd.f32 %v3763, %v3729
      %v3765 = vadd.f32 %v3764, %v3730
      %v3766 = vadd.f32 %v3765, %v3731
      %v3767 = vadd.f32 %v3766, %v3732
      %v3768 = vadd.f32 %v3767, %v3733
      %v3769 = vadd.f32 %v3768, %v3734
      %v3770 = vadd.f32 %v3769, %v3735
      %v3771 = vadd.f32 %v3770, %v3736
      %v3772 = vadd.f32 %v3771, %v3737
      %v3773 = vadd.f32 %v3772, %v3738
      %v3774 = vadd.f32 %v3773, %v3739
      %v3775 = vadd.f32 %v3774, %v3740
      %v3776 = vadd.f32 %v3775, %v3741
      %v3777 = vadd.f32 %v3776, %v3742
      %v3778 = vadd.f32 %v3777, %v3743
      %v3779 = vadd.f32 %v3778, %v3744
      %v3780 = vadd.f32 %v3779, %v3745
      %v3781 = vadd.f32 %v3780, %v3746
      %v3782 = vadd.f32 %v3781, %v3747
      %v3783 = vadd.f32 %v3782, %v3748
      %v3784 = vadd.f32 %v3783, %v3749
      %v3785 = vadd.f32 %v3784, %v3750
      %v3786 = vadd.f32 %v3785, %v3751
      %v3787 = vrot.slane %v3786, 4
      %v3788 = vadd.f32 %v3786, %v3787
      %v3789 = vrot.slane %v3788, 2
      %v3790 = vadd.f32 %v3788, %v3789
      %v3791 = vrot.slane %v3790, 1
      %v3792 = vadd.f32 %v3790, %v3791
      %v3793 = vmul.f32 %v3792, 0.00390625
      %v3794 = vadd.f32 %v3793, 1e-05
      %v3795 = vrsqrt.pop %v3794
      %v3796 = vmul.f32 %v3795, %v3794
      %v3797 = vmul.f32 %v3796, %v3795
      %v3798 = vmul.f32 0.5, %v3797
      %v3799 = vsub.f32 1.5, %v3798
      %v3800 = vmul.f32 %v3795, %v3799
      %vm3801 = vweird.f32 %v3794
      %vm3802 = vweird.f32 %v3795
      %vm3803 = vmor %vm3801, %vm3802
      %v3804 = vsel %vm3803, %v3795, %v3800
      %v3805 = vmul.f32 %v3644, %v3804
      %v3806 = vmul.f32 %v3645, %v3804
      %v3807 = vmul.f32 %v3646, %v3804
      %v3808 = vmul.f32 %v3647, %v3804
      %v3809 = vmul.f32 %v3648, %v3804
      %v3810 = vmul.f32 %v3649, %v3804
      %v3811 = vmul.f32 %v3650, %v3804
      %v3812 = vmul.f32 %v3651, %v3804
      %v3813 = vmul.f32 %v3652, %v3804
      %v3814 = vmul.f32 %v3653, %v3804
      %v3815 = vmul.f32 %v3654, %v3804
      %v3816 = vmul.f32 %v3655, %v3804
      %v3817 = vmul.f32 %v3656, %v3804
      %v3818 = vmul.f32 %v3657, %v3804
      %v3819 = vmul.f32 %v3658, %v3804
      %v3820 = vmul.f32 %v3659, %v3804
      %v3821 = vmul.f32 %v3660, %v3804
      %v3822 = vmul.f32 %v3661, %v3804
      %v3823 = vmul.f32 %v3662, %v3804
      %v3824 = vmul.f32 %v3663, %v3804
      %v3825 = vmul.f32 %v3664, %v3804
      %v3826 = vmul.f32 %v3665, %v3804
      %v3827 = vmul.f32 %v3666, %v3804
      %v3828 = vmul.f32 %v3667, %v3804
      %v3829 = vmul.f32 %v3668, %v3804
      %v3830 = vmul.f32 %v3669, %v3804
      %v3831 = vmul.f32 %v3670, %v3804
      %v3832 = vmul.f32 %v3671, %v3804
      %v3833 = vmul.f32 %v3672, %v3804
      %v3834 = vmul.f32 %v3673, %v3804
      %v3835 = vmul.f32 %v3674, %v3804
      %v3836 = vmul.f32 %v3675, %v3804
      %v3837 = vmul.f32 %v3676, %v3804
      %v3838 = vmul.f32 %v3677, %v3804
      %v3839 = vmul.f32 %v3678, %v3804
      %v3840 = vmul.f32 %v3679, %v3804
      %v3841 = vld [vmem:[%s292] sm:$0x1]
      %v3843 = vperm.slane %v3841, 0
      %v3845 = vmul.f32 %v3805, %v3843
      %v3846 = vmul.f32 %v3806, %v3843
      %v3847 = vmul.f32 %v3807, %v3843
      %v3848 = vmul.f32 %v3808, %v3843
      %v3849 = vmul.f32 %v3809, %v3843
      %v3850 = vmul.f32 %v3810, %v3843
      %v3851 = vmul.f32 %v3811, %v3843
      %v3852 = vmul.f32 %v3812, %v3843
      %v3853 = vmul.f32 %v3813, %v3843
      %v3854 = vmul.f32 %v3814, %v3843
      %v3855 = vmul.f32 %v3815, %v3843
      %v3856 = vmul.f32 %v3816, %v3843
      %v3857 = vmul.f32 %v3817, %v3843
      %v3858 = vmul.f32 %v3818, %v3843
      %v3859 = vmul.f32 %v3819, %v3843
      %v3860 = vmul.f32 %v3820, %v3843
      %v3861 = vmul.f32 %v3821, %v3843
      %v3862 = vmul.f32 %v3822, %v3843
      %v3863 = vmul.f32 %v3823, %v3843
      %v3864 = vmul.f32 %v3824, %v3843
      %v3865 = vmul.f32 %v3825, %v3843
      %v3866 = vmul.f32 %v3826, %v3843
      %v3867 = vmul.f32 %v3827, %v3843
      %v3868 = vmul.f32 %v3828, %v3843
      %v3869 = vmul.f32 %v3829, %v3843
      %v3870 = vmul.f32 %v3830, %v3843
      %v3871 = vmul.f32 %v3831, %v3843
      %v3872 = vmul.f32 %v3832, %v3843
      %v3873 = vmul.f32 %v3833, %v3843
      %v3874 = vmul.f32 %v3834, %v3843
      %v3875 = vmul.f32 %v3835, %v3843
      %v3876 = vmul.f32 %v3836, %v3843
      %v3877 = vmul.f32 %v3837, %v3843
      %v3878 = vmul.f32 %v3838, %v3843
      %v3879 = vmul.f32 %v3839, %v3843
      %v3880 = vmul.f32 %v3840, %v3843
      %v3881 = vld [vmem:[%s295] sm:$0x1]
      %v3883 = vperm.slane %v3881, 0
      %v3885 = vadd.f32 %v3845, %v3883
      %v3886 = vadd.f32 %v3846, %v3883
      %v3887 = vadd.f32 %v3847, %v3883
      %v3888 = vadd.f32 %v3848, %v3883
      %v3889 = vadd.f32 %v3849, %v3883
      %v3890 = vadd.f32 %v3850, %v3883
      %v3891 = vadd.f32 %v3851, %v3883
      %v3892 = vadd.f32 %v3852, %v3883
      %v3893 = vadd.f32 %v3853, %v3883
      %v3894 = vadd.f32 %v3854, %v3883
      %v3895 = vadd.f32 %v3855, %v3883
      %v3896 = vadd.f32 %v3856, %v3883
      %v3897 = vadd.f32 %v3857, %v3883
      %v3898 = vadd.f32 %v3858, %v3883
      %v3899 = vadd.f32 %v3859, %v3883
      %v3900 = vadd.f32 %v3860, %v3883
      %v3901 = vadd.f32 %v3861, %v3883
      %v3902 = vadd.f32 %v3862, %v3883
      %v3903 = vadd.f32 %v3863, %v3883
      %v3904 = vadd.f32 %v3864, %v3883
      %v3905 = vadd.f32 %v3865, %v3883
      %v3906 = vadd.f32 %v3866, %v3883
      %v3907 = vadd.f32 %v3867, %v3883
      %v3908 = vadd.f32 %v3868, %v3883
      %v3909 = vadd.f32 %v3869, %v3883
      %v3910 = vadd.f32 %v3870, %v3883
      %v3911 = vadd.f32 %v3871, %v3883
      %v3912 = vadd.f32 %v3872, %v3883
      %v3913 = vadd.f32 %v3873, %v3883
      %v3914 = vadd.f32 %v3874, %v3883
      %v3915 = vadd.f32 %v3875, %v3883
      %v3916 = vadd.f32 %v3876, %v3883
      %v3917 = vadd.f32 %v3877, %v3883
      %v3918 = vadd.f32 %v3878, %v3883
      %v3919 = vadd.f32 %v3879, %v3883
      %v3920 = vadd.f32 %v3880, %v3883
      %v3921 = vmul.f32 %v3885, 0.01
      %v3922 = vmul.f32 %v3886, 0.01
      %v3923 = vmul.f32 %v3887, 0.01
      %v3924 = vmul.f32 %v3888, 0.01
      %v3925 = vmul.f32 %v3889, 0.01
      %v3926 = vmul.f32 %v3890, 0.01
      %v3927 = vmul.f32 %v3891, 0.01
      %v3928 = vmul.f32 %v3892, 0.01
      %v3929 = vmul.f32 %v3893, 0.01
      %v3930 = vmul.f32 %v3894, 0.01
      %v3931 = vmul.f32 %v3895, 0.01
      %v3932 = vmul.f32 %v3896, 0.01
      %v3933 = vmul.f32 %v3897, 0.01
      %v3934 = vmul.f32 %v3898, 0.01
      %v3935 = vmul.f32 %v3899, 0.01
      %v3936 = vmul.f32 %v3900, 0.01
      %v3937 = vmul.f32 %v3901, 0.01
      %v3938 = vmul.f32 %v3902, 0.01
      %v3939 = vmul.f32 %v3903, 0.01
      %v3940 = vmul.f32 %v3904, 0.01
      %v3941 = vmul.f32 %v3905, 0.01
      %v3942 = vmul.f32 %v3906, 0.01
      %v3943 = vmul.f32 %v3907, 0.01
      %v3944 = vmul.f32 %v3908, 0.01
      %v3945 = vmul.f32 %v3909, 0.01
      %v3946 = vmul.f32 %v3910, 0.01
      %v3947 = vmul.f32 %v3911, 0.01
      %v3948 = vmul.f32 %v3912, 0.01
      %v3949 = vmul.f32 %v3913, 0.01
      %v3950 = vmul.f32 %v3914, 0.01
      %v3951 = vmul.f32 %v3915, 0.01
      %v3952 = vmul.f32 %v3916, 0.01
      %v3953 = vmul.f32 %v3917, 0.01
      %v3954 = vmul.f32 %v3918, 0.01
      %v3955 = vmul.f32 %v3919, 0.01
      %v3956 = vmul.f32 %v3920, 0.01
      %v3957 = vmax.f32 %v3885, %v3921
      %v3958 = vmax.f32 %v3886, %v3922
      %v3959 = vmax.f32 %v3887, %v3923
      %v3960 = vmax.f32 %v3888, %v3924
      %v3961 = vmax.f32 %v3889, %v3925
      %v3962 = vmax.f32 %v3890, %v3926
      %v3963 = vmax.f32 %v3891, %v3927
      %v3964 = vmax.f32 %v3892, %v3928
      %v3965 = vmax.f32 %v3893, %v3929
      %v3966 = vmax.f32 %v3894, %v3930
      %v3967 = vmax.f32 %v3895, %v3931
      %v3968 = vmax.f32 %v3896, %v3932
      %v3969 = vmax.f32 %v3897, %v3933
      %v3970 = vmax.f32 %v3898, %v3934
      %v3971 = vmax.f32 %v3899, %v3935
      %v3972 = vmax.f32 %v3900, %v3936
      %v3973 = vmax.f32 %v3901, %v3937
      %v3974 = vmax.f32 %v3902, %v3938
      %v3975 = vmax.f32 %v3903, %v3939
      %v3976 = vmax.f32 %v3904, %v3940
      %v3977 = vmax.f32 %v3905, %v3941
      %v3978 = vmax.f32 %v3906, %v3942
      %v3979 = vmax.f32 %v3907, %v3943
      %v3980 = vmax.f32 %v3908, %v3944
      %v3981 = vmax.f32 %v3909, %v3945
      %v3982 = vmax.f32 %v3910, %v3946
      %v3983 = vmax.f32 %v3911, %v3947
      %v3984 = vmax.f32 %v3912, %v3948
      %v3985 = vmax.f32 %v3913, %v3949
      %v3986 = vmax.f32 %v3914, %v3950
      %v3987 = vmax.f32 %v3915, %v3951
      %v3988 = vmax.f32 %v3916, %v3952
      %v3989 = vmax.f32 %v3917, %v3953
      %v3990 = vmax.f32 %v3918, %v3954
      %v3991 = vmax.f32 %v3919, %v3955
      %v3992 = vmax.f32 %v3920, %v3956
      %v3993 = vmul.f32 %v3957, %v3530
      %v3994 = vmul.f32 %v3958, %v3531
      %v3995 = vmul.f32 %v3959, %v3532
      %v3996 = vmul.f32 %v3960, %v3533
      %v3997 = vmul.f32 %v3961, %v3534
      %v3998 = vmul.f32 %v3962, %v3535
      %v3999 = vmul.f32 %v3963, %v3536
      %v4000 = vmul.f32 %v3964, %v3537
      %v4001 = vmul.f32 %v3965, %v3538
      %v4002 = vmul.f32 %v3966, %v3539
      %v4003 = vmul.f32 %v3967, %v3540
      %v4004 = vmul.f32 %v3968, %v3541
      %v4005 = vmul.f32 %v3969, %v3542
      %v4006 = vmul.f32 %v3970, %v3543
      %v4007 = vmul.f32 %v3971, %v3544
      %v4008 = vmul.f32 %v3972, %v3545
      %v4009 = vmul.f32 %v3973, %v3546
      %v4010 = vmul.f32 %v3974, %v3547
      %v4011 = vmul.f32 %v3975, %v3548
      %v4012 = vmul.f32 %v3976, %v3549
      %v4013 = vmul.f32 %v3977, %v3550
      %v4014 = vmul.f32 %v3978, %v3551
      %v4015 = vmul.f32 %v3979, %v3552
      %v4016 = vmul.f32 %v3980, %v3553
      %v4017 = vmul.f32 %v3981, %v3554
      %v4018 = vmul.f32 %v3982, %v3555
      %v4019 = vmul.f32 %v3983, %v3556
      %v4020 = vmul.f32 %v3984, %v3557
      %v4021 = vmul.f32 %v3985, %v3558
      %v4022 = vmul.f32 %v3986, %v3559
      %v4023 = vmul.f32 %v3987, %v3560
      %v4024 = vmul.f32 %v3988, %v3561
      %v4025 = vmul.f32 %v3989, %v3562
      %v4026 = vmul.f32 %v3990, %v3563
      %v4027 = vmul.f32 %v3991, %v3564
      %v4028 = vmul.f32 %v3992, %v3565
      %4029 = vst [vmem:[%s303] sm:$0xff] 0.0
      %4030 = vst [vmem:[%s303 + $0x8] sm:$0xff] 0.0
      %4031 = vst [vmem:[%s303 + $0x10] sm:$0xff] 0.0
      %4032 = vst [vmem:[%s303 + $0x18] sm:$0xff] 0.0
      %4033 = vst [vmem:[%s303 + $0x20] sm:$0xff] 0.0
      %4034 = vst [vmem:[%s303 + $0x28] sm:$0xff] 0.0
      %4035 = vst [vmem:[%s303 + $0x30] sm:$0xff] 0.0
      %4036 = vst [vmem:[%s303 + $0x38] sm:$0xff] 0.0
      %4037 = vst [vmem:[%s303 + $0x40] sm:$0xff] 0.0
      %4038 = vst [vmem:[%s303 + $0x48] sm:$0xff] 0.0
      %4039 = vst [vmem:[%s303 + $0x50] sm:$0xff] 0.0
      %4040 = vst [vmem:[%s303 + $0x58] sm:$0xff] 0.0
      %4041 = vst [vmem:[%s303 + $0x60] sm:$0xff] 0.0
      %4042 = vst [vmem:[%s303 + $0x68] sm:$0xff] 0.0
      %4043 = vst [vmem:[%s303 + $0x70] sm:$0xff] 0.0
      %4044 = vst [vmem:[%s303 + $0x78] sm:$0xff] 0.0
      %4045 = vst [vmem:[%s303 + $0x80] sm:$0xff] 0.0
      %4046 = vst [vmem:[%s303 + $0x88] sm:$0xff] 0.0
      %4047 = vst [vmem:[%s303 + $0x90] sm:$0xff] 0.0
      %4048 = vst [vmem:[%s303 + $0x98] sm:$0xff] 0.0
      %4049 = vst [vmem:[%s303 + $0xa0] sm:$0xff] 0.0
      %4050 = vst [vmem:[%s303 + $0xa8] sm:$0xff] 0.0
      %4051 = vst [vmem:[%s303 + $0xb0] sm:$0xff] 0.0
      %4052 = vst [vmem:[%s303 + $0xb8] sm:$0xff] 0.0
      %4053 = vst [vmem:[%s303 + $0xc0] sm:$0xff] 0.0
      %4054 = vst [vmem:[%s303 + $0xc8] sm:$0xff] 0.0
      %4055 = vst [vmem:[%s303 + $0xd0] sm:$0xff] 0.0
      %4056 = vst [vmem:[%s303 + $0xd8] sm:$0xff] 0.0
      %4057 = vst [vmem:[%s303 + $0xe0] sm:$0xff] 0.0
      %4058 = vst [vmem:[%s303 + $0xe8] sm:$0xff] 0.0
      %4059 = vst [vmem:[%s303 + $0xf0] sm:$0xff] 0.0
      %4060 = vst [vmem:[%s303 + $0xf8] sm:$0xff] 0.0
      %4061 = vst [vmem:[%s303 + $0x100] sm:$0xff] 0.0
      %4062 = vst [vmem:[%s303 + $0x108] sm:$0xff] 0.0
      %4063 = vst [vmem:[%s303 + $0x110] sm:$0xff] 0.0
      %4064 = vst [vmem:[%s303 + $0x118] sm:$0xff] 0.0
      %4065 = vst [vmem:[%s303 + $0x120] sm:$0xff] 0.0
      %4066 = vst [vmem:[%s303 + $0x128] sm:$0xff] 0.0
      %4067 = vst [vmem:[%s303 + $0x130] sm:$0xff] 0.0
      %4068 = vst [vmem:[%s303 + $0x138] sm:$0xff] 0.0
      %4069 = vst [vmem:[%s303 + $0x140] sm:$0xff] 0.0
      %4070 = vst [vmem:[%s303 + $0x13] sm:$0xff] %v3993
      %4071 = vst [vmem:[%s303 + $0x1b] sm:$0xff] %v3994
      %4072 = vst [vmem:[%s303 + $0x23] sm:$0xff] %v3995
      %4073 = vst [vmem:[%s303 + $0x2b] sm:$0xff] %v3996
      %4074 = vst [vmem:[%s303 + $0x33] sm:$0xff] %v3997
      %4075 = vst [vmem:[%s303 + $0x3b] sm:$0xff] %v3998
      %4076 = vst [vmem:[%s303 + $0x43] sm:$0xff] %v3999
      %4077 = vst [vmem:[%s303 + $0x4b] sm:$0xff] %v4000
      %4078 = vst [vmem:[%s303 + $0x53] sm:$0xff] %v4001
      %4079 = vst [vmem:[%s303 + $0x5b] sm:$0xff] %v4002
      %4080 = vst [vmem:[%s303 + $0x63] sm:$0xff] %v4003
      %4081 = vst [vmem:[%s303 + $0x6b] sm:$0xff] %v4004
      %4082 = vst [vmem:[%s303 + $0x73] sm:$0xff] %v4005
      %4083 = vst [vmem:[%s303 + $0x7b] sm:$0xff] %v4006
      %4084 = vst [vmem:[%s303 + $0x83] sm:$0xff] %v4007
      %4085 = vst [vmem:[%s303 + $0x8b] sm:$0xff] %v4008
      %4086 = vst [vmem:[%s303 + $0x93] sm:$0xff] %v4009
      %4087 = vst [vmem:[%s303 + $0x9b] sm:$0xff] %v4010
      %4088 = vst [vmem:[%s303 + $0xa3] sm:$0xff] %v4011
      %4089 = vst [vmem:[%s303 + $0xab] sm:$0xff] %v4012
      %4090 = vst [vmem:[%s303 + $0xb3] sm:$0xff] %v4013
      %4091 = vst [vmem:[%s303 + $0xbb] sm:$0xff] %v4014
      %4092 = vst [vmem:[%s303 + $0xc3] sm:$0xff] %v4015
      %4093 = vst [vmem:[%s303 + $0xcb] sm:$0xff] %v4016
      %4094 = vst [vmem:[%s303 + $0xd3] sm:$0xff] %v4017
      %4095 = vst [vmem:[%s303 + $0xdb] sm:$0xff] %v4018
      %4096 = vst [vmem:[%s303 + $0xe3] sm:$0xff] %v4019
      %4097 = vst [vmem:[%s303 + $0xeb] sm:$0xff] %v4020
      %4098 = vst [vmem:[%s303 + $0xf3] sm:$0xff] %v4021
      %4099 = vst [vmem:[%s303 + $0xfb] sm:$0xff] %v4022
      %4100 = vst [vmem:[%s303 + $0x103] sm:$0xff] %v4023
      %4101 = vst [vmem:[%s303 + $0x10b] sm:$0xff] %v4024
      %4102 = vst [vmem:[%s303 + $0x113] sm:$0xff] %v4025
      %4103 = vst [vmem:[%s303 + $0x11b] sm:$0xff] %v4026
      %4104 = vst [vmem:[%s303 + $0x123] sm:$0xff] %v4027
      %4105 = vst [vmem:[%s303 + $0x12b] sm:$0xff] %v4028
      %p4106 = scmp.lt.s32.totalorder %s20, 1
      %s4107 = scalar_select %p4106, %s20, 1
      %p4108 = scmp.lt.s32.totalorder %s21, 0
      %s4109 = scalar_select %p4108, %s21, 0
      %s4110 = smul.addr %s4107, 41
      %s4111 = sadd.s32 %s4109, %s4110
      %s4112 = smul.addr %s4111, 8
      %s4113 = scalar_lea.vmem %s5, %s4112
      // Predicated region
      $region41: #{up_transition_forward.4} parent=39 // pred_check
        %p4114 = pneg %p178
      $region42: #{up_transition_forward.4} parent=39 // pred_check_branch
        %4116 = sbr.rel (%p4114) target = $region44
      $region43: #{up_transition_forward.4} parent=39 // pred_region
        _
      $region44: #{up_transition_forward.4} parent=39 // pred_fallthru
        _
    $region40: #{up_transition_forward.4} parent=5 // pred_fallthru
      _
    %p4117 = scmp.le.s32.totalorder 2, %s11
    // Predicated region
    $region45: #{up_transition_forward.4} parent=5 // pred_check
      %p4118 = pneg %p4117
    $region46: #{up_transition_forward.4} parent=5 // pred_check_branch
      %4120 = sbr.rel (%p4118) target = $region48
    $region47: #{up_transition_forward.4} parent=5 // pred_region
      %s4121 = ssub.s32 %s11, 2
      // Predicated region
      $region49: #{up_transition_forward.4} parent=47 // pred_check
        %p4122 = pneg %p184
      $region50: #{up_transition_forward.4} parent=47 // pred_check_branch
        %4124 = sbr.rel (%p4122) target = $region52
      $region51: #{up_transition_forward.4} parent=47 // pred_region
        %p4125 = scmp.lt.s32.totalorder %s22, 1
        %s4126 = scalar_select %p4125, %s22, 1
        %p4127 = scmp.lt.s32.totalorder %s23, 0
        %s4128 = scalar_select %p4127, %s23, 0
        %s4129 = smul.addr %s4126, 41
        %s4130 = sadd.s32 %s4128, %s4129
        %s4131 = smul.addr %s4130, 8
        %s4132 = scalar_lea.vmem %s5, %s4131
      $region52: #{up_transition_forward.4} parent=47 // pred_fallthru
        _
    $region48: #{up_transition_forward.4} parent=5 // pred_fallthru
      _
  $region6: #{up_transition_forward.4} parent=0 // loop_footer
    %s15 = sadd.s32 1, %s11
  $region7: #{up_transition_forward.4} parent=0 // loop_footer_branch
    %10 = sbr.rel target = $region3
  $region8: #{up_transition_forward.4} parent=0 // loop_exit
    _

</llo_original>
